<compile_context>
chip_gen: v6e
topology: v6e:2x2x1
jax: 0.10.0
libtpu: 0.0.40
codegen_flags: <defaults>
</compile_context>

<pallas_src>
import functools

import jax
import jax.numpy as jnp
from jax.experimental import pallas as pl
from jax.experimental.pallas import tpu as pltpu


def _encoder_layer_kernel(
    x_ref,        # (BB, L, E)  f32
    in_wt_ref,    # (E, 3E)     matmul dtype (in_proj_weight^T, Q cols pre-scaled)
    in_b_ref,     # (1, 3E)     f32          (Q entries pre-scaled)
    out_wt_ref,   # (E, E)      matmul dtype (out_proj.weight^T)
    out_b_ref,    # (1, E)      f32
    w1t_ref,      # (E, F)      matmul dtype (linear1.weight^T)
    b1_ref,       # (1, F)      f32
    w2t_ref,      # (F, E)      matmul dtype (linear2.weight^T)
    b2_ref,       # (1, E)      f32
    g1_ref,       # (1, E)      norm1.weight
    be1_ref,      # (1, E)      norm1.bias
    g2_ref,       # (1, E)      norm2.weight
    be2_ref,      # (1, E)      norm2.bias
    o_ref,        # (BB, L, E)
    *,
    nhead: int,
):
    BB, L, E = x_ref.shape
    dh = E // nhead
    cd = in_wt_ref.dtype                              # MXU operand dtype

    x = x_ref[...]                                    # (BB, L, E) f32
    x2 = x.reshape(BB * L, E)                         # rows for the big GEMMs

    # ---- self-attention: fused QKV in-projection over all BB*L rows ----
    qkv = jnp.dot(x2.astype(cd), in_wt_ref[...],
                  preferred_element_type=jnp.float32) + in_b_ref[...]   # (BB*L, 3E)
    qkv = qkv.astype(cd)          # single hoisted cast; scale folded into W_q

    # ---- per-head attention (batched over BB) ----
    # TODO(synk): replace with head-folded batched matmuls + flash KV tiling.
    ctxs = []
    for h in range(nhead):
        q_h = qkv[:, h * dh:(h + 1) * dh].reshape(BB, L, dh)
        k_h = qkv[:, E + h * dh:E + (h + 1) * dh].reshape(BB, L, dh)
        v_h = qkv[:, 2 * E + h * dh:2 * E + (h + 1) * dh].reshape(BB, L, dh)

        s = jnp.einsum('bld,bmd->blm', q_h, k_h,
                       preferred_element_type=jnp.float32)              # (BB, L, L)
        s = s - jnp.max(s, axis=-1, keepdims=True)
        p = jnp.exp(s)
        p = p * pl.reciprocal(jnp.sum(p, axis=-1, keepdims=True), approx=True)

        ctx = jnp.einsum('blm,bmd->bld', p.astype(cd), v_h,
                         preferred_element_type=jnp.float32)            # (BB, L, dh)
        ctxs.append(ctx.astype(cd))                   # keep MXU operand dtype

    attn = jnp.concatenate(ctxs, axis=-1).reshape(BB * L, E)            # (BB*L, E) cd

    # ---- out-projection over all BB*L rows ----
    a_o = jnp.dot(attn, out_wt_ref[...],
                  preferred_element_type=jnp.float32) + out_b_ref[...]  # (BB*L, E)

    # ---- residual + LayerNorm1 (f32) ----
    y = x2 + a_o
    mu = jnp.mean(y, axis=-1, keepdims=True)
    var = jnp.mean((y - mu) ** 2, axis=-1, keepdims=True)
    y = (y - mu) * jax.lax.rsqrt(var + 1e-5) * g1_ref[...] + be1_ref[...]

    # ---- feed-forward: linear1 -> relu -> linear2 ----
    h1 = jnp.dot(y.astype(cd), w1t_ref[...],
                 preferred_element_type=jnp.float32) + b1_ref[...]      # (BB*L, F)
    h1 = jnp.maximum(h1, 0.0).astype(cd)              # ReLU output stays in cd
    f = jnp.dot(h1, w2t_ref[...],
                preferred_element_type=jnp.float32) + b2_ref[...]       # (BB*L, E)

    # ---- residual + LayerNorm2 (f32) ----
    z = y + f
    mu2 = jnp.mean(z, axis=-1, keepdims=True)
    var2 = jnp.mean((z - mu2) ** 2, axis=-1, keepdims=True)
    z = (z - mu2) * jax.lax.rsqrt(var2 + 1e-5) * g2_ref[...] + be2_ref[...]

    o_ref[...] = z.reshape(BB, L, E).astype(o_ref.dtype)


def transformer_encoder_layer(src, params, *, nhead, block_batch=None,
                              matmul_dtype=jnp.bfloat16, vmem_limit_bytes=None):
    """src: (L, N, E) float32, matching PyTorch MultiheadAttention convention."""
    L, N, E = src.shape
    F = params["w1"].shape[0]
    dh = E // nhead
    x = jnp.transpose(src, (1, 0, 2)).astype(jnp.float32)      # (N, L, E)

    # ---- generation-aware sizing (v7x: 64 MiB VMEM/TC + 2 TCs; v5e/v6e: 128 MiB) ----
    try:
        vmem_cap = int(pltpu.get_tpu_info().vmem_capacity_bytes)
    except Exception:
        vmem_cap = 64 * 1024 * 1024                   # conservative default
    small_vmem = vmem_cap <= 64 * 1024 * 1024

    if block_batch is None:
        # small-VMEM parts: smaller working set + prefer >=2 grid steps so the
        # single 'parallel' axis can be split across the 2 TensorCores.
        target_rows, min_rows = (128, 64) if small_vmem else (512, 128)
        bb = max(1, min(N, -(-target_rows // L)))
        if bb >= N and N > 1 and (-(-N // 2)) * L >= min_rows:
            bb = -(-N // 2)
        block_batch = bb
    BB = block_batch

    if vmem_limit_bytes is None:
        want = (48 if small_vmem else 96) * 1024 * 1024
        vmem_limit_bytes = min(want, vmem_cap)

    n_pad = -N % BB
    if n_pad:
        x = jnp.concatenate([x, jnp.zeros((n_pad, L, E), x.dtype)], axis=0)
    NP = N + n_pad

    # ---- one-time weight transforms: transpose, fold 1/sqrt(dh) into Q, cast ----
    scale = 1.0 / (dh ** 0.5)
    col = jnp.concatenate([jnp.full((E,), scale, jnp.float32),
                           jnp.ones((2 * E,), jnp.float32)])
    in_w = params["in_w"].astype(jnp.float32) * col[:, None]   # scale Q rows
    in_b = params["in_b"].astype(jnp.float32) * col[None, :]   # scale Q bias
    in_wt = in_w.T.astype(matmul_dtype)              # (E, 3E)
    out_wt = params["out_w"].T.astype(matmul_dtype)  # (E, E)
    w1t = params["w1"].T.astype(matmul_dtype)        # (E, F)
    w2t = params["w2"].T.astype(matmul_dtype)        # (F, E)
    f32 = lambda a: a.astype(jnp.float32)

    def run(single_buffer_weights):
        def wspec(shape):
            idx = lambda b: tuple(0 for _ in shape)
            if single_buffer_weights:
                # Grid-invariant block: single-buffer to halve weight VMEM.
                return pl.BlockSpec(shape, idx, pipeline_mode=pl.Buffered(1))
            return pl.BlockSpec(shape, idx)

        return pl.pallas_call(
            functools.partial(_encoder_layer_kernel, nhead=nhead),
            out_shape=jax.ShapeDtypeStruct((NP, L, E), jnp.float32),
            grid=(NP // BB,),
            in_specs=[
                pl.BlockSpec((BB, L, E), lambda b: (b, 0, 0)),  # x block
                wspec((E, 3 * E)),                              # in_proj_weight^T
                wspec((1, 3 * E)),                              # in_proj_bias
                wspec((E, E)),                                  # out_proj.weight^T
                wspec((1, E)),                                  # out_proj.bias
                wspec((E, F)),                                  # linear1.weight^T
                wspec((1, F)),                                  # linear1.bias
                wspec((F, E)),                                  # linear2.weight^T
                wspec((1, E)),                                  # linear2.bias
                wspec((1, E)),                                  # norm1.weight
                wspec((1, E)),                                  # norm1.bias
                wspec((1, E)),                                  # norm2.weight
                wspec((1, E)),                                  # norm2.bias
            ],
            out_specs=pl.BlockSpec((BB, L, E), lambda b: (b, 0, 0)),
            compiler_params=pltpu.CompilerParams(
                dimension_semantics=("parallel",),
                vmem_limit_bytes=vmem_limit_bytes),
        )(
            x,
            in_wt, in_b,
            out_wt, f32(params["out_b"]),
            w1t, f32(params["b1"]),
            w2t, f32(params["b2"]),
            f32(params["g1"]), f32(params["be1"]),
            f32(params["g2"]), f32(params["be2"]),
        )

    try:
        out = run(True)
    except Exception:
        # Fallback if this JAX build rejects single-buffering via pl.Buffered(1).
        out = run(False)

    out = out[:N]
    return jnp.transpose(out, (1, 0, 2))              # back to (L, N, E)


def _reference(src, params, *, nhead):
    """Pure-JAX reference mirroring PyTorch semantics (dropout = identity)."""
    L, N, E = src.shape
    dh = E // nhead
    scale = 1.0 / (dh ** 0.5)
    x = jnp.transpose(src, (1, 0, 2))                 # (N, L, E)

    qkv = jnp.einsum("nld,fd->nlf", x, params["in_w"]) + params["in_b"][0]
    q, k, v = jnp.split(qkv, 3, axis=-1)
    q = q * scale
    q = q.reshape(N, L, nhead, dh).transpose(0, 2, 1, 3)
    k = k.reshape(N, L, nhead, dh).transpose(0, 2, 1, 3)
    v = v.reshape(N, L, nhead, dh).transpose(0, 2, 1, 3)
    s = jnp.einsum("nhqd,nhkd->nhqk", q, k)
    p = jax.nn.softmax(s, axis=-1)
    a = jnp.einsum("nhqk,nhkd->nhqd", p, v).transpose(0, 2, 1, 3).reshape(N, L, E)
    a = jnp.einsum("nld,ed->nle", a, params["out_w"]) + params["out_b"][0]

    def ln(t, g, b):
        mu = jnp.mean(t, axis=-1, keepdims=True)
        var = jnp.mean((t - mu) ** 2, axis=-1, keepdims=True)
        return (t - mu) * jax.lax.rsqrt(var + 1e-5) * g[0] + b[0]

    y = ln(x + a, params["g1"], params["be1"])
    h1 = jax.nn.relu(jnp.einsum("nld,fd->nlf", y, params["w1"]) + params["b1"][0])
    f = jnp.einsum("nlf,ef->nle", h1, params["w2"]) + params["b2"][0]
    z = ln(y + f, params["g2"], params["be2"])
    return jnp.transpose(z, (1, 0, 2))


if __name__ == "__main__":
    # Small shapes consistent with the module's forward:
    L, N, E, H, F = 8, 2, 32, 4, 64   # seq, batch, d_model, nhead, dim_feedforward

    key = jax.random.PRNGKey(0)
    ks = jax.random.split(key, 10)
    scale = 0.05
    params = {
        "in_w":  scale * jax.random.normal(ks[0], (3 * E, E), jnp.float32),
        "in_b":  scale * jax.random.normal(ks[1], (1, 3 * E), jnp.float32),
        "out_w": scale * jax.random.normal(ks[2], (E, E), jnp.float32),
        "out_b": scale * jax.random.normal(ks[3], (1, E), jnp.float32),
        "w1":    scale * jax.random.normal(ks[4], (F, E), jnp.float32),
        "b1":    scale * jax.random.normal(ks[5], (1, F), jnp.float32),
        "w2":    scale * jax.random.normal(ks[6], (E, F), jnp.float32),
        "b2":    scale * jax.random.normal(ks[7], (1, E), jnp.float32),
        "g1":    jnp.ones((1, E), jnp.float32),
        "be1":   jnp.zeros((1, E), jnp.float32),
        "g2":    jnp.ones((1, E), jnp.float32),
        "be2":   jnp.zeros((1, E), jnp.float32),
    }

    src = jax.random.normal(ks[8], (L, N, E), jnp.float32)
    ref = _reference(src, params, nhead=H)

    # f32 MXU operands: near bit-exact vs reference (approx-reciprocal softmax
    # is the only deviation).
    out_f32 = transformer_encoder_layer(src, params, nhead=H,
                                        matmul_dtype=jnp.float32)
    out_f32 = jax.block_until_ready(out_f32)
    assert out_f32.shape == (L, N, E)
    assert jnp.allclose(out_f32, ref, atol=2e-3, rtol=2e-3), "f32 mismatch vs reference"

    # bf16 MXU operands (native v6e/v7x MXU throughput), f32 accumulation.
    out_bf16 = transformer_encoder_layer(src, params, nhead=H,
                                         matmul_dtype=jnp.bfloat16)
    out_bf16 = jax.block_until_ready(out_bf16)
    assert out_bf16.shape == (L, N, E)
    assert jnp.allclose(out_bf16, ref, atol=2e-2, rtol=2e-2), "bf16 mismatch vs reference"

    print("KERNEL_OK")
</pallas_src>

<mosaic_0001>
module attributes {stable_mosaic.version = 11 : i64} {
  func.func @_encoder_layer_kernel(%arg0: i32, %arg1: memref<2x8x32xf32, #tpu.memory_space<vmem>>, %arg2: memref<32x96xf32, #tpu.memory_space<vmem>>, %arg3: memref<1x96xf32, #tpu.memory_space<vmem>>, %arg4: memref<32x32xf32, #tpu.memory_space<vmem>>, %arg5: memref<1x32xf32, #tpu.memory_space<vmem>>, %arg6: memref<32x64xf32, #tpu.memory_space<vmem>>, %arg7: memref<1x64xf32, #tpu.memory_space<vmem>>, %arg8: memref<64x32xf32, #tpu.memory_space<vmem>>, %arg9: memref<1x32xf32, #tpu.memory_space<vmem>>, %arg10: memref<1x32xf32, #tpu.memory_space<vmem>>, %arg11: memref<1x32xf32, #tpu.memory_space<vmem>>, %arg12: memref<1x32xf32, #tpu.memory_space<vmem>>, %arg13: memref<1x32xf32, #tpu.memory_space<vmem>>, %arg14: memref<2x8x32xf32, #tpu.memory_space<vmem>>) attributes {dimension_semantics = [#tpu.dimension_semantics<parallel>], iteration_bounds = array<i64: 1>, scalar_prefetch = 0 : i64, scratch_operands = 0 : i64, tpu.core_type = #tpu.core_type<tc>, window_params = [{transform_indices = @transform_0, window_bounds = array<i64: 2, 8, 32>}, {pipeline_mode = #tpu.pipeline_mode<synchronous>, transform_indices = @transform_1, window_bounds = array<i64: 32, 96>}, {pipeline_mode = #tpu.pipeline_mode<synchronous>, transform_indices = @transform_2, window_bounds = array<i64: 1, 96>}, {pipeline_mode = #tpu.pipeline_mode<synchronous>, transform_indices = @transform_3, window_bounds = array<i64: 32, 32>}, {pipeline_mode = #tpu.pipeline_mode<synchronous>, transform_indices = @transform_4, window_bounds = array<i64: 1, 32>}, {pipeline_mode = #tpu.pipeline_mode<synchronous>, transform_indices = @transform_5, window_bounds = array<i64: 32, 64>}, {pipeline_mode = #tpu.pipeline_mode<synchronous>, transform_indices = @transform_6, window_bounds = array<i64: 1, 64>}, {pipeline_mode = #tpu.pipeline_mode<synchronous>, transform_indices = @transform_7, window_bounds = array<i64: 64, 32>}, {pipeline_mode = #tpu.pipeline_mode<synchronous>, transform_indices = @transform_8, window_bounds = array<i64: 1, 32>}, {pipeline_mode = #tpu.pipeline_mode<synchronous>, transform_indices = @transform_9, window_bounds = array<i64: 1, 32>}, {pipeline_mode = #tpu.pipeline_mode<synchronous>, transform_indices = @transform_10, window_bounds = array<i64: 1, 32>}, {pipeline_mode = #tpu.pipeline_mode<synchronous>, transform_indices = @transform_11, window_bounds = array<i64: 1, 32>}, {pipeline_mode = #tpu.pipeline_mode<synchronous>, transform_indices = @transform_12, window_bounds = array<i64: 1, 32>}, {transform_indices = @transform_13, window_bounds = array<i64: 2, 8, 32>}]} {
    %c0 = arith.constant 0 : index
    %c0_0 = arith.constant 0 : index
    %c0_1 = arith.constant 0 : index
    %0 = vector.load %arg1[%c0, %c0_0, %c0_1] : memref<2x8x32xf32, #tpu.memory_space<vmem>>, vector<2x8x32xf32>
    %1 = vector.shape_cast %0 : vector<2x8x32xf32> to vector<16x32xf32>
    %c0_2 = arith.constant 0 : index
    %c0_3 = arith.constant 0 : index
    %2 = vector.load %arg2[%c0_2, %c0_3] : memref<32x96xf32, #tpu.memory_space<vmem>>, vector<32x96xf32>
    %cst = arith.constant dense<0.000000e+00> : vector<16x96xf32>
    %3 = tpu.matmul %1, %2, %cst {dimension_numbers = #tpu.dot_dimension_numbers<[1], [0], [0], [1], [0, 0, 1, 1], [], []>} : vector<16x32xf32>, vector<32x96xf32>, vector<16x96xf32> -> vector<16x96xf32>
    %c0_4 = arith.constant 0 : index
    %c0_5 = arith.constant 0 : index
    %4 = vector.load %arg3[%c0_4, %c0_5] : memref<1x96xf32, #tpu.memory_space<vmem>>, vector<1x96xf32>
    %5 = vector.broadcast %4 : vector<1x96xf32> to vector<16x96xf32>
    %6 = arith.addf %3, %5 : vector<16x96xf32>
    %7 = vector.extract_strided_slice %6 {offsets = [0, 0], sizes = [16, 8], strides = [1, 1]} : vector<16x96xf32> to vector<16x8xf32>
    %8 = vector.shape_cast %7 : vector<16x8xf32> to vector<2x8x8xf32>
    %9 = vector.extract_strided_slice %6 {offsets = [0, 32], sizes = [16, 8], strides = [1, 1]} : vector<16x96xf32> to vector<16x8xf32>
    %10 = vector.shape_cast %9 : vector<16x8xf32> to vector<2x8x8xf32>
    %11 = vector.extract_strided_slice %6 {offsets = [0, 64], sizes = [16, 8], strides = [1, 1]} : vector<16x96xf32> to vector<16x8xf32>
    %12 = vector.shape_cast %11 : vector<16x8xf32> to vector<2x8x8xf32>
    "tpu.trace_start"() <{level = 10 : i32, message = "bld,bmd->blm"}> : () -> ()
    %cst_6 = arith.constant dense<0.000000e+00> : vector<2x8x8xf32>
    %13 = tpu.matmul %8, %10, %cst_6 {dimension_numbers = #tpu.dot_dimension_numbers<[2], [2], [1], [1], [0, 0, 0, 1, 1, 1], [0], [0]>} : vector<2x8x8xf32>, vector<2x8x8xf32>, vector<2x8x8xf32> -> vector<2x8x8xf32>
    "tpu.trace_stop"() : () -> ()
    %cst_7 = arith.constant dense<0xFF800000> : vector<2x8xf32>
    %14 = vector.multi_reduction <maximumf>, %13, %cst_7 [2] : vector<2x8x8xf32> to vector<2x8xf32>
    %15 = vector.shape_cast %14 : vector<2x8xf32> to vector<2x8x1xf32>
    %16 = vector.broadcast %15 : vector<2x8x1xf32> to vector<2x8x8xf32>
    %17 = arith.subf %13, %16 : vector<2x8x8xf32>
    %18 = math.exp %17 : vector<2x8x8xf32>
    %cst_8 = arith.constant dense<0.000000e+00> : vector<2x8xf32>
    %19 = vector.multi_reduction <add>, %18, %cst_8 [2] : vector<2x8x8xf32> to vector<2x8xf32>
    %20 = vector.shape_cast %19 : vector<2x8xf32> to vector<2x8x1xf32>
    %21 = tpu.reciprocal %20 {approx = true} : vector<2x8x1xf32> -> vector<2x8x1xf32>
    %22 = vector.broadcast %21 : vector<2x8x1xf32> to vector<2x8x8xf32>
    %23 = arith.mulf %18, %22 : vector<2x8x8xf32>
    "tpu.trace_start"() <{level = 10 : i32, message = "blm,bmd->bld"}> : () -> ()
    %cst_9 = arith.constant dense<0.000000e+00> : vector<2x8x8xf32>
    %24 = tpu.matmul %23, %12, %cst_9 {dimension_numbers = #tpu.dot_dimension_numbers<[2], [1], [1], [2], [0, 0, 0, 1, 1, 2], [0], [0]>} : vector<2x8x8xf32>, vector<2x8x8xf32>, vector<2x8x8xf32> -> vector<2x8x8xf32>
    "tpu.trace_stop"() : () -> ()
    %25 = vector.extract_strided_slice %6 {offsets = [0, 8], sizes = [16, 8], strides = [1, 1]} : vector<16x96xf32> to vector<16x8xf32>
    %26 = vector.shape_cast %25 : vector<16x8xf32> to vector<2x8x8xf32>
    %27 = vector.extract_strided_slice %6 {offsets = [0, 40], sizes = [16, 8], strides = [1, 1]} : vector<16x96xf32> to vector<16x8xf32>
    %28 = vector.shape_cast %27 : vector<16x8xf32> to vector<2x8x8xf32>
    %29 = vector.extract_strided_slice %6 {offsets = [0, 72], sizes = [16, 8], strides = [1, 1]} : vector<16x96xf32> to vector<16x8xf32>
    %30 = vector.shape_cast %29 : vector<16x8xf32> to vector<2x8x8xf32>
    "tpu.trace_start"() <{level = 10 : i32, message = "bld,bmd->blm"}> : () -> ()
    %cst_10 = arith.constant dense<0.000000e+00> : vector<2x8x8xf32>
    %31 = tpu.matmul %26, %28, %cst_10 {dimension_numbers = #tpu.dot_dimension_numbers<[2], [2], [1], [1], [0, 0, 0, 1, 1, 1], [0], [0]>} : vector<2x8x8xf32>, vector<2x8x8xf32>, vector<2x8x8xf32> -> vector<2x8x8xf32>
    "tpu.trace_stop"() : () -> ()
    %cst_11 = arith.constant dense<0xFF800000> : vector<2x8xf32>
    %32 = vector.multi_reduction <maximumf>, %31, %cst_11 [2] : vector<2x8x8xf32> to vector<2x8xf32>
    %33 = vector.shape_cast %32 : vector<2x8xf32> to vector<2x8x1xf32>
    %34 = vector.broadcast %33 : vector<2x8x1xf32> to vector<2x8x8xf32>
    %35 = arith.subf %31, %34 : vector<2x8x8xf32>
    %36 = math.exp %35 : vector<2x8x8xf32>
    %cst_12 = arith.constant dense<0.000000e+00> : vector<2x8xf32>
    %37 = vector.multi_reduction <add>, %36, %cst_12 [2] : vector<2x8x8xf32> to vector<2x8xf32>
    %38 = vector.shape_cast %37 : vector<2x8xf32> to vector<2x8x1xf32>
    %39 = tpu.reciprocal %38 {approx = true} : vector<2x8x1xf32> -> vector<2x8x1xf32>
    %40 = vector.broadcast %39 : vector<2x8x1xf32> to vector<2x8x8xf32>
    %41 = arith.mulf %36, %40 : vector<2x8x8xf32>
    "tpu.trace_start"() <{level = 10 : i32, message = "blm,bmd->bld"}> : () -> ()
    %cst_13 = arith.constant dense<0.000000e+00> : vector<2x8x8xf32>
    %42 = tpu.matmul %41, %30, %cst_13 {dimension_numbers = #tpu.dot_dimension_numbers<[2], [1], [1], [2], [0, 0, 0, 1, 1, 2], [0], [0]>} : vector<2x8x8xf32>, vector<2x8x8xf32>, vector<2x8x8xf32> -> vector<2x8x8xf32>
    "tpu.trace_stop"() : () -> ()
    %43 = vector.extract_strided_slice %6 {offsets = [0, 16], sizes = [16, 8], strides = [1, 1]} : vector<16x96xf32> to vector<16x8xf32>
    %44 = vector.shape_cast %43 : vector<16x8xf32> to vector<2x8x8xf32>
    %45 = vector.extract_strided_slice %6 {offsets = [0, 48], sizes = [16, 8], strides = [1, 1]} : vector<16x96xf32> to vector<16x8xf32>
    %46 = vector.shape_cast %45 : vector<16x8xf32> to vector<2x8x8xf32>
    %47 = vector.extract_strided_slice %6 {offsets = [0, 80], sizes = [16, 8], strides = [1, 1]} : vector<16x96xf32> to vector<16x8xf32>
    %48 = vector.shape_cast %47 : vector<16x8xf32> to vector<2x8x8xf32>
    "tpu.trace_start"() <{level = 10 : i32, message = "bld,bmd->blm"}> : () -> ()
    %cst_14 = arith.constant dense<0.000000e+00> : vector<2x8x8xf32>
    %49 = tpu.matmul %44, %46, %cst_14 {dimension_numbers = #tpu.dot_dimension_numbers<[2], [2], [1], [1], [0, 0, 0, 1, 1, 1], [0], [0]>} : vector<2x8x8xf32>, vector<2x8x8xf32>, vector<2x8x8xf32> -> vector<2x8x8xf32>
    "tpu.trace_stop"() : () -> ()
    %cst_15 = arith.constant dense<0xFF800000> : vector<2x8xf32>
    %50 = vector.multi_reduction <maximumf>, %49, %cst_15 [2] : vector<2x8x8xf32> to vector<2x8xf32>
    %51 = vector.shape_cast %50 : vector<2x8xf32> to vector<2x8x1xf32>
    %52 = vector.broadcast %51 : vector<2x8x1xf32> to vector<2x8x8xf32>
    %53 = arith.subf %49, %52 : vector<2x8x8xf32>
    %54 = math.exp %53 : vector<2x8x8xf32>
    %cst_16 = arith.constant dense<0.000000e+00> : vector<2x8xf32>
    %55 = vector.multi_reduction <add>, %54, %cst_16 [2] : vector<2x8x8xf32> to vector<2x8xf32>
    %56 = vector.shape_cast %55 : vector<2x8xf32> to vector<2x8x1xf32>
    %57 = tpu.reciprocal %56 {approx = true} : vector<2x8x1xf32> -> vector<2x8x1xf32>
    %58 = vector.broadcast %57 : vector<2x8x1xf32> to vector<2x8x8xf32>
    %59 = arith.mulf %54, %58 : vector<2x8x8xf32>
    "tpu.trace_start"() <{level = 10 : i32, message = "blm,bmd->bld"}> : () -> ()
    %cst_17 = arith.constant dense<0.000000e+00> : vector<2x8x8xf32>
    %60 = tpu.matmul %59, %48, %cst_17 {dimension_numbers = #tpu.dot_dimension_numbers<[2], [1], [1], [2], [0, 0, 0, 1, 1, 2], [0], [0]>} : vector<2x8x8xf32>, vector<2x8x8xf32>, vector<2x8x8xf32> -> vector<2x8x8xf32>
    "tpu.trace_stop"() : () -> ()
    %61 = vector.extract_strided_slice %6 {offsets = [0, 24], sizes = [16, 8], strides = [1, 1]} : vector<16x96xf32> to vector<16x8xf32>
    %62 = vector.shape_cast %61 : vector<16x8xf32> to vector<2x8x8xf32>
    %63 = vector.extract_strided_slice %6 {offsets = [0, 56], sizes = [16, 8], strides = [1, 1]} : vector<16x96xf32> to vector<16x8xf32>
    %64 = vector.shape_cast %63 : vector<16x8xf32> to vector<2x8x8xf32>
    %65 = vector.extract_strided_slice %6 {offsets = [0, 88], sizes = [16, 8], strides = [1, 1]} : vector<16x96xf32> to vector<16x8xf32>
    %66 = vector.shape_cast %65 : vector<16x8xf32> to vector<2x8x8xf32>
    "tpu.trace_start"() <{level = 10 : i32, message = "bld,bmd->blm"}> : () -> ()
    %cst_18 = arith.constant dense<0.000000e+00> : vector<2x8x8xf32>
    %67 = tpu.matmul %62, %64, %cst_18 {dimension_numbers = #tpu.dot_dimension_numbers<[2], [2], [1], [1], [0, 0, 0, 1, 1, 1], [0], [0]>} : vector<2x8x8xf32>, vector<2x8x8xf32>, vector<2x8x8xf32> -> vector<2x8x8xf32>
    "tpu.trace_stop"() : () -> ()
    %cst_19 = arith.constant dense<0xFF800000> : vector<2x8xf32>
    %68 = vector.multi_reduction <maximumf>, %67, %cst_19 [2] : vector<2x8x8xf32> to vector<2x8xf32>
    %69 = vector.shape_cast %68 : vector<2x8xf32> to vector<2x8x1xf32>
    %70 = vector.broadcast %69 : vector<2x8x1xf32> to vector<2x8x8xf32>
    %71 = arith.subf %67, %70 : vector<2x8x8xf32>
    %72 = math.exp %71 : vector<2x8x8xf32>
    %cst_20 = arith.constant dense<0.000000e+00> : vector<2x8xf32>
    %73 = vector.multi_reduction <add>, %72, %cst_20 [2] : vector<2x8x8xf32> to vector<2x8xf32>
    %74 = vector.shape_cast %73 : vector<2x8xf32> to vector<2x8x1xf32>
    %75 = tpu.reciprocal %74 {approx = true} : vector<2x8x1xf32> -> vector<2x8x1xf32>
    %76 = vector.broadcast %75 : vector<2x8x1xf32> to vector<2x8x8xf32>
    %77 = arith.mulf %72, %76 : vector<2x8x8xf32>
    "tpu.trace_start"() <{level = 10 : i32, message = "blm,bmd->bld"}> : () -> ()
    %cst_21 = arith.constant dense<0.000000e+00> : vector<2x8x8xf32>
    %78 = tpu.matmul %77, %66, %cst_21 {dimension_numbers = #tpu.dot_dimension_numbers<[2], [1], [1], [2], [0, 0, 0, 1, 1, 2], [0], [0]>} : vector<2x8x8xf32>, vector<2x8x8xf32>, vector<2x8x8xf32> -> vector<2x8x8xf32>
    "tpu.trace_stop"() : () -> ()
    %79 = tpu.concatenate %24, %42, %60, %78 in 2 : vector<2x8x8xf32>, vector<2x8x8xf32>, vector<2x8x8xf32>, vector<2x8x8xf32> -> vector<2x8x32xf32>
    %80 = vector.shape_cast %79 : vector<2x8x32xf32> to vector<16x32xf32>
    %c0_22 = arith.constant 0 : index
    %c0_23 = arith.constant 0 : index
    %81 = vector.load %arg4[%c0_22, %c0_23] : memref<32x32xf32, #tpu.memory_space<vmem>>, vector<32x32xf32>
    %cst_24 = arith.constant dense<0.000000e+00> : vector<16x32xf32>
    %82 = tpu.matmul %80, %81, %cst_24 {dimension_numbers = #tpu.dot_dimension_numbers<[1], [0], [0], [1], [0, 0, 1, 1], [], []>} : vector<16x32xf32>, vector<32x32xf32>, vector<16x32xf32> -> vector<16x32xf32>
    %c0_25 = arith.constant 0 : index
    %c0_26 = arith.constant 0 : index
    %83 = vector.load %arg5[%c0_25, %c0_26] : memref<1x32xf32, #tpu.memory_space<vmem>>, vector<1x32xf32>
    %84 = vector.broadcast %83 : vector<1x32xf32> to vector<16x32xf32>
    %85 = arith.addf %82, %84 : vector<16x32xf32>
    %86 = arith.addf %1, %85 : vector<16x32xf32>
    %cst_27 = arith.constant dense<0.000000e+00> : vector<16xf32>
    %87 = vector.multi_reduction <add>, %86, %cst_27 [1] : vector<16x32xf32> to vector<16xf32>
    %88 = vector.shape_cast %87 : vector<16xf32> to vector<16x1xf32>
    %cst_28 = arith.constant 3.200000e+01 : f32
    %89 = vector.broadcast %cst_28 : f32 to vector<16x1xf32>
    %90 = arith.divf %88, %89 : vector<16x1xf32>
    %91 = vector.broadcast %90 : vector<16x1xf32> to vector<16x32xf32>
    %92 = arith.subf %86, %91 : vector<16x32xf32>
    %93 = arith.mulf %92, %92 : vector<16x32xf32>
    %cst_29 = arith.constant dense<0.000000e+00> : vector<16xf32>
    %94 = vector.multi_reduction <add>, %93, %cst_29 [1] : vector<16x32xf32> to vector<16xf32>
    %95 = vector.shape_cast %94 : vector<16xf32> to vector<16x1xf32>
    %cst_30 = arith.constant 3.200000e+01 : f32
    %96 = vector.broadcast %cst_30 : f32 to vector<16x1xf32>
    %97 = arith.divf %95, %96 : vector<16x1xf32>
    %98 = vector.broadcast %90 : vector<16x1xf32> to vector<16x32xf32>
    %99 = arith.subf %86, %98 : vector<16x32xf32>
    %cst_31 = arith.constant 9.99999974E-6 : f32
    %100 = vector.broadcast %cst_31 : f32 to vector<16x1xf32>
    %101 = arith.addf %97, %100 : vector<16x1xf32>
    %102 = math.rsqrt %101 : vector<16x1xf32>
    %103 = vector.broadcast %102 : vector<16x1xf32> to vector<16x32xf32>
    %104 = arith.mulf %99, %103 : vector<16x32xf32>
    %c0_32 = arith.constant 0 : index
    %c0_33 = arith.constant 0 : index
    %105 = vector.load %arg10[%c0_32, %c0_33] : memref<1x32xf32, #tpu.memory_space<vmem>>, vector<1x32xf32>
    %106 = vector.broadcast %105 : vector<1x32xf32> to vector<16x32xf32>
    %107 = arith.mulf %104, %106 : vector<16x32xf32>
    %c0_34 = arith.constant 0 : index
    %c0_35 = arith.constant 0 : index
    %108 = vector.load %arg11[%c0_34, %c0_35] : memref<1x32xf32, #tpu.memory_space<vmem>>, vector<1x32xf32>
    %109 = vector.broadcast %108 : vector<1x32xf32> to vector<16x32xf32>
    %110 = arith.addf %107, %109 : vector<16x32xf32>
    %c0_36 = arith.constant 0 : index
    %c0_37 = arith.constant 0 : index
    %111 = vector.load %arg6[%c0_36, %c0_37] : memref<32x64xf32, #tpu.memory_space<vmem>>, vector<32x64xf32>
    %cst_38 = arith.constant dense<0.000000e+00> : vector<16x64xf32>
    %112 = tpu.matmul %110, %111, %cst_38 {dimension_numbers = #tpu.dot_dimension_numbers<[1], [0], [0], [1], [0, 0, 1, 1], [], []>} : vector<16x32xf32>, vector<32x64xf32>, vector<16x64xf32> -> vector<16x64xf32>
    %c0_39 = arith.constant 0 : index
    %c0_40 = arith.constant 0 : index
    %113 = vector.load %arg7[%c0_39, %c0_40] : memref<1x64xf32, #tpu.memory_space<vmem>>, vector<1x64xf32>
    %114 = vector.broadcast %113 : vector<1x64xf32> to vector<16x64xf32>
    %115 = arith.addf %112, %114 : vector<16x64xf32>
    %cst_41 = arith.constant 0.000000e+00 : f32
    %116 = vector.broadcast %cst_41 : f32 to vector<16x64xf32>
    %117 = arith.maximumf %115, %116 : vector<16x64xf32>
    %c0_42 = arith.constant 0 : index
    %c0_43 = arith.constant 0 : index
    %118 = vector.load %arg8[%c0_42, %c0_43] : memref<64x32xf32, #tpu.memory_space<vmem>>, vector<64x32xf32>
    %cst_44 = arith.constant dense<0.000000e+00> : vector<16x32xf32>
    %119 = tpu.matmul %117, %118, %cst_44 {dimension_numbers = #tpu.dot_dimension_numbers<[1], [0], [0], [1], [0, 0, 1, 1], [], []>} : vector<16x64xf32>, vector<64x32xf32>, vector<16x32xf32> -> vector<16x32xf32>
    %c0_45 = arith.constant 0 : index
    %c0_46 = arith.constant 0 : index
    %120 = vector.load %arg9[%c0_45, %c0_46] : memref<1x32xf32, #tpu.memory_space<vmem>>, vector<1x32xf32>
    %121 = vector.broadcast %120 : vector<1x32xf32> to vector<16x32xf32>
    %122 = arith.addf %119, %121 : vector<16x32xf32>
    %123 = arith.addf %110, %122 : vector<16x32xf32>
    %cst_47 = arith.constant dense<0.000000e+00> : vector<16xf32>
    %124 = vector.multi_reduction <add>, %123, %cst_47 [1] : vector<16x32xf32> to vector<16xf32>
    %125 = vector.shape_cast %124 : vector<16xf32> to vector<16x1xf32>
    %cst_48 = arith.constant 3.200000e+01 : f32
    %126 = vector.broadcast %cst_48 : f32 to vector<16x1xf32>
    %127 = arith.divf %125, %126 : vector<16x1xf32>
    %128 = vector.broadcast %127 : vector<16x1xf32> to vector<16x32xf32>
    %129 = arith.subf %123, %128 : vector<16x32xf32>
    %130 = arith.mulf %129, %129 : vector<16x32xf32>
    %cst_49 = arith.constant dense<0.000000e+00> : vector<16xf32>
    %131 = vector.multi_reduction <add>, %130, %cst_49 [1] : vector<16x32xf32> to vector<16xf32>
    %132 = vector.shape_cast %131 : vector<16xf32> to vector<16x1xf32>
    %cst_50 = arith.constant 3.200000e+01 : f32
    %133 = vector.broadcast %cst_50 : f32 to vector<16x1xf32>
    %134 = arith.divf %132, %133 : vector<16x1xf32>
    %135 = vector.broadcast %127 : vector<16x1xf32> to vector<16x32xf32>
    %136 = arith.subf %123, %135 : vector<16x32xf32>
    %cst_51 = arith.constant 9.99999974E-6 : f32
    %137 = vector.broadcast %cst_51 : f32 to vector<16x1xf32>
    %138 = arith.addf %134, %137 : vector<16x1xf32>
    %139 = math.rsqrt %138 : vector<16x1xf32>
    %140 = vector.broadcast %139 : vector<16x1xf32> to vector<16x32xf32>
    %141 = arith.mulf %136, %140 : vector<16x32xf32>
    %c0_52 = arith.constant 0 : index
    %c0_53 = arith.constant 0 : index
    %142 = vector.load %arg12[%c0_52, %c0_53] : memref<1x32xf32, #tpu.memory_space<vmem>>, vector<1x32xf32>
    %143 = vector.broadcast %142 : vector<1x32xf32> to vector<16x32xf32>
    %144 = arith.mulf %141, %143 : vector<16x32xf32>
    %c0_54 = arith.constant 0 : index
    %c0_55 = arith.constant 0 : index
    %145 = vector.load %arg13[%c0_54, %c0_55] : memref<1x32xf32, #tpu.memory_space<vmem>>, vector<1x32xf32>
    %146 = vector.broadcast %145 : vector<1x32xf32> to vector<16x32xf32>
    %147 = arith.addf %144, %146 : vector<16x32xf32>
    %148 = vector.shape_cast %147 : vector<16x32xf32> to vector<2x8x32xf32>
    %c0_56 = arith.constant 0 : index
    %c0_57 = arith.constant 0 : index
    %c0_58 = arith.constant 0 : index
    %149 = vector.load %arg14[%c0_56, %c0_57, %c0_58] : memref<2x8x32xf32, #tpu.memory_space<vmem>>, vector<2x8x32xf32>
    tpu.vector_store %arg14[%c0_56, %c0_57, %c0_58], %148 {strides = array<i32>} : memref<2x8x32xf32, #tpu.memory_space<vmem>>, vector<2x8x32xf32>,
    return
  }
  func.func @transform_0(%arg0: i32) -> (i32, i32, i32) {
    %c0_i32 = arith.constant 0 : i32
    %c0_i32_0 = arith.constant 0 : i32
    %c0_i32_1 = arith.constant 0 : i32
    return %arg0, %c0_i32, %c0_i32_0 : i32, i32, i32
  }
  func.func @transform_1(%arg0: i32) -> (i32, i32) {
    %c0_i32 = arith.constant 0 : i32
    %c0_i32_0 = arith.constant 0 : i32
    %c0_i32_1 = arith.constant 0 : i32
    return %c0_i32, %c0_i32_0 : i32, i32
  }
  func.func @transform_2(%arg0: i32) -> (i32, i32) {
    %c0_i32 = arith.constant 0 : i32
    %c0_i32_0 = arith.constant 0 : i32
    %c0_i32_1 = arith.constant 0 : i32
    return %c0_i32, %c0_i32_0 : i32, i32
  }
  func.func @transform_3(%arg0: i32) -> (i32, i32) {
    %c0_i32 = arith.constant 0 : i32
    %c0_i32_0 = arith.constant 0 : i32
    %c0_i32_1 = arith.constant 0 : i32
    return %c0_i32, %c0_i32_0 : i32, i32
  }
  func.func @transform_4(%arg0: i32) -> (i32, i32) {
    %c0_i32 = arith.constant 0 : i32
    %c0_i32_0 = arith.constant 0 : i32
    %c0_i32_1 = arith.constant 0 : i32
    return %c0_i32, %c0_i32_0 : i32, i32
  }
  func.func @transform_5(%arg0: i32) -> (i32, i32) {
    %c0_i32 = arith.constant 0 : i32
    %c0_i32_0 = arith.constant 0 : i32
    %c0_i32_1 = arith.constant 0 : i32
    return %c0_i32, %c0_i32_0 : i32, i32
  }
  func.func @transform_6(%arg0: i32) -> (i32, i32) {
    %c0_i32 = arith.constant 0 : i32
    %c0_i32_0 = arith.constant 0 : i32
    %c0_i32_1 = arith.constant 0 : i32
    return %c0_i32, %c0_i32_0 : i32, i32
  }
  func.func @transform_7(%arg0: i32) -> (i32, i32) {
    %c0_i32 = arith.constant 0 : i32
    %c0_i32_0 = arith.constant 0 : i32
    %c0_i32_1 = arith.constant 0 : i32
    return %c0_i32, %c0_i32_0 : i32, i32
  }
  func.func @transform_8(%arg0: i32) -> (i32, i32) {
    %c0_i32 = arith.constant 0 : i32
    %c0_i32_0 = arith.constant 0 : i32
    %c0_i32_1 = arith.constant 0 : i32
    return %c0_i32, %c0_i32_0 : i32, i32
  }
  func.func @transform_9(%arg0: i32) -> (i32, i32) {
    %c0_i32 = arith.constant 0 : i32
    %c0_i32_0 = arith.constant 0 : i32
    %c0_i32_1 = arith.constant 0 : i32
    return %c0_i32, %c0_i32_0 : i32, i32
  }
  func.func @transform_10(%arg0: i32) -> (i32, i32) {
    %c0_i32 = arith.constant 0 : i32
    %c0_i32_0 = arith.constant 0 : i32
    %c0_i32_1 = arith.constant 0 : i32
    return %c0_i32, %c0_i32_0 : i32, i32
  }
  func.func @transform_11(%arg0: i32) -> (i32, i32) {
    %c0_i32 = arith.constant 0 : i32
    %c0_i32_0 = arith.constant 0 : i32
    %c0_i32_1 = arith.constant 0 : i32
    return %c0_i32, %c0_i32_0 : i32, i32
  }
  func.func @transform_12(%arg0: i32) -> (i32, i32) {
    %c0_i32 = arith.constant 0 : i32
    %c0_i32_0 = arith.constant 0 : i32
    %c0_i32_1 = arith.constant 0 : i32
    return %c0_i32, %c0_i32_0 : i32, i32
  }
  func.func @transform_13(%arg0: i32) -> (i32, i32, i32) {
    %c0_i32 = arith.constant 0 : i32
    %c0_i32_0 = arith.constant 0 : i32
    %c0_i32_1 = arith.constant 0 : i32
    return %arg0, %c0_i32, %c0_i32_0 : i32, i32, i32
  }
}

module attributes {stable_mosaic.version = 11 : i64} {
  func.func @_encoder_layer_kernel(%arg0: i32, %arg1: memref<2x8x32xf32, #tpu.memory_space<vmem>>, %arg2: memref<32x96xf32, #tpu.memory_space<vmem>>, %arg3: memref<1x96xf32, #tpu.memory_space<vmem>>, %arg4: memref<32x32xf32, #tpu.memory_space<vmem>>, %arg5: memref<1x32xf32, #tpu.memory_space<vmem>>, %arg6: memref<32x64xf32, #tpu.memory_space<vmem>>, %arg7: memref<1x64xf32, #tpu.memory_space<vmem>>, %arg8: memref<64x32xf32, #tpu.memory_space<vmem>>, %arg9: memref<1x32xf32, #tpu.memory_space<vmem>>, %arg10: memref<1x32xf32, #tpu.memory_space<vmem>>, %arg11: memref<1x32xf32, #tpu.memory_space<vmem>>, %arg12: memref<1x32xf32, #tpu.memory_space<vmem>>, %arg13: memref<1x32xf32, #tpu.memory_space<vmem>>, %arg14: memref<2x8x32xf32, #tpu.memory_space<vmem>>) attributes {dimension_semantics = [#tpu.dimension_semantics<parallel>], iteration_bounds = array<i64: 1>, scalar_prefetch = 0 : i64, scratch_operands = 0 : i64, tpu.core_type = #tpu.core_type<tc>, window_params = [{transform_indices = @transform_0, window_bounds = array<i64: 2, 8, 32>}, {pipeline_mode = #tpu.pipeline_mode<synchronous>, transform_indices = @transform_1, window_bounds = array<i64: 32, 96>}, {pipeline_mode = #tpu.pipeline_mode<synchronous>, transform_indices = @transform_2, window_bounds = array<i64: 1, 96>}, {pipeline_mode = #tpu.pipeline_mode<synchronous>, transform_indices = @transform_3, window_bounds = array<i64: 32, 32>}, {pipeline_mode = #tpu.pipeline_mode<synchronous>, transform_indices = @transform_4, window_bounds = array<i64: 1, 32>}, {pipeline_mode = #tpu.pipeline_mode<synchronous>, transform_indices = @transform_5, window_bounds = array<i64: 32, 64>}, {pipeline_mode = #tpu.pipeline_mode<synchronous>, transform_indices = @transform_6, window_bounds = array<i64: 1, 64>}, {pipeline_mode = #tpu.pipeline_mode<synchronous>, transform_indices = @transform_7, window_bounds = array<i64: 64, 32>}, {pipeline_mode = #tpu.pipeline_mode<synchronous>, transform_indices = @transform_8, window_bounds = array<i64: 1, 32>}, {pipeline_mode = #tpu.pipeline_mode<synchronous>, transform_indices = @transform_9, window_bounds = array<i64: 1, 32>}, {pipeline_mode = #tpu.pipeline_mode<synchronous>, transform_indices = @transform_10, window_bounds = array<i64: 1, 32>}, {pipeline_mode = #tpu.pipeline_mode<synchronous>, transform_indices = @transform_11, window_bounds = array<i64: 1, 32>}, {pipeline_mode = #tpu.pipeline_mode<synchronous>, transform_indices = @transform_12, window_bounds = array<i64: 1, 32>}, {transform_indices = @transform_13, window_bounds = array<i64: 2, 8, 32>}]} {
    %c0 = arith.constant 0 : index
    %c0_0 = arith.constant 0 : index
    %c0_1 = arith.constant 0 : index
    %0 = vector.load %arg1[%c0, %c0_0, %c0_1] : memref<2x8x32xf32, #tpu.memory_space<vmem>>, vector<2x8x32xf32>
    %1 = vector.shape_cast %0 : vector<2x8x32xf32> to vector<16x32xf32>
    %c0_2 = arith.constant 0 : index
    %c0_3 = arith.constant 0 : index
    %2 = vector.load %arg2[%c0_2, %c0_3] : memref<32x96xf32, #tpu.memory_space<vmem>>, vector<32x96xf32>
    %cst = arith.constant dense<0.000000e+00> : vector<16x96xf32>
    %3 = tpu.matmul %1, %2, %cst {dimension_numbers = #tpu.dot_dimension_numbers<[1], [0], [0], [1], [0, 0, 1, 1], [], []>} : vector<16x32xf32>, vector<32x96xf32>, vector<16x96xf32> -> vector<16x96xf32>
    %c0_4 = arith.constant 0 : index
    %c0_5 = arith.constant 0 : index
    %4 = vector.load %arg3[%c0_4, %c0_5] : memref<1x96xf32, #tpu.memory_space<vmem>>, vector<1x96xf32>
    %5 = vector.broadcast %4 : vector<1x96xf32> to vector<16x96xf32>
    %6 = arith.addf %3, %5 : vector<16x96xf32>
    %7 = vector.extract_strided_slice %6 {offsets = [0, 0], sizes = [16, 8], strides = [1, 1]} : vector<16x96xf32> to vector<16x8xf32>
    %8 = vector.shape_cast %7 : vector<16x8xf32> to vector<2x8x8xf32>
    %9 = vector.extract_strided_slice %6 {offsets = [0, 32], sizes = [16, 8], strides = [1, 1]} : vector<16x96xf32> to vector<16x8xf32>
    %10 = vector.shape_cast %9 : vector<16x8xf32> to vector<2x8x8xf32>
    %11 = vector.extract_strided_slice %6 {offsets = [0, 64], sizes = [16, 8], strides = [1, 1]} : vector<16x96xf32> to vector<16x8xf32>
    %12 = vector.shape_cast %11 : vector<16x8xf32> to vector<2x8x8xf32>
    "tpu.trace_start"() <{level = 10 : i32, message = "bld,bmd->blm"}> : () -> ()
    %cst_6 = arith.constant dense<0.000000e+00> : vector<2x8x8xf32>
    %13 = tpu.matmul %8, %10, %cst_6 {dimension_numbers = #tpu.dot_dimension_numbers<[2], [2], [1], [1], [0, 0, 0, 1, 1, 1], [0], [0]>} : vector<2x8x8xf32>, vector<2x8x8xf32>, vector<2x8x8xf32> -> vector<2x8x8xf32>
    "tpu.trace_stop"() : () -> ()
    %cst_7 = arith.constant dense<0xFF800000> : vector<2x8xf32>
    %14 = vector.multi_reduction <maximumf>, %13, %cst_7 [2] : vector<2x8x8xf32> to vector<2x8xf32>
    %15 = vector.shape_cast %14 : vector<2x8xf32> to vector<2x8x1xf32>
    %16 = vector.broadcast %15 : vector<2x8x1xf32> to vector<2x8x8xf32>
    %17 = arith.subf %13, %16 : vector<2x8x8xf32>
    %18 = math.exp %17 : vector<2x8x8xf32>
    %cst_8 = arith.constant dense<0.000000e+00> : vector<2x8xf32>
    %19 = vector.multi_reduction <add>, %18, %cst_8 [2] : vector<2x8x8xf32> to vector<2x8xf32>
    %20 = vector.shape_cast %19 : vector<2x8xf32> to vector<2x8x1xf32>
    %21 = tpu.reciprocal %20 {approx = true} : vector<2x8x1xf32> -> vector<2x8x1xf32>
    %22 = vector.broadcast %21 : vector<2x8x1xf32> to vector<2x8x8xf32>
    %23 = arith.mulf %18, %22 : vector<2x8x8xf32>
    "tpu.trace_start"() <{level = 10 : i32, message = "blm,bmd->bld"}> : () -> ()
    %cst_9 = arith.constant dense<0.000000e+00> : vector<2x8x8xf32>
    %24 = tpu.matmul %23, %12, %cst_9 {dimension_numbers = #tpu.dot_dimension_numbers<[2], [1], [1], [2], [0, 0, 0, 1, 1, 2], [0], [0]>} : vector<2x8x8xf32>, vector<2x8x8xf32>, vector<2x8x8xf32> -> vector<2x8x8xf32>
    "tpu.trace_stop"() : () -> ()
    %25 = vector.extract_strided_slice %6 {offsets = [0, 8], sizes = [16, 8], strides = [1, 1]} : vector<16x96xf32> to vector<16x8xf32>
    %26 = vector.shape_cast %25 : vector<16x8xf32> to vector<2x8x8xf32>
    %27 = vector.extract_strided_slice %6 {offsets = [0, 40], sizes = [16, 8], strides = [1, 1]} : vector<16x96xf32> to vector<16x8xf32>
    %28 = vector.shape_cast %27 : vector<16x8xf32> to vector<2x8x8xf32>
    %29 = vector.extract_strided_slice %6 {offsets = [0, 72], sizes = [16, 8], strides = [1, 1]} : vector<16x96xf32> to vector<16x8xf32>
    %30 = vector.shape_cast %29 : vector<16x8xf32> to vector<2x8x8xf32>
    "tpu.trace_start"() <{level = 10 : i32, message = "bld,bmd->blm"}> : () -> ()
    %cst_10 = arith.constant dense<0.000000e+00> : vector<2x8x8xf32>
    %31 = tpu.matmul %26, %28, %cst_10 {dimension_numbers = #tpu.dot_dimension_numbers<[2], [2], [1], [1], [0, 0, 0, 1, 1, 1], [0], [0]>} : vector<2x8x8xf32>, vector<2x8x8xf32>, vector<2x8x8xf32> -> vector<2x8x8xf32>
    "tpu.trace_stop"() : () -> ()
    %cst_11 = arith.constant dense<0xFF800000> : vector<2x8xf32>
    %32 = vector.multi_reduction <maximumf>, %31, %cst_11 [2] : vector<2x8x8xf32> to vector<2x8xf32>
    %33 = vector.shape_cast %32 : vector<2x8xf32> to vector<2x8x1xf32>
    %34 = vector.broadcast %33 : vector<2x8x1xf32> to vector<2x8x8xf32>
    %35 = arith.subf %31, %34 : vector<2x8x8xf32>
    %36 = math.exp %35 : vector<2x8x8xf32>
    %cst_12 = arith.constant dense<0.000000e+00> : vector<2x8xf32>
    %37 = vector.multi_reduction <add>, %36, %cst_12 [2] : vector<2x8x8xf32> to vector<2x8xf32>
    %38 = vector.shape_cast %37 : vector<2x8xf32> to vector<2x8x1xf32>
    %39 = tpu.reciprocal %38 {approx = true} : vector<2x8x1xf32> -> vector<2x8x1xf32>
    %40 = vector.broadcast %39 : vector<2x8x1xf32> to vector<2x8x8xf32>
    %41 = arith.mulf %36, %40 : vector<2x8x8xf32>
    "tpu.trace_start"() <{level = 10 : i32, message = "blm,bmd->bld"}> : () -> ()
    %cst_13 = arith.constant dense<0.000000e+00> : vector<2x8x8xf32>
    %42 = tpu.matmul %41, %30, %cst_13 {dimension_numbers = #tpu.dot_dimension_numbers<[2], [1], [1], [2], [0, 0, 0, 1, 1, 2], [0], [0]>} : vector<2x8x8xf32>, vector<2x8x8xf32>, vector<2x8x8xf32> -> vector<2x8x8xf32>
    "tpu.trace_stop"() : () -> ()
    %43 = vector.extract_strided_slice %6 {offsets = [0, 16], sizes = [16, 8], strides = [1, 1]} : vector<16x96xf32> to vector<16x8xf32>
    %44 = vector.shape_cast %43 : vector<16x8xf32> to vector<2x8x8xf32>
    %45 = vector.extract_strided_slice %6 {offsets = [0, 48], sizes = [16, 8], strides = [1, 1]} : vector<16x96xf32> to vector<16x8xf32>
    %46 = vector.shape_cast %45 : vector<16x8xf32> to vector<2x8x8xf32>
    %47 = vector.extract_strided_slice %6 {offsets = [0, 80], sizes = [16, 8], strides = [1, 1]} : vector<16x96xf32> to vector<16x8xf32>
    %48 = vector.shape_cast %47 : vector<16x8xf32> to vector<2x8x8xf32>
    "tpu.trace_start"() <{level = 10 : i32, message = "bld,bmd->blm"}> : () -> ()
    %cst_14 = arith.constant dense<0.000000e+00> : vector<2x8x8xf32>
    %49 = tpu.matmul %44, %46, %cst_14 {dimension_numbers = #tpu.dot_dimension_numbers<[2], [2], [1], [1], [0, 0, 0, 1, 1, 1], [0], [0]>} : vector<2x8x8xf32>, vector<2x8x8xf32>, vector<2x8x8xf32> -> vector<2x8x8xf32>
    "tpu.trace_stop"() : () -> ()
    %cst_15 = arith.constant dense<0xFF800000> : vector<2x8xf32>
    %50 = vector.multi_reduction <maximumf>, %49, %cst_15 [2] : vector<2x8x8xf32> to vector<2x8xf32>
    %51 = vector.shape_cast %50 : vector<2x8xf32> to vector<2x8x1xf32>
    %52 = vector.broadcast %51 : vector<2x8x1xf32> to vector<2x8x8xf32>
    %53 = arith.subf %49, %52 : vector<2x8x8xf32>
    %54 = math.exp %53 : vector<2x8x8xf32>
    %cst_16 = arith.constant dense<0.000000e+00> : vector<2x8xf32>
    %55 = vector.multi_reduction <add>, %54, %cst_16 [2] : vector<2x8x8xf32> to vector<2x8xf32>
    %56 = vector.shape_cast %55 : vector<2x8xf32> to vector<2x8x1xf32>
    %57 = tpu.reciprocal %56 {approx = true} : vector<2x8x1xf32> -> vector<2x8x1xf32>
    %58 = vector.broadcast %57 : vector<2x8x1xf32> to vector<2x8x8xf32>
    %59 = arith.mulf %54, %58 : vector<2x8x8xf32>
    "tpu.trace_start"() <{level = 10 : i32, message = "blm,bmd->bld"}> : () -> ()
    %cst_17 = arith.constant dense<0.000000e+00> : vector<2x8x8xf32>
    %60 = tpu.matmul %59, %48, %cst_17 {dimension_numbers = #tpu.dot_dimension_numbers<[2], [1], [1], [2], [0, 0, 0, 1, 1, 2], [0], [0]>} : vector<2x8x8xf32>, vector<2x8x8xf32>, vector<2x8x8xf32> -> vector<2x8x8xf32>
    "tpu.trace_stop"() : () -> ()
    %61 = vector.extract_strided_slice %6 {offsets = [0, 24], sizes = [16, 8], strides = [1, 1]} : vector<16x96xf32> to vector<16x8xf32>
    %62 = vector.shape_cast %61 : vector<16x8xf32> to vector<2x8x8xf32>
    %63 = vector.extract_strided_slice %6 {offsets = [0, 56], sizes = [16, 8], strides = [1, 1]} : vector<16x96xf32> to vector<16x8xf32>
    %64 = vector.shape_cast %63 : vector<16x8xf32> to vector<2x8x8xf32>
    %65 = vector.extract_strided_slice %6 {offsets = [0, 88], sizes = [16, 8], strides = [1, 1]} : vector<16x96xf32> to vector<16x8xf32>
    %66 = vector.shape_cast %65 : vector<16x8xf32> to vector<2x8x8xf32>
    "tpu.trace_start"() <{level = 10 : i32, message = "bld,bmd->blm"}> : () -> ()
    %cst_18 = arith.constant dense<0.000000e+00> : vector<2x8x8xf32>
    %67 = tpu.matmul %62, %64, %cst_18 {dimension_numbers = #tpu.dot_dimension_numbers<[2], [2], [1], [1], [0, 0, 0, 1, 1, 1], [0], [0]>} : vector<2x8x8xf32>, vector<2x8x8xf32>, vector<2x8x8xf32> -> vector<2x8x8xf32>
    "tpu.trace_stop"() : () -> ()
    %cst_19 = arith.constant dense<0xFF800000> : vector<2x8xf32>
    %68 = vector.multi_reduction <maximumf>, %67, %cst_19 [2] : vector<2x8x8xf32> to vector<2x8xf32>
    %69 = vector.shape_cast %68 : vector<2x8xf32> to vector<2x8x1xf32>
    %70 = vector.broadcast %69 : vector<2x8x1xf32> to vector<2x8x8xf32>
    %71 = arith.subf %67, %70 : vector<2x8x8xf32>
    %72 = math.exp %71 : vector<2x8x8xf32>
    %cst_20 = arith.constant dense<0.000000e+00> : vector<2x8xf32>
    %73 = vector.multi_reduction <add>, %72, %cst_20 [2] : vector<2x8x8xf32> to vector<2x8xf32>
    %74 = vector.shape_cast %73 : vector<2x8xf32> to vector<2x8x1xf32>
    %75 = tpu.reciprocal %74 {approx = true} : vector<2x8x1xf32> -> vector<2x8x1xf32>
    %76 = vector.broadcast %75 : vector<2x8x1xf32> to vector<2x8x8xf32>
    %77 = arith.mulf %72, %76 : vector<2x8x8xf32>
    "tpu.trace_start"() <{level = 10 : i32, message = "blm,bmd->bld"}> : () -> ()
    %cst_21 = arith.constant dense<0.000000e+00> : vector<2x8x8xf32>
    %78 = tpu.matmul %77, %66, %cst_21 {dimension_numbers = #tpu.dot_dimension_numbers<[2], [1], [1], [2], [0, 0, 0, 1, 1, 2], [0], [0]>} : vector<2x8x8xf32>, vector<2x8x8xf32>, vector<2x8x8xf32> -> vector<2x8x8xf32>
    "tpu.trace_stop"() : () -> ()
    %79 = tpu.concatenate %24, %42, %60, %78 in 2 : vector<2x8x8xf32>, vector<2x8x8xf32>, vector<2x8x8xf32>, vector<2x8x8xf32> -> vector<2x8x32xf32>
    %80 = vector.shape_cast %79 : vector<2x8x32xf32> to vector<16x32xf32>
    %c0_22 = arith.constant 0 : index
    %c0_23 = arith.constant 0 : index
    %81 = vector.load %arg4[%c0_22, %c0_23] : memref<32x32xf32, #tpu.memory_space<vmem>>, vector<32x32xf32>
    %cst_24 = arith.constant dense<0.000000e+00> : vector<16x32xf32>
    %82 = tpu.matmul %80, %81, %cst_24 {dimension_numbers = #tpu.dot_dimension_numbers<[1], [0], [0], [1], [0, 0, 1, 1], [], []>} : vector<16x32xf32>, vector<32x32xf32>, vector<16x32xf32> -> vector<16x32xf32>
    %c0_25 = arith.constant 0 : index
    %c0_26 = arith.constant 0 : index
    %83 = vector.load %arg5[%c0_25, %c0_26] : memref<1x32xf32, #tpu.memory_space<vmem>>, vector<1x32xf32>
    %84 = vector.broadcast %83 : vector<1x32xf32> to vector<16x32xf32>
    %85 = arith.addf %82, %84 : vector<16x32xf32>
    %86 = arith.addf %1, %85 : vector<16x32xf32>
    %cst_27 = arith.constant dense<0.000000e+00> : vector<16xf32>
    %87 = vector.multi_reduction <add>, %86, %cst_27 [1] : vector<16x32xf32> to vector<16xf32>
    %88 = vector.shape_cast %87 : vector<16xf32> to vector<16x1xf32>
    %cst_28 = arith.constant 3.200000e+01 : f32
    %89 = vector.broadcast %cst_28 : f32 to vector<16x1xf32>
    %90 = arith.divf %88, %89 : vector<16x1xf32>
    %91 = vector.broadcast %90 : vector<16x1xf32> to vector<16x32xf32>
    %92 = arith.subf %86, %91 : vector<16x32xf32>
    %93 = arith.mulf %92, %92 : vector<16x32xf32>
    %cst_29 = arith.constant dense<0.000000e+00> : vector<16xf32>
    %94 = vector.multi_reduction <add>, %93, %cst_29 [1] : vector<16x32xf32> to vector<16xf32>
    %95 = vector.shape_cast %94 : vector<16xf32> to vector<16x1xf32>
    %cst_30 = arith.constant 3.200000e+01 : f32
    %96 = vector.broadcast %cst_30 : f32 to vector<16x1xf32>
    %97 = arith.divf %95, %96 : vector<16x1xf32>
    %98 = vector.broadcast %90 : vector<16x1xf32> to vector<16x32xf32>
    %99 = arith.subf %86, %98 : vector<16x32xf32>
    %cst_31 = arith.constant 9.99999974E-6 : f32
    %100 = vector.broadcast %cst_31 : f32 to vector<16x1xf32>
    %101 = arith.addf %97, %100 : vector<16x1xf32>
    %102 = math.rsqrt %101 : vector<16x1xf32>
    %103 = vector.broadcast %102 : vector<16x1xf32> to vector<16x32xf32>
    %104 = arith.mulf %99, %103 : vector<16x32xf32>
    %c0_32 = arith.constant 0 : index
    %c0_33 = arith.constant 0 : index
    %105 = vector.load %arg10[%c0_32, %c0_33] : memref<1x32xf32, #tpu.memory_space<vmem>>, vector<1x32xf32>
    %106 = vector.broadcast %105 : vector<1x32xf32> to vector<16x32xf32>
    %107 = arith.mulf %104, %106 : vector<16x32xf32>
    %c0_34 = arith.constant 0 : index
    %c0_35 = arith.constant 0 : index
    %108 = vector.load %arg11[%c0_34, %c0_35] : memref<1x32xf32, #tpu.memory_space<vmem>>, vector<1x32xf32>
    %109 = vector.broadcast %108 : vector<1x32xf32> to vector<16x32xf32>
    %110 = arith.addf %107, %109 : vector<16x32xf32>
    %c0_36 = arith.constant 0 : index
    %c0_37 = arith.constant 0 : index
    %111 = vector.load %arg6[%c0_36, %c0_37] : memref<32x64xf32, #tpu.memory_space<vmem>>, vector<32x64xf32>
    %cst_38 = arith.constant dense<0.000000e+00> : vector<16x64xf32>
    %112 = tpu.matmul %110, %111, %cst_38 {dimension_numbers = #tpu.dot_dimension_numbers<[1], [0], [0], [1], [0, 0, 1, 1], [], []>} : vector<16x32xf32>, vector<32x64xf32>, vector<16x64xf32> -> vector<16x64xf32>
    %c0_39 = arith.constant 0 : index
    %c0_40 = arith.constant 0 : index
    %113 = vector.load %arg7[%c0_39, %c0_40] : memref<1x64xf32, #tpu.memory_space<vmem>>, vector<1x64xf32>
    %114 = vector.broadcast %113 : vector<1x64xf32> to vector<16x64xf32>
    %115 = arith.addf %112, %114 : vector<16x64xf32>
    %cst_41 = arith.constant 0.000000e+00 : f32
    %116 = vector.broadcast %cst_41 : f32 to vector<16x64xf32>
    %117 = arith.maximumf %115, %116 : vector<16x64xf32>
    %c0_42 = arith.constant 0 : index
    %c0_43 = arith.constant 0 : index
    %118 = vector.load %arg8[%c0_42, %c0_43] : memref<64x32xf32, #tpu.memory_space<vmem>>, vector<64x32xf32>
    %cst_44 = arith.constant dense<0.000000e+00> : vector<16x32xf32>
    %119 = tpu.matmul %117, %118, %cst_44 {dimension_numbers = #tpu.dot_dimension_numbers<[1], [0], [0], [1], [0, 0, 1, 1], [], []>} : vector<16x64xf32>, vector<64x32xf32>, vector<16x32xf32> -> vector<16x32xf32>
    %c0_45 = arith.constant 0 : index
    %c0_46 = arith.constant 0 : index
    %120 = vector.load %arg9[%c0_45, %c0_46] : memref<1x32xf32, #tpu.memory_space<vmem>>, vector<1x32xf32>
    %121 = vector.broadcast %120 : vector<1x32xf32> to vector<16x32xf32>
    %122 = arith.addf %119, %121 : vector<16x32xf32>
    %123 = arith.addf %110, %122 : vector<16x32xf32>
    %cst_47 = arith.constant dense<0.000000e+00> : vector<16xf32>
    %124 = vector.multi_reduction <add>, %123, %cst_47 [1] : vector<16x32xf32> to vector<16xf32>
    %125 = vector.shape_cast %124 : vector<16xf32> to vector<16x1xf32>
    %cst_48 = arith.constant 3.200000e+01 : f32
    %126 = vector.broadcast %cst_48 : f32 to vector<16x1xf32>
    %127 = arith.divf %125, %126 : vector<16x1xf32>
    %128 = vector.broadcast %127 : vector<16x1xf32> to vector<16x32xf32>
    %129 = arith.subf %123, %128 : vector<16x32xf32>
    %130 = arith.mulf %129, %129 : vector<16x32xf32>
    %cst_49 = arith.constant dense<0.000000e+00> : vector<16xf32>
    %131 = vector.multi_reduction <add>, %130, %cst_49 [1] : vector<16x32xf32> to vector<16xf32>
    %132 = vector.shape_cast %131 : vector<16xf32> to vector<16x1xf32>
    %cst_50 = arith.constant 3.200000e+01 : f32
    %133 = vector.broadcast %cst_50 : f32 to vector<16x1xf32>
    %134 = arith.divf %132, %133 : vector<16x1xf32>
    %135 = vector.broadcast %127 : vector<16x1xf32> to vector<16x32xf32>
    %136 = arith.subf %123, %135 : vector<16x32xf32>
    %cst_51 = arith.constant 9.99999974E-6 : f32
    %137 = vector.broadcast %cst_51 : f32 to vector<16x1xf32>
    %138 = arith.addf %134, %137 : vector<16x1xf32>
    %139 = math.rsqrt %138 : vector<16x1xf32>
    %140 = vector.broadcast %139 : vector<16x1xf32> to vector<16x32xf32>
    %141 = arith.mulf %136, %140 : vector<16x32xf32>
    %c0_52 = arith.constant 0 : index
    %c0_53 = arith.constant 0 : index
    %142 = vector.load %arg12[%c0_52, %c0_53] : memref<1x32xf32, #tpu.memory_space<vmem>>, vector<1x32xf32>
    %143 = vector.broadcast %142 : vector<1x32xf32> to vector<16x32xf32>
    %144 = arith.mulf %141, %143 : vector<16x32xf32>
    %c0_54 = arith.constant 0 : index
    %c0_55 = arith.constant 0 : index
    %145 = vector.load %arg13[%c0_54, %c0_55] : memref<1x32xf32, #tpu.memory_space<vmem>>, vector<1x32xf32>
    %146 = vector.broadcast %145 : vector<1x32xf32> to vector<16x32xf32>
    %147 = arith.addf %144, %146 : vector<16x32xf32>
    %148 = vector.shape_cast %147 : vector<16x32xf32> to vector<2x8x32xf32>
    %c0_56 = arith.constant 0 : index
    %c0_57 = arith.constant 0 : index
    %c0_58 = arith.constant 0 : index
    %149 = vector.load %arg14[%c0_56, %c0_57, %c0_58] : memref<2x8x32xf32, #tpu.memory_space<vmem>>, vector<2x8x32xf32>
    tpu.vector_store %arg14[%c0_56, %c0_57, %c0_58], %148 {strides = array<i32>} : memref<2x8x32xf32, #tpu.memory_space<vmem>>, vector<2x8x32xf32>,
    return
  }
  func.func @transform_0(%arg0: i32) -> (i32, i32, i32) {
    %c0_i32 = arith.constant 0 : i32
    %c0_i32_0 = arith.constant 0 : i32
    %c0_i32_1 = arith.constant 0 : i32
    return %arg0, %c0_i32, %c0_i32_0 : i32, i32, i32
  }
  func.func @transform_1(%arg0: i32) -> (i32, i32) {
    %c0_i32 = arith.constant 0 : i32
    %c0_i32_0 = arith.constant 0 : i32
    %c0_i32_1 = arith.constant 0 : i32
    return %c0_i32, %c0_i32_0 : i32, i32
  }
  func.func @transform_2(%arg0: i32) -> (i32, i32) {
    %c0_i32 = arith.constant 0 : i32
    %c0_i32_0 = arith.constant 0 : i32
    %c0_i32_1 = arith.constant 0 : i32
    return %c0_i32, %c0_i32_0 : i32, i32
  }
  func.func @transform_3(%arg0: i32) -> (i32, i32) {
    %c0_i32 = arith.constant 0 : i32
    %c0_i32_0 = arith.constant 0 : i32
    %c0_i32_1 = arith.constant 0 : i32
    return %c0_i32, %c0_i32_0 : i32, i32
  }
  func.func @transform_4(%arg0: i32) -> (i32, i32) {
    %c0_i32 = arith.constant 0 : i32
    %c0_i32_0 = arith.constant 0 : i32
    %c0_i32_1 = arith.constant 0 : i32
    return %c0_i32, %c0_i32_0 : i32, i32
  }
  func.func @transform_5(%arg0: i32) -> (i32, i32) {
    %c0_i32 = arith.constant 0 : i32
    %c0_i32_0 = arith.constant 0 : i32
    %c0_i32_1 = arith.constant 0 : i32
    return %c0_i32, %c0_i32_0 : i32, i32
  }
  func.func @transform_6(%arg0: i32) -> (i32, i32) {
    %c0_i32 = arith.constant 0 : i32
    %c0_i32_0 = arith.constant 0 : i32
    %c0_i32_1 = arith.constant 0 : i32
    return %c0_i32, %c0_i32_0 : i32, i32
  }
  func.func @transform_7(%arg0: i32) -> (i32, i32) {
    %c0_i32 = arith.constant 0 : i32
    %c0_i32_0 = arith.constant 0 : i32
    %c0_i32_1 = arith.constant 0 : i32
    return %c0_i32, %c0_i32_0 : i32, i32
  }
  func.func @transform_8(%arg0: i32) -> (i32, i32) {
    %c0_i32 = arith.constant 0 : i32
    %c0_i32_0 = arith.constant 0 : i32
    %c0_i32_1 = arith.constant 0 : i32
    return %c0_i32, %c0_i32_0 : i32, i32
  }
  func.func @transform_9(%arg0: i32) -> (i32, i32) {
    %c0_i32 = arith.constant 0 : i32
    %c0_i32_0 = arith.constant 0 : i32
    %c0_i32_1 = arith.constant 0 : i32
    return %c0_i32, %c0_i32_0 : i32, i32
  }
  func.func @transform_10(%arg0: i32) -> (i32, i32) {
    %c0_i32 = arith.constant 0 : i32
    %c0_i32_0 = arith.constant 0 : i32
    %c0_i32_1 = arith.constant 0 : i32
    return %c0_i32, %c0_i32_0 : i32, i32
  }
  func.func @transform_11(%arg0: i32) -> (i32, i32) {
    %c0_i32 = arith.constant 0 : i32
    %c0_i32_0 = arith.constant 0 : i32
    %c0_i32_1 = arith.constant 0 : i32
    return %c0_i32, %c0_i32_0 : i32, i32
  }
  func.func @transform_12(%arg0: i32) -> (i32, i32) {
    %c0_i32 = arith.constant 0 : i32
    %c0_i32_0 = arith.constant 0 : i32
    %c0_i32_1 = arith.constant 0 : i32
    return %c0_i32, %c0_i32_0 : i32, i32
  }
  func.func @transform_13(%arg0: i32) -> (i32, i32, i32) {
    %c0_i32 = arith.constant 0 : i32
    %c0_i32_0 = arith.constant 0 : i32
    %c0_i32_1 = arith.constant 0 : i32
    return %arg0, %c0_i32, %c0_i32_0 : i32, i32, i32
  }
}

</mosaic_0001>

<llo_original>
// kernel: tpu_custom_call.1
$region0: #{tpu_custom_call.1}
  #allocation0 [shape = 'u32[]', space=smem, size = 0x4, offset = 0x4, fixed_abs, tag = 'smem constant byte address 0x4 - core index']
  #allocation1 [shape = 'u32[144,128]{1,0:T(1,128)}', space=vmem, size = 0x12000, scoped, tag = 'internal scratch']
  %s0 = inlined_call_operand.hbm [shape: f32[2,8,32], index: 0, kind: input, shape index: {}]
  %s1 = inlined_call_operand.vmem [shape: f32[32,96], index: 1, kind: input, shape index: {}]
  %s2 = inlined_call_operand.vmem [shape: f32[1,96], index: 2, kind: input, shape index: {}]
  %s3 = inlined_call_operand.vmem [shape: f32[32,32], index: 3, kind: input, shape index: {}]
  %s4 = inlined_call_operand.vmem [shape: f32[1,32], index: 4, kind: input, shape index: {}]
  %s5 = inlined_call_operand.vmem [shape: f32[32,64], index: 5, kind: input, shape index: {}]
  %s6 = inlined_call_operand.vmem [shape: f32[1,64], index: 6, kind: input, shape index: {}]
  %s7 = inlined_call_operand.vmem [shape: f32[64,32], index: 7, kind: input, shape index: {}]
  %s8 = inlined_call_operand.vmem [shape: f32[1,32], index: 8, kind: input, shape index: {}]
  %s9 = inlined_call_operand.vmem [shape: f32[1,32], index: 9, kind: input, shape index: {}]
  %s10 = inlined_call_operand.vmem [shape: f32[1,32], index: 10, kind: input, shape index: {}]
  %s11 = inlined_call_operand.vmem [shape: f32[1,32], index: 11, kind: input, shape index: {}]
  %s12 = inlined_call_operand.vmem [shape: f32[1,32], index: 12, kind: input, shape index: {}]
  %s13 = inlined_call_operand.hbm [shape: f32[2,8,32], index: 13, kind: output, shape index: {}]
  %s14 = sld [smem:[#allocation0]]
  $region66: #{tpu_custom_call.1} parent=0
    _
  %s16 = ssub.s32 1, %s14
  %s17 = scalar_select 0, %s16, %s14
  $region1: #{tpu_custom_call.1} parent=0
    #allocation2 [shape = 'u8[8192]{0}', space=vmem, size = 0x2000, scoped, tag = 'input window, operand 0, single buffered']
    #allocation3 [shape = 's32[1]{0}', space=sflag, size = 0x4, scoped, tag = 'scoped memory for tpu_custom_call.1']
    #allocation4 [shape = 's32[1]{0}', space=sflag, size = 0x4, scoped, tag = 'scoped memory for tpu_custom_call.1']
    #allocation5 [shape = 'u8[8192]{0}', space=vmem, size = 0x2000, scoped, tag = 'output window, operand 0, single buffered']
    %18 = vsyncpa [#allocation3], 0
    %19 = vsyncpa [#allocation4], 0
    // Predicated region
    $region2: #{tpu_custom_call.1} parent=1 // pred_check
      _
    $region3: #{tpu_custom_call.1} parent=1 // pred_check_branch
      %21 = sbr.rel (0) target = $region5
    $region4: #{tpu_custom_call.1} parent=1 // pred_region
      %s23 = ssub.s32 256, 256
      %24 = vsyncadd [#allocation3], %s23
      %s25 = sshll.u32 [#allocation2], 4
      %s26 = int_to_ptr.vmem [resolvable:$true] %s25
      %31 = dma.hbm_to_vmem [thread:$0]  %s0, 256, %s26, [#allocation3], 128, 128, 8
    $region5: #{tpu_custom_call.1} parent=1 // pred_fallthru
      _
    // Predicated region
    $region6: #{tpu_custom_call.1} parent=1 // pred_check
      _
    $region7: #{tpu_custom_call.1} parent=1 // pred_check_branch
      %33 = sbr.rel (0) target = $region9
    $region8: #{tpu_custom_call.1} parent=1 // pred_region
      _
    $region9: #{tpu_custom_call.1} parent=1 // pred_fallthru
      _
    // Predicated region
    $region10: #{tpu_custom_call.1} parent=1 // pred_check
      _
    $region11: #{tpu_custom_call.1} parent=1 // pred_check_branch
      %35 = sbr.rel (0) target = $region13
    $region12: #{tpu_custom_call.1} parent=1 // pred_region
      _
    $region13: #{tpu_custom_call.1} parent=1 // pred_fallthru
      _
    // Predicated region
    $region14: #{tpu_custom_call.1} parent=1 // pred_check
      _
    $region15: #{tpu_custom_call.1} parent=1 // pred_check_branch
      %37 = sbr.rel (0) target = $region17
    $region16: #{tpu_custom_call.1} parent=1 // pred_region
      _
    $region17: #{tpu_custom_call.1} parent=1 // pred_fallthru
      _
    // Predicated region
    $region18: #{tpu_custom_call.1} parent=1 // pred_check
      _
    $region19: #{tpu_custom_call.1} parent=1 // pred_check_branch
      %39 = sbr.rel (0) target = $region21
    $region20: #{tpu_custom_call.1} parent=1 // pred_region
      _
    $region21: #{tpu_custom_call.1} parent=1 // pred_fallthru
      _
    // Predicated region
    $region22: #{tpu_custom_call.1} parent=1 // pred_check
      _
    $region23: #{tpu_custom_call.1} parent=1 // pred_check_branch
      %41 = sbr.rel (0) target = $region25
    $region24: #{tpu_custom_call.1} parent=1 // pred_region
      _
    $region25: #{tpu_custom_call.1} parent=1 // pred_fallthru
      _
    // Predicated region
    $region26: #{tpu_custom_call.1} parent=1 // pred_check
      _
    $region27: #{tpu_custom_call.1} parent=1 // pred_check_branch
      %43 = sbr.rel (0) target = $region29
    $region28: #{tpu_custom_call.1} parent=1 // pred_region
      _
    $region29: #{tpu_custom_call.1} parent=1 // pred_fallthru
      _
    // Predicated region
    $region30: #{tpu_custom_call.1} parent=1 // pred_check
      _
    $region31: #{tpu_custom_call.1} parent=1 // pred_check_branch
      %45 = sbr.rel (0) target = $region33
    $region32: #{tpu_custom_call.1} parent=1 // pred_region
      _
    $region33: #{tpu_custom_call.1} parent=1 // pred_fallthru
      _
    // Predicated region
    $region34: #{tpu_custom_call.1} parent=1 // pred_check
      _
    $region35: #{tpu_custom_call.1} parent=1 // pred_check_branch
      %47 = sbr.rel (0) target = $region37
    $region36: #{tpu_custom_call.1} parent=1 // pred_region
      _
    $region37: #{tpu_custom_call.1} parent=1 // pred_fallthru
      _
    // Predicated region
    $region38: #{tpu_custom_call.1} parent=1 // pred_check
      _
    $region39: #{tpu_custom_call.1} parent=1 // pred_check_branch
      %49 = sbr.rel (0) target = $region41
    $region40: #{tpu_custom_call.1} parent=1 // pred_region
      _
    $region41: #{tpu_custom_call.1} parent=1 // pred_fallthru
      _
    // Predicated region
    $region42: #{tpu_custom_call.1} parent=1 // pred_check
      _
    $region43: #{tpu_custom_call.1} parent=1 // pred_check_branch
      %51 = sbr.rel (0) target = $region45
    $region44: #{tpu_custom_call.1} parent=1 // pred_region
      _
    $region45: #{tpu_custom_call.1} parent=1 // pred_fallthru
      _
    // Predicated region
    $region46: #{tpu_custom_call.1} parent=1 // pred_check
      _
    $region47: #{tpu_custom_call.1} parent=1 // pred_check_branch
      %53 = sbr.rel (0) target = $region49
    $region48: #{tpu_custom_call.1} parent=1 // pred_region
      _
    $region49: #{tpu_custom_call.1} parent=1 // pred_fallthru
      _
    // Predicated region
    $region50: #{tpu_custom_call.1} parent=1 // pred_check
      _
    $region51: #{tpu_custom_call.1} parent=1 // pred_check_branch
      %55 = sbr.rel (0) target = $region53
    $region52: #{tpu_custom_call.1} parent=1 // pred_region
      _
    $region53: #{tpu_custom_call.1} parent=1 // pred_fallthru
      _
    // Predicated region
    $region54: #{tpu_custom_call.1} parent=1 // pred_check
      _
    $region55: #{tpu_custom_call.1} parent=1 // pred_check_branch
      %57 = sbr.rel (0) target = $region57
    $region56: #{tpu_custom_call.1} parent=1 // pred_region
      %58 = dma.done [#allocation3], 256
    $region57: #{tpu_custom_call.1} parent=1 // pred_fallthru
      _
    %v59 = vld [vmem:[#allocation2] sm:$0xff]
    %v60 = vld [vmem:[#allocation2 + $0x8] sm:$0xff]
    %v61 = vld [vmem:[%s1] sm:$0xff]
    %v62 = vld [vmem:[%s1 + $0x8] sm:$0xff]
    %v63 = vld [vmem:[%s1 + $0x10] sm:$0xff]
    %v64 = vld [vmem:[%s1 + $0x18] sm:$0xff]
    %v65 = vld [vmem:[%s2] sm:$0x1]
    %v67 = vlaneseq
    %v68 = vshrl.u32 %v67, 7
    %v69 = vsub.s32 0, %v68
    %v70 = vrot.slane %v65, %v69
    %vm72 = vcmask 261120
    %v74 = vsel %vm72, %v59, 0
    %v77 = vsel %vm72, %v60, 0
    %79 = vmatprep.subr.mxu0 0.0
    %80 = vmatpush1.msra.mxu0 0.0
    %81 = vmatprep.subr.mxu0 0.0
    %82 = vmatpush1.msra.mxu0 0.0
    %83 = vmatprep.subr.mxu0 0.0
    %84 = vmatpush1.msra.mxu0 0.0
    %85 = vmatprep.subr.mxu0 0.0
    %86 = vmatpush1.msra.mxu0 0.0
    %87 = vmatprep.subr.mxu0 0.0
    %88 = vmatpush1.msra.mxu0 0.0
    %89 = vmatprep.subr.mxu0 0.0
    %90 = vmatpush1.msra.mxu0 0.0
    %91 = vmatprep.subr.mxu0 0.0
    %92 = vmatpush1.msra.mxu0 0.0
    %93 = vmatprep.subr.mxu0 0.0
    %94 = vmatpush1.msra.mxu0 0.0
    %95 = vmatprep.subr.mxu0 0.0
    %96 = vmatpush1.msra.mxu0 0.0
    %97 = vmatprep.subr.mxu0 0.0
    %98 = vmatpush1.msra.mxu0 0.0
    %99 = vmatprep.subr.mxu0 0.0
    %100 = vmatpush1.msra.mxu0 0.0
    %101 = vmatprep.subr.mxu0 0.0
    %102 = vmatpush1.msra.mxu0 0.0
    %103 = vmatprep.subr.mxu0 0.0
    %104 = vmatpush1.msra.mxu0 %v64
    %105 = vmatprep.subr.mxu0 0.0
    %106 = vmatpush1.msra.mxu0 %v63
    %107 = vmatprep.subr.mxu0 0.0
    %108 = vmatpush1.msra.mxu0 %v62
    %109 = vmatprep.subr.mxu0 0.0
    %110 = vmatpush1.msra.mxu0 %v61
    %111 = vmatprep.subr.mxu0 0.0
    %112 = vmatpush2.msra.mxu0 0.0
    %113 = vmatprep.subr.mxu0 0.0
    %114 = vmatpush2.msra.mxu0 0.0
    %115 = vmatprep.subr.mxu0 0.0
    %116 = vmatpush2.msra.mxu0 0.0
    %117 = vmatprep.subr.mxu0 0.0
    %118 = vmatpush2.msra.mxu0 0.0
    %119 = vmatprep.subr.mxu0 0.0
    %120 = vmatpush2.msra.mxu0 0.0
    %121 = vmatprep.subr.mxu0 0.0
    %122 = vmatpush2.msra.mxu0 0.0
    %123 = vmatprep.subr.mxu0 0.0
    %124 = vmatpush2.msra.mxu0 0.0
    %125 = vmatprep.subr.mxu0 0.0
    %126 = vmatpush2.msra.mxu0 0.0
    %127 = vmatprep.subr.mxu0 0.0
    %128 = vmatpush2.msra.mxu0 0.0
    %129 = vmatprep.subr.mxu0 0.0
    %130 = vmatpush2.msra.mxu0 0.0
    %131 = vmatprep.subr.mxu0 0.0
    %132 = vmatpush2.msra.mxu0 0.0
    %133 = vmatprep.subr.mxu0 0.0
    %134 = vmatpush2.msra.mxu0 0.0
    %135 = vmatprep.subr.mxu0 0.0
    %136 = vmatpush2.msra.mxu0 0.0
    %137 = vmatprep.subr.mxu0 0.0
    %138 = vmatpush2.msra.mxu0 0.0
    %139 = vmatprep.subr.mxu0 0.0
    %140 = vmatpush2.msra.mxu0 0.0
    %141 = vmatprep.subr.mxu0 0.0
    %142 = vmatpush2.msra.mxu0 0.0
    %143 = vmatprep.mubr.f32.mxu0 0.0
    %144 = vmatmul.mubr.f32.gmra.mxu0 %v74
    %v145 = vpop.f32.mrf.mxu0
    %v146 = vadd.f32 %v70, %v145
    %v147 = vpop.f32.mrf.mxu0
    %148 = vmatprep.mubr.f32.mxu0 0.0
    %149 = vmatmul.mubr.f32.gmra.mxu0 %v77
    %v150 = vpop.f32.mrf.mxu0
    %v151 = vadd.f32 %v70, %v150
    %v152 = vpop.f32.mrf.mxu0
    %153 = vdwg.mxu0
    %155 = vrot.lane.b32.xlu0 %v146, 96
    %v156 = vpop.permute.xlu0 %155
    %vm157 = vcmask 64512
    %v158 = vsel %vm157, %v146, 0
    %v160 = vsel %vm157, %v156, 0
    %162 = vmatprep.subr.mxu0 0.0
    %163 = vmatpush1.xpose.msra.mxu0 0.0
    %164 = vmatprep.subr.mxu0 0.0
    %165 = vmatpush1.xpose.msra.mxu0 0.0
    %166 = vmatprep.subr.mxu0 0.0
    %167 = vmatpush1.xpose.msra.mxu0 0.0
    %168 = vmatprep.subr.mxu0 0.0
    %169 = vmatpush1.xpose.msra.mxu0 0.0
    %170 = vmatprep.subr.mxu0 0.0
    %171 = vmatpush1.xpose.msra.mxu0 0.0
    %172 = vmatprep.subr.mxu0 0.0
    %173 = vmatpush1.xpose.msra.mxu0 0.0
    %174 = vmatprep.subr.mxu0 0.0
    %175 = vmatpush1.xpose.msra.mxu0 0.0
    %176 = vmatprep.subr.mxu0 0.0
    %177 = vmatpush1.xpose.msra.mxu0 0.0
    %178 = vmatprep.subr.mxu0 0.0
    %179 = vmatpush1.xpose.msra.mxu0 0.0
    %180 = vmatprep.subr.mxu0 0.0
    %181 = vmatpush1.xpose.msra.mxu0 0.0
    %182 = vmatprep.subr.mxu0 0.0
    %183 = vmatpush1.xpose.msra.mxu0 0.0
    %184 = vmatprep.subr.mxu0 0.0
    %185 = vmatpush1.xpose.msra.mxu0 0.0
    %186 = vmatprep.subr.mxu0 0.0
    %187 = vmatpush1.xpose.msra.mxu0 0.0
    %188 = vmatprep.subr.mxu0 0.0
    %189 = vmatpush1.xpose.msra.mxu0 0.0
    %190 = vmatprep.subr.mxu0 0.0
    %191 = vmatpush1.xpose.msra.mxu0 0.0
    %192 = vmatprep.subr.mxu0 0.0
    %193 = vmatpush1.xpose.msra.mxu0 %v160
    %194 = vmatprep.subr.mxu0 0.0
    %195 = vmatpush2.xpose.msra.mxu0 0.0
    %196 = vmatprep.subr.mxu0 0.0
    %197 = vmatpush2.xpose.msra.mxu0 0.0
    %198 = vmatprep.subr.mxu0 0.0
    %199 = vmatpush2.xpose.msra.mxu0 0.0
    %200 = vmatprep.subr.mxu0 0.0
    %201 = vmatpush2.xpose.msra.mxu0 0.0
    %202 = vmatprep.subr.mxu0 0.0
    %203 = vmatpush2.xpose.msra.mxu0 0.0
    %204 = vmatprep.subr.mxu0 0.0
    %205 = vmatpush2.xpose.msra.mxu0 0.0
    %206 = vmatprep.subr.mxu0 0.0
    %207 = vmatpush2.xpose.msra.mxu0 0.0
    %208 = vmatprep.subr.mxu0 0.0
    %209 = vmatpush2.xpose.msra.mxu0 0.0
    %210 = vmatprep.subr.mxu0 0.0
    %211 = vmatpush2.xpose.msra.mxu0 0.0
    %212 = vmatprep.subr.mxu0 0.0
    %213 = vmatpush2.xpose.msra.mxu0 0.0
    %214 = vmatprep.subr.mxu0 0.0
    %215 = vmatpush2.xpose.msra.mxu0 0.0
    %216 = vmatprep.subr.mxu0 0.0
    %217 = vmatpush2.xpose.msra.mxu0 0.0
    %218 = vmatprep.subr.mxu0 0.0
    %219 = vmatpush2.xpose.msra.mxu0 0.0
    %220 = vmatprep.subr.mxu0 0.0
    %221 = vmatpush2.xpose.msra.mxu0 0.0
    %222 = vmatprep.subr.mxu0 0.0
    %223 = vmatpush2.xpose.msra.mxu0 0.0
    %224 = vmatprep.subr.mxu0 0.0
    %225 = vmatpush2.xpose.msra.mxu0 0.0
    %226 = vmatprep.mubr.f32.mxu0 0.0
    %227 = vmatmul.mubr.f32.gmra.mxu0 %v158
    %v228 = vpop.f32.mrf.mxu0
    %v229 = vadd.f32 0.0, %v228
    %v230 = vpop.f32.mrf.mxu0
    %231 = vdwg.mxu0
    %233 = vrot.lane.b32.xlu0 %v151, 96
    %v234 = vpop.permute.xlu0 %233
    %v235 = vsel %vm157, %v151, 0
    %v237 = vsel %vm157, %v234, 0
    %239 = vmatprep.subr.mxu0 0.0
    %240 = vmatpush1.xpose.msra.mxu0 0.0
    %241 = vmatprep.subr.mxu0 0.0
    %242 = vmatpush1.xpose.msra.mxu0 0.0
    %243 = vmatprep.subr.mxu0 0.0
    %244 = vmatpush1.xpose.msra.mxu0 0.0
    %245 = vmatprep.subr.mxu0 0.0
    %246 = vmatpush1.xpose.msra.mxu0 0.0
    %247 = vmatprep.subr.mxu0 0.0
    %248 = vmatpush1.xpose.msra.mxu0 0.0
    %249 = vmatprep.subr.mxu0 0.0
    %250 = vmatpush1.xpose.msra.mxu0 0.0
    %251 = vmatprep.subr.mxu0 0.0
    %252 = vmatpush1.xpose.msra.mxu0 0.0
    %253 = vmatprep.subr.mxu0 0.0
    %254 = vmatpush1.xpose.msra.mxu0 0.0
    %255 = vmatprep.subr.mxu0 0.0
    %256 = vmatpush1.xpose.msra.mxu0 0.0
    %257 = vmatprep.subr.mxu0 0.0
    %258 = vmatpush1.xpose.msra.mxu0 0.0
    %259 = vmatprep.subr.mxu0 0.0
    %260 = vmatpush1.xpose.msra.mxu0 0.0
    %261 = vmatprep.subr.mxu0 0.0
    %262 = vmatpush1.xpose.msra.mxu0 0.0
    %263 = vmatprep.subr.mxu0 0.0
    %264 = vmatpush1.xpose.msra.mxu0 0.0
    %265 = vmatprep.subr.mxu0 0.0
    %266 = vmatpush1.xpose.msra.mxu0 0.0
    %267 = vmatprep.subr.mxu0 0.0
    %268 = vmatpush1.xpose.msra.mxu0 0.0
    %269 = vmatprep.subr.mxu0 0.0
    %270 = vmatpush1.xpose.msra.mxu0 %v237
    %271 = vmatprep.subr.mxu0 0.0
    %272 = vmatpush2.xpose.msra.mxu0 0.0
    %273 = vmatprep.subr.mxu0 0.0
    %274 = vmatpush2.xpose.msra.mxu0 0.0
    %275 = vmatprep.subr.mxu0 0.0
    %276 = vmatpush2.xpose.msra.mxu0 0.0
    %277 = vmatprep.subr.mxu0 0.0
    %278 = vmatpush2.xpose.msra.mxu0 0.0
    %279 = vmatprep.subr.mxu0 0.0
    %280 = vmatpush2.xpose.msra.mxu0 0.0
    %281 = vmatprep.subr.mxu0 0.0
    %282 = vmatpush2.xpose.msra.mxu0 0.0
    %283 = vmatprep.subr.mxu0 0.0
    %284 = vmatpush2.xpose.msra.mxu0 0.0
    %285 = vmatprep.subr.mxu0 0.0
    %286 = vmatpush2.xpose.msra.mxu0 0.0
    %287 = vmatprep.subr.mxu0 0.0
    %288 = vmatpush2.xpose.msra.mxu0 0.0
    %289 = vmatprep.subr.mxu0 0.0
    %290 = vmatpush2.xpose.msra.mxu0 0.0
    %291 = vmatprep.subr.mxu0 0.0
    %292 = vmatpush2.xpose.msra.mxu0 0.0
    %293 = vmatprep.subr.mxu0 0.0
    %294 = vmatpush2.xpose.msra.mxu0 0.0
    %295 = vmatprep.subr.mxu0 0.0
    %296 = vmatpush2.xpose.msra.mxu0 0.0
    %297 = vmatprep.subr.mxu0 0.0
    %298 = vmatpush2.xpose.msra.mxu0 0.0
    %299 = vmatprep.subr.mxu0 0.0
    %300 = vmatpush2.xpose.msra.mxu0 0.0
    %301 = vmatprep.subr.mxu0 0.0
    %302 = vmatpush2.xpose.msra.mxu0 0.0
    %303 = vmatprep.mubr.f32.mxu0 0.0
    %304 = vmatmul.mubr.f32.gmra.mxu0 %v235
    %v305 = vpop.f32.mrf.mxu0
    %v306 = vadd.f32 0.0, %v305
    %v307 = vpop.f32.mrf.mxu0
    %308 = vdwg.mxu0
    %v309 = vsel %vm157, %v229, -inf
    %310 = vmax.xlane.f32.xlu0 %v309
    %v311 = vpop.xlane.xlu0 %310
    %v312 = vsel %vm157, %v306, -inf
    %313 = vmax.xlane.f32.xlu0 %v312
    %v314 = vpop.xlane.xlu0 %313
    %v315 = vsub.f32 %v229, %v311
    %v316 = vsub.f32 %v306, %v314
    %v317 = vmul.f32 %v315, 1.442695
    %v318 = vpow.pop %v317
    %v319 = vmul.f32 %v316, 1.442695
    %v320 = vpow.pop %v319
    %v321 = vsel %vm157, %v318, 0.0
    %322 = vadd.xlane.f32.xlu0 %v321
    %v323 = vpop.xlane.xlu0 %322
    %v324 = vsel %vm157, %v320, 0.0
    %325 = vadd.xlane.f32.xlu0 %v324
    %v326 = vpop.xlane.xlu0 %325
    %v327 = vrcp.pop %v323
    %v328 = vrcp.pop %v326
    %v329 = vmul.f32 %v318, %v327
    %v330 = vmul.f32 %v320, %v328
    %331 = vrot.lane.b32.xlu0 %v146, 64
    %v332 = vpop.permute.xlu0 %331
    %v335 = vsel %vm157, %v329, 0
    %337 = vmatprep.subr.mxu0 0.0
    %338 = vmatpush1.msra.mxu0 0.0
    %339 = vmatprep.subr.mxu0 0.0
    %340 = vmatpush1.msra.mxu0 0.0
    %341 = vmatprep.subr.mxu0 0.0
    %342 = vmatpush1.msra.mxu0 0.0
    %343 = vmatprep.subr.mxu0 0.0
    %344 = vmatpush1.msra.mxu0 0.0
    %345 = vmatprep.subr.mxu0 0.0
    %346 = vmatpush1.msra.mxu0 0.0
    %347 = vmatprep.subr.mxu0 0.0
    %348 = vmatpush1.msra.mxu0 0.0
    %349 = vmatprep.subr.mxu0 0.0
    %350 = vmatpush1.msra.mxu0 0.0
    %351 = vmatprep.subr.mxu0 0.0
    %352 = vmatpush1.msra.mxu0 0.0
    %353 = vmatprep.subr.mxu0 0.0
    %354 = vmatpush1.msra.mxu0 0.0
    %355 = vmatprep.subr.mxu0 0.0
    %356 = vmatpush1.msra.mxu0 0.0
    %357 = vmatprep.subr.mxu0 0.0
    %358 = vmatpush1.msra.mxu0 0.0
    %359 = vmatprep.subr.mxu0 0.0
    %360 = vmatpush1.msra.mxu0 0.0
    %361 = vmatprep.subr.mxu0 0.0
    %362 = vmatpush1.msra.mxu0 0.0
    %363 = vmatprep.subr.mxu0 0.0
    %364 = vmatpush1.msra.mxu0 0.0
    %365 = vmatprep.subr.mxu0 0.0
    %366 = vmatpush1.msra.mxu0 0.0
    %367 = vmatprep.subr.mxu0 0.0
    %368 = vmatpush1.msra.mxu0 %v332
    %369 = vmatprep.subr.mxu0 0.0
    %370 = vmatpush2.msra.mxu0 0.0
    %371 = vmatprep.subr.mxu0 0.0
    %372 = vmatpush2.msra.mxu0 0.0
    %373 = vmatprep.subr.mxu0 0.0
    %374 = vmatpush2.msra.mxu0 0.0
    %375 = vmatprep.subr.mxu0 0.0
    %376 = vmatpush2.msra.mxu0 0.0
    %377 = vmatprep.subr.mxu0 0.0
    %378 = vmatpush2.msra.mxu0 0.0
    %379 = vmatprep.subr.mxu0 0.0
    %380 = vmatpush2.msra.mxu0 0.0
    %381 = vmatprep.subr.mxu0 0.0
    %382 = vmatpush2.msra.mxu0 0.0
    %383 = vmatprep.subr.mxu0 0.0
    %384 = vmatpush2.msra.mxu0 0.0
    %385 = vmatprep.subr.mxu0 0.0
    %386 = vmatpush2.msra.mxu0 0.0
    %387 = vmatprep.subr.mxu0 0.0
    %388 = vmatpush2.msra.mxu0 0.0
    %389 = vmatprep.subr.mxu0 0.0
    %390 = vmatpush2.msra.mxu0 0.0
    %391 = vmatprep.subr.mxu0 0.0
    %392 = vmatpush2.msra.mxu0 0.0
    %393 = vmatprep.subr.mxu0 0.0
    %394 = vmatpush2.msra.mxu0 0.0
    %395 = vmatprep.subr.mxu0 0.0
    %396 = vmatpush2.msra.mxu0 0.0
    %397 = vmatprep.subr.mxu0 0.0
    %398 = vmatpush2.msra.mxu0 0.0
    %399 = vmatprep.subr.mxu0 0.0
    %400 = vmatpush2.msra.mxu0 0.0
    %401 = vmatprep.mubr.f32.mxu0 0.0
    %402 = vmatmul.mubr.f32.gmra.mxu0 %v335
    %v403 = vpop.f32.mrf.mxu0
    %v404 = vadd.f32 0.0, %v403
    %v405 = vpop.f32.mrf.mxu0
    %406 = vdwg.mxu0
    %407 = vrot.lane.b32.xlu0 %v151, 64
    %v408 = vpop.permute.xlu0 %407
    %v411 = vsel %vm157, %v330, 0
    %413 = vmatprep.subr.mxu0 0.0
    %414 = vmatpush1.msra.mxu0 0.0
    %415 = vmatprep.subr.mxu0 0.0
    %416 = vmatpush1.msra.mxu0 0.0
    %417 = vmatprep.subr.mxu0 0.0
    %418 = vmatpush1.msra.mxu0 0.0
    %419 = vmatprep.subr.mxu0 0.0
    %420 = vmatpush1.msra.mxu0 0.0
    %421 = vmatprep.subr.mxu0 0.0
    %422 = vmatpush1.msra.mxu0 0.0
    %423 = vmatprep.subr.mxu0 0.0
    %424 = vmatpush1.msra.mxu0 0.0
    %425 = vmatprep.subr.mxu0 0.0
    %426 = vmatpush1.msra.mxu0 0.0
    %427 = vmatprep.subr.mxu0 0.0
    %428 = vmatpush1.msra.mxu0 0.0
    %429 = vmatprep.subr.mxu0 0.0
    %430 = vmatpush1.msra.mxu0 0.0
    %431 = vmatprep.subr.mxu0 0.0
    %432 = vmatpush1.msra.mxu0 0.0
    %433 = vmatprep.subr.mxu0 0.0
    %434 = vmatpush1.msra.mxu0 0.0
    %435 = vmatprep.subr.mxu0 0.0
    %436 = vmatpush1.msra.mxu0 0.0
    %437 = vmatprep.subr.mxu0 0.0
    %438 = vmatpush1.msra.mxu0 0.0
    %439 = vmatprep.subr.mxu0 0.0
    %440 = vmatpush1.msra.mxu0 0.0
    %441 = vmatprep.subr.mxu0 0.0
    %442 = vmatpush1.msra.mxu0 0.0
    %443 = vmatprep.subr.mxu0 0.0
    %444 = vmatpush1.msra.mxu0 %v408
    %445 = vmatprep.subr.mxu0 0.0
    %446 = vmatpush2.msra.mxu0 0.0
    %447 = vmatprep.subr.mxu0 0.0
    %448 = vmatpush2.msra.mxu0 0.0
    %449 = vmatprep.subr.mxu0 0.0
    %450 = vmatpush2.msra.mxu0 0.0
    %451 = vmatprep.subr.mxu0 0.0
    %452 = vmatpush2.msra.mxu0 0.0
    %453 = vmatprep.subr.mxu0 0.0
    %454 = vmatpush2.msra.mxu0 0.0
    %455 = vmatprep.subr.mxu0 0.0
    %456 = vmatpush2.msra.mxu0 0.0
    %457 = vmatprep.subr.mxu0 0.0
    %458 = vmatpush2.msra.mxu0 0.0
    %459 = vmatprep.subr.mxu0 0.0
    %460 = vmatpush2.msra.mxu0 0.0
    %461 = vmatprep.subr.mxu0 0.0
    %462 = vmatpush2.msra.mxu0 0.0
    %463 = vmatprep.subr.mxu0 0.0
    %464 = vmatpush2.msra.mxu0 0.0
    %465 = vmatprep.subr.mxu0 0.0
    %466 = vmatpush2.msra.mxu0 0.0
    %467 = vmatprep.subr.mxu0 0.0
    %468 = vmatpush2.msra.mxu0 0.0
    %469 = vmatprep.subr.mxu0 0.0
    %470 = vmatpush2.msra.mxu0 0.0
    %471 = vmatprep.subr.mxu0 0.0
    %472 = vmatpush2.msra.mxu0 0.0
    %473 = vmatprep.subr.mxu0 0.0
    %474 = vmatpush2.msra.mxu0 0.0
    %475 = vmatprep.subr.mxu0 0.0
    %476 = vmatpush2.msra.mxu0 0.0
    %477 = vmatprep.mubr.f32.mxu0 0.0
    %478 = vmatmul.mubr.f32.gmra.mxu0 %v411
    %v479 = vpop.f32.mrf.mxu0
    %v480 = vadd.f32 0.0, %v479
    %v481 = vpop.f32.mrf.mxu0
    %482 = vdwg.mxu0
    %483 = vrot.lane.b32.xlu0 %v146, 120
    %v484 = vpop.permute.xlu0 %483
    %485 = vrot.lane.b32.xlu0 %v146, 88
    %v486 = vpop.permute.xlu0 %485
    %v487 = vsel %vm157, %v484, 0
    %v489 = vsel %vm157, %v486, 0
    %491 = vmatprep.subr.mxu0 0.0
    %492 = vmatpush1.xpose.msra.mxu0 0.0
    %493 = vmatprep.subr.mxu0 0.0
    %494 = vmatpush1.xpose.msra.mxu0 0.0
    %495 = vmatprep.subr.mxu0 0.0
    %496 = vmatpush1.xpose.msra.mxu0 0.0
    %497 = vmatprep.subr.mxu0 0.0
    %498 = vmatpush1.xpose.msra.mxu0 0.0
    %499 = vmatprep.subr.mxu0 0.0
    %500 = vmatpush1.xpose.msra.mxu0 0.0
    %501 = vmatprep.subr.mxu0 0.0
    %502 = vmatpush1.xpose.msra.mxu0 0.0
    %503 = vmatprep.subr.mxu0 0.0
    %504 = vmatpush1.xpose.msra.mxu0 0.0
    %505 = vmatprep.subr.mxu0 0.0
    %506 = vmatpush1.xpose.msra.mxu0 0.0
    %507 = vmatprep.subr.mxu0 0.0
    %508 = vmatpush1.xpose.msra.mxu0 0.0
    %509 = vmatprep.subr.mxu0 0.0
    %510 = vmatpush1.xpose.msra.mxu0 0.0
    %511 = vmatprep.subr.mxu0 0.0
    %512 = vmatpush1.xpose.msra.mxu0 0.0
    %513 = vmatprep.subr.mxu0 0.0
    %514 = vmatpush1.xpose.msra.mxu0 0.0
    %515 = vmatprep.subr.mxu0 0.0
    %516 = vmatpush1.xpose.msra.mxu0 0.0
    %517 = vmatprep.subr.mxu0 0.0
    %518 = vmatpush1.xpose.msra.mxu0 0.0
    %519 = vmatprep.subr.mxu0 0.0
    %520 = vmatpush1.xpose.msra.mxu0 0.0
    %521 = vmatprep.subr.mxu0 0.0
    %522 = vmatpush1.xpose.msra.mxu0 %v489
    %523 = vmatprep.subr.mxu0 0.0
    %524 = vmatpush2.xpose.msra.mxu0 0.0
    %525 = vmatprep.subr.mxu0 0.0
    %526 = vmatpush2.xpose.msra.mxu0 0.0
    %527 = vmatprep.subr.mxu0 0.0
    %528 = vmatpush2.xpose.msra.mxu0 0.0
    %529 = vmatprep.subr.mxu0 0.0
    %530 = vmatpush2.xpose.msra.mxu0 0.0
    %531 = vmatprep.subr.mxu0 0.0
    %532 = vmatpush2.xpose.msra.mxu0 0.0
    %533 = vmatprep.subr.mxu0 0.0
    %534 = vmatpush2.xpose.msra.mxu0 0.0
    %535 = vmatprep.subr.mxu0 0.0
    %536 = vmatpush2.xpose.msra.mxu0 0.0
    %537 = vmatprep.subr.mxu0 0.0
    %538 = vmatpush2.xpose.msra.mxu0 0.0
    %539 = vmatprep.subr.mxu0 0.0
    %540 = vmatpush2.xpose.msra.mxu0 0.0
    %541 = vmatprep.subr.mxu0 0.0
    %542 = vmatpush2.xpose.msra.mxu0 0.0
    %543 = vmatprep.subr.mxu0 0.0
    %544 = vmatpush2.xpose.msra.mxu0 0.0
    %545 = vmatprep.subr.mxu0 0.0
    %546 = vmatpush2.xpose.msra.mxu0 0.0
    %547 = vmatprep.subr.mxu0 0.0
    %548 = vmatpush2.xpose.msra.mxu0 0.0
    %549 = vmatprep.subr.mxu0 0.0
    %550 = vmatpush2.xpose.msra.mxu0 0.0
    %551 = vmatprep.subr.mxu0 0.0
    %552 = vmatpush2.xpose.msra.mxu0 0.0
    %553 = vmatprep.subr.mxu0 0.0
    %554 = vmatpush2.xpose.msra.mxu0 0.0
    %555 = vmatprep.mubr.f32.mxu0 0.0
    %556 = vmatmul.mubr.f32.gmra.mxu0 %v487
    %v557 = vpop.f32.mrf.mxu0
    %v558 = vadd.f32 0.0, %v557
    %v559 = vpop.f32.mrf.mxu0
    %560 = vdwg.mxu0
    %561 = vrot.lane.b32.xlu0 %v151, 120
    %v562 = vpop.permute.xlu0 %561
    %563 = vrot.lane.b32.xlu0 %v151, 88
    %v564 = vpop.permute.xlu0 %563
    %v565 = vsel %vm157, %v562, 0
    %v567 = vsel %vm157, %v564, 0
    %569 = vmatprep.subr.mxu0 0.0
    %570 = vmatpush1.xpose.msra.mxu0 0.0
    %571 = vmatprep.subr.mxu0 0.0
    %572 = vmatpush1.xpose.msra.mxu0 0.0
    %573 = vmatprep.subr.mxu0 0.0
    %574 = vmatpush1.xpose.msra.mxu0 0.0
    %575 = vmatprep.subr.mxu0 0.0
    %576 = vmatpush1.xpose.msra.mxu0 0.0
    %577 = vmatprep.subr.mxu0 0.0
    %578 = vmatpush1.xpose.msra.mxu0 0.0
    %579 = vmatprep.subr.mxu0 0.0
    %580 = vmatpush1.xpose.msra.mxu0 0.0
    %581 = vmatprep.subr.mxu0 0.0
    %582 = vmatpush1.xpose.msra.mxu0 0.0
    %583 = vmatprep.subr.mxu0 0.0
    %584 = vmatpush1.xpose.msra.mxu0 0.0
    %585 = vmatprep.subr.mxu0 0.0
    %586 = vmatpush1.xpose.msra.mxu0 0.0
    %587 = vmatprep.subr.mxu0 0.0
    %588 = vmatpush1.xpose.msra.mxu0 0.0
    %589 = vmatprep.subr.mxu0 0.0
    %590 = vmatpush1.xpose.msra.mxu0 0.0
    %591 = vmatprep.subr.mxu0 0.0
    %592 = vmatpush1.xpose.msra.mxu0 0.0
    %593 = vmatprep.subr.mxu0 0.0
    %594 = vmatpush1.xpose.msra.mxu0 0.0
    %595 = vmatprep.subr.mxu0 0.0
    %596 = vmatpush1.xpose.msra.mxu0 0.0
    %597 = vmatprep.subr.mxu0 0.0
    %598 = vmatpush1.xpose.msra.mxu0 0.0
    %599 = vmatprep.subr.mxu0 0.0
    %600 = vmatpush1.xpose.msra.mxu0 %v567
    %601 = vmatprep.subr.mxu0 0.0
    %602 = vmatpush2.xpose.msra.mxu0 0.0
    %603 = vmatprep.subr.mxu0 0.0
    %604 = vmatpush2.xpose.msra.mxu0 0.0
    %605 = vmatprep.subr.mxu0 0.0
    %606 = vmatpush2.xpose.msra.mxu0 0.0
    %607 = vmatprep.subr.mxu0 0.0
    %608 = vmatpush2.xpose.msra.mxu0 0.0
    %609 = vmatprep.subr.mxu0 0.0
    %610 = vmatpush2.xpose.msra.mxu0 0.0
    %611 = vmatprep.subr.mxu0 0.0
    %612 = vmatpush2.xpose.msra.mxu0 0.0
    %613 = vmatprep.subr.mxu0 0.0
    %614 = vmatpush2.xpose.msra.mxu0 0.0
    %615 = vmatprep.subr.mxu0 0.0
    %616 = vmatpush2.xpose.msra.mxu0 0.0
    %617 = vmatprep.subr.mxu0 0.0
    %618 = vmatpush2.xpose.msra.mxu0 0.0
    %619 = vmatprep.subr.mxu0 0.0
    %620 = vmatpush2.xpose.msra.mxu0 0.0
    %621 = vmatprep.subr.mxu0 0.0
    %622 = vmatpush2.xpose.msra.mxu0 0.0
    %623 = vmatprep.subr.mxu0 0.0
    %624 = vmatpush2.xpose.msra.mxu0 0.0
    %625 = vmatprep.subr.mxu0 0.0
    %626 = vmatpush2.xpose.msra.mxu0 0.0
    %627 = vmatprep.subr.mxu0 0.0
    %628 = vmatpush2.xpose.msra.mxu0 0.0
    %629 = vmatprep.subr.mxu0 0.0
    %630 = vmatpush2.xpose.msra.mxu0 0.0
    %631 = vmatprep.subr.mxu0 0.0
    %632 = vmatpush2.xpose.msra.mxu0 0.0
    %633 = vmatprep.mubr.f32.mxu0 0.0
    %634 = vmatmul.mubr.f32.gmra.mxu0 %v565
    %v635 = vpop.f32.mrf.mxu0
    %v636 = vadd.f32 0.0, %v635
    %v637 = vpop.f32.mrf.mxu0
    %638 = vdwg.mxu0
    %v639 = vsel %vm157, %v558, -inf
    %640 = vmax.xlane.f32.xlu0 %v639
    %v641 = vpop.xlane.xlu0 %640
    %v642 = vsel %vm157, %v636, -inf
    %643 = vmax.xlane.f32.xlu0 %v642
    %v644 = vpop.xlane.xlu0 %643
    %v645 = vsub.f32 %v558, %v641
    %v646 = vsub.f32 %v636, %v644
    %v647 = vmul.f32 %v645, 1.442695
    %v648 = vpow.pop %v647
    %v649 = vmul.f32 %v646, 1.442695
    %v650 = vpow.pop %v649
    %v651 = vsel %vm157, %v648, 0.0
    %652 = vadd.xlane.f32.xlu0 %v651
    %v653 = vpop.xlane.xlu0 %652
    %v654 = vsel %vm157, %v650, 0.0
    %655 = vadd.xlane.f32.xlu0 %v654
    %v656 = vpop.xlane.xlu0 %655
    %v657 = vrcp.pop %v653
    %v658 = vrcp.pop %v656
    %v659 = vmul.f32 %v648, %v657
    %v660 = vmul.f32 %v650, %v658
    %661 = vrot.lane.b32.xlu0 %v146, 56
    %v662 = vpop.permute.xlu0 %661
    %v665 = vsel %vm157, %v659, 0
    %667 = vmatprep.subr.mxu0 0.0
    %668 = vmatpush1.msra.mxu0 0.0
    %669 = vmatprep.subr.mxu0 0.0
    %670 = vmatpush1.msra.mxu0 0.0
    %671 = vmatprep.subr.mxu0 0.0
    %672 = vmatpush1.msra.mxu0 0.0
    %673 = vmatprep.subr.mxu0 0.0
    %674 = vmatpush1.msra.mxu0 0.0
    %675 = vmatprep.subr.mxu0 0.0
    %676 = vmatpush1.msra.mxu0 0.0
    %677 = vmatprep.subr.mxu0 0.0
    %678 = vmatpush1.msra.mxu0 0.0
    %679 = vmatprep.subr.mxu0 0.0
    %680 = vmatpush1.msra.mxu0 0.0
    %681 = vmatprep.subr.mxu0 0.0
    %682 = vmatpush1.msra.mxu0 0.0
    %683 = vmatprep.subr.mxu0 0.0
    %684 = vmatpush1.msra.mxu0 0.0
    %685 = vmatprep.subr.mxu0 0.0
    %686 = vmatpush1.msra.mxu0 0.0
    %687 = vmatprep.subr.mxu0 0.0
    %688 = vmatpush1.msra.mxu0 0.0
    %689 = vmatprep.subr.mxu0 0.0
    %690 = vmatpush1.msra.mxu0 0.0
    %691 = vmatprep.subr.mxu0 0.0
    %692 = vmatpush1.msra.mxu0 0.0
    %693 = vmatprep.subr.mxu0 0.0
    %694 = vmatpush1.msra.mxu0 0.0
    %695 = vmatprep.subr.mxu0 0.0
    %696 = vmatpush1.msra.mxu0 0.0
    %697 = vmatprep.subr.mxu0 0.0
    %698 = vmatpush1.msra.mxu0 %v662
    %699 = vmatprep.subr.mxu0 0.0
    %700 = vmatpush2.msra.mxu0 0.0
    %701 = vmatprep.subr.mxu0 0.0
    %702 = vmatpush2.msra.mxu0 0.0
    %703 = vmatprep.subr.mxu0 0.0
    %704 = vmatpush2.msra.mxu0 0.0
    %705 = vmatprep.subr.mxu0 0.0
    %706 = vmatpush2.msra.mxu0 0.0
    %707 = vmatprep.subr.mxu0 0.0
    %708 = vmatpush2.msra.mxu0 0.0
    %709 = vmatprep.subr.mxu0 0.0
    %710 = vmatpush2.msra.mxu0 0.0
    %711 = vmatprep.subr.mxu0 0.0
    %712 = vmatpush2.msra.mxu0 0.0
    %713 = vmatprep.subr.mxu0 0.0
    %714 = vmatpush2.msra.mxu0 0.0
    %715 = vmatprep.subr.mxu0 0.0
    %716 = vmatpush2.msra.mxu0 0.0
    %717 = vmatprep.subr.mxu0 0.0
    %718 = vmatpush2.msra.mxu0 0.0
    %719 = vmatprep.subr.mxu0 0.0
    %720 = vmatpush2.msra.mxu0 0.0
    %721 = vmatprep.subr.mxu0 0.0
    %722 = vmatpush2.msra.mxu0 0.0
    %723 = vmatprep.subr.mxu0 0.0
    %724 = vmatpush2.msra.mxu0 0.0
    %725 = vmatprep.subr.mxu0 0.0
    %726 = vmatpush2.msra.mxu0 0.0
    %727 = vmatprep.subr.mxu0 0.0
    %728 = vmatpush2.msra.mxu0 0.0
    %729 = vmatprep.subr.mxu0 0.0
    %730 = vmatpush2.msra.mxu0 0.0
    %731 = vmatprep.mubr.f32.mxu0 0.0
    %732 = vmatmul.mubr.f32.gmra.mxu0 %v665
    %v733 = vpop.f32.mrf.mxu0
    %v734 = vadd.f32 0.0, %v733
    %v735 = vpop.f32.mrf.mxu0
    %736 = vdwg.mxu0
    %737 = vrot.lane.b32.xlu0 %v151, 56
    %v738 = vpop.permute.xlu0 %737
    %v741 = vsel %vm157, %v660, 0
    %743 = vmatprep.subr.mxu0 0.0
    %744 = vmatpush1.msra.mxu0 0.0
    %745 = vmatprep.subr.mxu0 0.0
    %746 = vmatpush1.msra.mxu0 0.0
    %747 = vmatprep.subr.mxu0 0.0
    %748 = vmatpush1.msra.mxu0 0.0
    %749 = vmatprep.subr.mxu0 0.0
    %750 = vmatpush1.msra.mxu0 0.0
    %751 = vmatprep.subr.mxu0 0.0
    %752 = vmatpush1.msra.mxu0 0.0
    %753 = vmatprep.subr.mxu0 0.0
    %754 = vmatpush1.msra.mxu0 0.0
    %755 = vmatprep.subr.mxu0 0.0
    %756 = vmatpush1.msra.mxu0 0.0
    %757 = vmatprep.subr.mxu0 0.0
    %758 = vmatpush1.msra.mxu0 0.0
    %759 = vmatprep.subr.mxu0 0.0
    %760 = vmatpush1.msra.mxu0 0.0
    %761 = vmatprep.subr.mxu0 0.0
    %762 = vmatpush1.msra.mxu0 0.0
    %763 = vmatprep.subr.mxu0 0.0
    %764 = vmatpush1.msra.mxu0 0.0
    %765 = vmatprep.subr.mxu0 0.0
    %766 = vmatpush1.msra.mxu0 0.0
    %767 = vmatprep.subr.mxu0 0.0
    %768 = vmatpush1.msra.mxu0 0.0
    %769 = vmatprep.subr.mxu0 0.0
    %770 = vmatpush1.msra.mxu0 0.0
    %771 = vmatprep.subr.mxu0 0.0
    %772 = vmatpush1.msra.mxu0 0.0
    %773 = vmatprep.subr.mxu0 0.0
    %774 = vmatpush1.msra.mxu0 %v738
    %775 = vmatprep.subr.mxu0 0.0
    %776 = vmatpush2.msra.mxu0 0.0
    %777 = vmatprep.subr.mxu0 0.0
    %778 = vmatpush2.msra.mxu0 0.0
    %779 = vmatprep.subr.mxu0 0.0
    %780 = vmatpush2.msra.mxu0 0.0
    %781 = vmatprep.subr.mxu0 0.0
    %782 = vmatpush2.msra.mxu0 0.0
    %783 = vmatprep.subr.mxu0 0.0
    %784 = vmatpush2.msra.mxu0 0.0
    %785 = vmatprep.subr.mxu0 0.0
    %786 = vmatpush2.msra.mxu0 0.0
    %787 = vmatprep.subr.mxu0 0.0
    %788 = vmatpush2.msra.mxu0 0.0
    %789 = vmatprep.subr.mxu0 0.0
    %790 = vmatpush2.msra.mxu0 0.0
    %791 = vmatprep.subr.mxu0 0.0
    %792 = vmatpush2.msra.mxu0 0.0
    %793 = vmatprep.subr.mxu0 0.0
    %794 = vmatpush2.msra.mxu0 0.0
    %795 = vmatprep.subr.mxu0 0.0
    %796 = vmatpush2.msra.mxu0 0.0
    %797 = vmatprep.subr.mxu0 0.0
    %798 = vmatpush2.msra.mxu0 0.0
    %799 = vmatprep.subr.mxu0 0.0
    %800 = vmatpush2.msra.mxu0 0.0
    %801 = vmatprep.subr.mxu0 0.0
    %802 = vmatpush2.msra.mxu0 0.0
    %803 = vmatprep.subr.mxu0 0.0
    %804 = vmatpush2.msra.mxu0 0.0
    %805 = vmatprep.subr.mxu0 0.0
    %806 = vmatpush2.msra.mxu0 0.0
    %807 = vmatprep.mubr.f32.mxu0 0.0
    %808 = vmatmul.mubr.f32.gmra.mxu0 %v741
    %v809 = vpop.f32.mrf.mxu0
    %v810 = vadd.f32 0.0, %v809
    %v811 = vpop.f32.mrf.mxu0
    %812 = vdwg.mxu0
    %813 = vrot.lane.b32.xlu0 %v146, 112
    %v814 = vpop.permute.xlu0 %813
    %815 = vrot.lane.b32.xlu0 %v146, 80
    %v816 = vpop.permute.xlu0 %815
    %v817 = vsel %vm157, %v814, 0
    %v819 = vsel %vm157, %v816, 0
    %821 = vmatprep.subr.mxu0 0.0
    %822 = vmatpush1.xpose.msra.mxu0 0.0
    %823 = vmatprep.subr.mxu0 0.0
    %824 = vmatpush1.xpose.msra.mxu0 0.0
    %825 = vmatprep.subr.mxu0 0.0
    %826 = vmatpush1.xpose.msra.mxu0 0.0
    %827 = vmatprep.subr.mxu0 0.0
    %828 = vmatpush1.xpose.msra.mxu0 0.0
    %829 = vmatprep.subr.mxu0 0.0
    %830 = vmatpush1.xpose.msra.mxu0 0.0
    %831 = vmatprep.subr.mxu0 0.0
    %832 = vmatpush1.xpose.msra.mxu0 0.0
    %833 = vmatprep.subr.mxu0 0.0
    %834 = vmatpush1.xpose.msra.mxu0 0.0
    %835 = vmatprep.subr.mxu0 0.0
    %836 = vmatpush1.xpose.msra.mxu0 0.0
    %837 = vmatprep.subr.mxu0 0.0
    %838 = vmatpush1.xpose.msra.mxu0 0.0
    %839 = vmatprep.subr.mxu0 0.0
    %840 = vmatpush1.xpose.msra.mxu0 0.0
    %841 = vmatprep.subr.mxu0 0.0
    %842 = vmatpush1.xpose.msra.mxu0 0.0
    %843 = vmatprep.subr.mxu0 0.0
    %844 = vmatpush1.xpose.msra.mxu0 0.0
    %845 = vmatprep.subr.mxu0 0.0
    %846 = vmatpush1.xpose.msra.mxu0 0.0
    %847 = vmatprep.subr.mxu0 0.0
    %848 = vmatpush1.xpose.msra.mxu0 0.0
    %849 = vmatprep.subr.mxu0 0.0
    %850 = vmatpush1.xpose.msra.mxu0 0.0
    %851 = vmatprep.subr.mxu0 0.0
    %852 = vmatpush1.xpose.msra.mxu0 %v819
    %853 = vmatprep.subr.mxu0 0.0
    %854 = vmatpush2.xpose.msra.mxu0 0.0
    %855 = vmatprep.subr.mxu0 0.0
    %856 = vmatpush2.xpose.msra.mxu0 0.0
    %857 = vmatprep.subr.mxu0 0.0
    %858 = vmatpush2.xpose.msra.mxu0 0.0
    %859 = vmatprep.subr.mxu0 0.0
    %860 = vmatpush2.xpose.msra.mxu0 0.0
    %861 = vmatprep.subr.mxu0 0.0
    %862 = vmatpush2.xpose.msra.mxu0 0.0
    %863 = vmatprep.subr.mxu0 0.0
    %864 = vmatpush2.xpose.msra.mxu0 0.0
    %865 = vmatprep.subr.mxu0 0.0
    %866 = vmatpush2.xpose.msra.mxu0 0.0
    %867 = vmatprep.subr.mxu0 0.0
    %868 = vmatpush2.xpose.msra.mxu0 0.0
    %869 = vmatprep.subr.mxu0 0.0
    %870 = vmatpush2.xpose.msra.mxu0 0.0
    %871 = vmatprep.subr.mxu0 0.0
    %872 = vmatpush2.xpose.msra.mxu0 0.0
    %873 = vmatprep.subr.mxu0 0.0
    %874 = vmatpush2.xpose.msra.mxu0 0.0
    %875 = vmatprep.subr.mxu0 0.0
    %876 = vmatpush2.xpose.msra.mxu0 0.0
    %877 = vmatprep.subr.mxu0 0.0
    %878 = vmatpush2.xpose.msra.mxu0 0.0
    %879 = vmatprep.subr.mxu0 0.0
    %880 = vmatpush2.xpose.msra.mxu0 0.0
    %881 = vmatprep.subr.mxu0 0.0
    %882 = vmatpush2.xpose.msra.mxu0 0.0
    %883 = vmatprep.subr.mxu0 0.0
    %884 = vmatpush2.xpose.msra.mxu0 0.0
    %885 = vmatprep.mubr.f32.mxu0 0.0
    %886 = vmatmul.mubr.f32.gmra.mxu0 %v817
    %v887 = vpop.f32.mrf.mxu0
    %v888 = vadd.f32 0.0, %v887
    %v889 = vpop.f32.mrf.mxu0
    %890 = vdwg.mxu0
    %891 = vrot.lane.b32.xlu0 %v151, 112
    %v892 = vpop.permute.xlu0 %891
    %893 = vrot.lane.b32.xlu0 %v151, 80
    %v894 = vpop.permute.xlu0 %893
    %v895 = vsel %vm157, %v892, 0
    %v897 = vsel %vm157, %v894, 0
    %899 = vmatprep.subr.mxu0 0.0
    %900 = vmatpush1.xpose.msra.mxu0 0.0
    %901 = vmatprep.subr.mxu0 0.0
    %902 = vmatpush1.xpose.msra.mxu0 0.0
    %903 = vmatprep.subr.mxu0 0.0
    %904 = vmatpush1.xpose.msra.mxu0 0.0
    %905 = vmatprep.subr.mxu0 0.0
    %906 = vmatpush1.xpose.msra.mxu0 0.0
    %907 = vmatprep.subr.mxu0 0.0
    %908 = vmatpush1.xpose.msra.mxu0 0.0
    %909 = vmatprep.subr.mxu0 0.0
    %910 = vmatpush1.xpose.msra.mxu0 0.0
    %911 = vmatprep.subr.mxu0 0.0
    %912 = vmatpush1.xpose.msra.mxu0 0.0
    %913 = vmatprep.subr.mxu0 0.0
    %914 = vmatpush1.xpose.msra.mxu0 0.0
    %915 = vmatprep.subr.mxu0 0.0
    %916 = vmatpush1.xpose.msra.mxu0 0.0
    %917 = vmatprep.subr.mxu0 0.0
    %918 = vmatpush1.xpose.msra.mxu0 0.0
    %919 = vmatprep.subr.mxu0 0.0
    %920 = vmatpush1.xpose.msra.mxu0 0.0
    %921 = vmatprep.subr.mxu0 0.0
    %922 = vmatpush1.xpose.msra.mxu0 0.0
    %923 = vmatprep.subr.mxu0 0.0
    %924 = vmatpush1.xpose.msra.mxu0 0.0
    %925 = vmatprep.subr.mxu0 0.0
    %926 = vmatpush1.xpose.msra.mxu0 0.0
    %927 = vmatprep.subr.mxu0 0.0
    %928 = vmatpush1.xpose.msra.mxu0 0.0
    %929 = vmatprep.subr.mxu0 0.0
    %930 = vmatpush1.xpose.msra.mxu0 %v897
    %931 = vmatprep.subr.mxu0 0.0
    %932 = vmatpush2.xpose.msra.mxu0 0.0
    %933 = vmatprep.subr.mxu0 0.0
    %934 = vmatpush2.xpose.msra.mxu0 0.0
    %935 = vmatprep.subr.mxu0 0.0
    %936 = vmatpush2.xpose.msra.mxu0 0.0
    %937 = vmatprep.subr.mxu0 0.0
    %938 = vmatpush2.xpose.msra.mxu0 0.0
    %939 = vmatprep.subr.mxu0 0.0
    %940 = vmatpush2.xpose.msra.mxu0 0.0
    %941 = vmatprep.subr.mxu0 0.0
    %942 = vmatpush2.xpose.msra.mxu0 0.0
    %943 = vmatprep.subr.mxu0 0.0
    %944 = vmatpush2.xpose.msra.mxu0 0.0
    %945 = vmatprep.subr.mxu0 0.0
    %946 = vmatpush2.xpose.msra.mxu0 0.0
    %947 = vmatprep.subr.mxu0 0.0
    %948 = vmatpush2.xpose.msra.mxu0 0.0
    %949 = vmatprep.subr.mxu0 0.0
    %950 = vmatpush2.xpose.msra.mxu0 0.0
    %951 = vmatprep.subr.mxu0 0.0
    %952 = vmatpush2.xpose.msra.mxu0 0.0
    %953 = vmatprep.subr.mxu0 0.0
    %954 = vmatpush2.xpose.msra.mxu0 0.0
    %955 = vmatprep.subr.mxu0 0.0
    %956 = vmatpush2.xpose.msra.mxu0 0.0
    %957 = vmatprep.subr.mxu0 0.0
    %958 = vmatpush2.xpose.msra.mxu0 0.0
    %959 = vmatprep.subr.mxu0 0.0
    %960 = vmatpush2.xpose.msra.mxu0 0.0
    %961 = vmatprep.subr.mxu0 0.0
    %962 = vmatpush2.xpose.msra.mxu0 0.0
    %963 = vmatprep.mubr.f32.mxu0 0.0
    %964 = vmatmul.mubr.f32.gmra.mxu0 %v895
    %v965 = vpop.f32.mrf.mxu0
    %v966 = vadd.f32 0.0, %v965
    %v967 = vpop.f32.mrf.mxu0
    %968 = vdwg.mxu0
    %v969 = vsel %vm157, %v888, -inf
    %970 = vmax.xlane.f32.xlu0 %v969
    %v971 = vpop.xlane.xlu0 %970
    %v972 = vsel %vm157, %v966, -inf
    %973 = vmax.xlane.f32.xlu0 %v972
    %v974 = vpop.xlane.xlu0 %973
    %v975 = vsub.f32 %v888, %v971
    %v976 = vsub.f32 %v966, %v974
    %v977 = vmul.f32 %v975, 1.442695
    %v978 = vpow.pop %v977
    %v979 = vmul.f32 %v976, 1.442695
    %v980 = vpow.pop %v979
    %v981 = vsel %vm157, %v978, 0.0
    %982 = vadd.xlane.f32.xlu0 %v981
    %v983 = vpop.xlane.xlu0 %982
    %v984 = vsel %vm157, %v980, 0.0
    %985 = vadd.xlane.f32.xlu0 %v984
    %v986 = vpop.xlane.xlu0 %985
    %v987 = vrcp.pop %v983
    %v988 = vrcp.pop %v986
    %v989 = vmul.f32 %v978, %v987
    %v990 = vmul.f32 %v980, %v988
    %991 = vrot.lane.b32.xlu0 %v146, 48
    %v992 = vpop.permute.xlu0 %991
    %v995 = vsel %vm157, %v989, 0
    %997 = vmatprep.subr.mxu0 0.0
    %998 = vmatpush1.msra.mxu0 0.0
    %999 = vmatprep.subr.mxu0 0.0
    %1000 = vmatpush1.msra.mxu0 0.0
    %1001 = vmatprep.subr.mxu0 0.0
    %1002 = vmatpush1.msra.mxu0 0.0
    %1003 = vmatprep.subr.mxu0 0.0
    %1004 = vmatpush1.msra.mxu0 0.0
    %1005 = vmatprep.subr.mxu0 0.0
    %1006 = vmatpush1.msra.mxu0 0.0
    %1007 = vmatprep.subr.mxu0 0.0
    %1008 = vmatpush1.msra.mxu0 0.0
    %1009 = vmatprep.subr.mxu0 0.0
    %1010 = vmatpush1.msra.mxu0 0.0
    %1011 = vmatprep.subr.mxu0 0.0
    %1012 = vmatpush1.msra.mxu0 0.0
    %1013 = vmatprep.subr.mxu0 0.0
    %1014 = vmatpush1.msra.mxu0 0.0
    %1015 = vmatprep.subr.mxu0 0.0
    %1016 = vmatpush1.msra.mxu0 0.0
    %1017 = vmatprep.subr.mxu0 0.0
    %1018 = vmatpush1.msra.mxu0 0.0
    %1019 = vmatprep.subr.mxu0 0.0
    %1020 = vmatpush1.msra.mxu0 0.0
    %1021 = vmatprep.subr.mxu0 0.0
    %1022 = vmatpush1.msra.mxu0 0.0
    %1023 = vmatprep.subr.mxu0 0.0
    %1024 = vmatpush1.msra.mxu0 0.0
    %1025 = vmatprep.subr.mxu0 0.0
    %1026 = vmatpush1.msra.mxu0 0.0
    %1027 = vmatprep.subr.mxu0 0.0
    %1028 = vmatpush1.msra.mxu0 %v992
    %1029 = vmatprep.subr.mxu0 0.0
    %1030 = vmatpush2.msra.mxu0 0.0
    %1031 = vmatprep.subr.mxu0 0.0
    %1032 = vmatpush2.msra.mxu0 0.0
    %1033 = vmatprep.subr.mxu0 0.0
    %1034 = vmatpush2.msra.mxu0 0.0
    %1035 = vmatprep.subr.mxu0 0.0
    %1036 = vmatpush2.msra.mxu0 0.0
    %1037 = vmatprep.subr.mxu0 0.0
    %1038 = vmatpush2.msra.mxu0 0.0
    %1039 = vmatprep.subr.mxu0 0.0
    %1040 = vmatpush2.msra.mxu0 0.0
    %1041 = vmatprep.subr.mxu0 0.0
    %1042 = vmatpush2.msra.mxu0 0.0
    %1043 = vmatprep.subr.mxu0 0.0
    %1044 = vmatpush2.msra.mxu0 0.0
    %1045 = vmatprep.subr.mxu0 0.0
    %1046 = vmatpush2.msra.mxu0 0.0
    %1047 = vmatprep.subr.mxu0 0.0
    %1048 = vmatpush2.msra.mxu0 0.0
    %1049 = vmatprep.subr.mxu0 0.0
    %1050 = vmatpush2.msra.mxu0 0.0
    %1051 = vmatprep.subr.mxu0 0.0
    %1052 = vmatpush2.msra.mxu0 0.0
    %1053 = vmatprep.subr.mxu0 0.0
    %1054 = vmatpush2.msra.mxu0 0.0
    %1055 = vmatprep.subr.mxu0 0.0
    %1056 = vmatpush2.msra.mxu0 0.0
    %1057 = vmatprep.subr.mxu0 0.0
    %1058 = vmatpush2.msra.mxu0 0.0
    %1059 = vmatprep.subr.mxu0 0.0
    %1060 = vmatpush2.msra.mxu0 0.0
    %1061 = vmatprep.mubr.f32.mxu0 0.0
    %1062 = vmatmul.mubr.f32.gmra.mxu0 %v995
    %v1063 = vpop.f32.mrf.mxu0
    %v1064 = vadd.f32 0.0, %v1063
    %v1065 = vpop.f32.mrf.mxu0
    %1066 = vdwg.mxu0
    %1067 = vrot.lane.b32.xlu0 %v151, 48
    %v1068 = vpop.permute.xlu0 %1067
    %v1071 = vsel %vm157, %v990, 0
    %1073 = vmatprep.subr.mxu0 0.0
    %1074 = vmatpush1.msra.mxu0 0.0
    %1075 = vmatprep.subr.mxu0 0.0
    %1076 = vmatpush1.msra.mxu0 0.0
    %1077 = vmatprep.subr.mxu0 0.0
    %1078 = vmatpush1.msra.mxu0 0.0
    %1079 = vmatprep.subr.mxu0 0.0
    %1080 = vmatpush1.msra.mxu0 0.0
    %1081 = vmatprep.subr.mxu0 0.0
    %1082 = vmatpush1.msra.mxu0 0.0
    %1083 = vmatprep.subr.mxu0 0.0
    %1084 = vmatpush1.msra.mxu0 0.0
    %1085 = vmatprep.subr.mxu0 0.0
    %1086 = vmatpush1.msra.mxu0 0.0
    %1087 = vmatprep.subr.mxu0 0.0
    %1088 = vmatpush1.msra.mxu0 0.0
    %1089 = vmatprep.subr.mxu0 0.0
    %1090 = vmatpush1.msra.mxu0 0.0
    %1091 = vmatprep.subr.mxu0 0.0
    %1092 = vmatpush1.msra.mxu0 0.0
    %1093 = vmatprep.subr.mxu0 0.0
    %1094 = vmatpush1.msra.mxu0 0.0
    %1095 = vmatprep.subr.mxu0 0.0
    %1096 = vmatpush1.msra.mxu0 0.0
    %1097 = vmatprep.subr.mxu0 0.0
    %1098 = vmatpush1.msra.mxu0 0.0
    %1099 = vmatprep.subr.mxu0 0.0
    %1100 = vmatpush1.msra.mxu0 0.0
    %1101 = vmatprep.subr.mxu0 0.0
    %1102 = vmatpush1.msra.mxu0 0.0
    %1103 = vmatprep.subr.mxu0 0.0
    %1104 = vmatpush1.msra.mxu0 %v1068
    %1105 = vmatprep.subr.mxu0 0.0
    %1106 = vmatpush2.msra.mxu0 0.0
    %1107 = vmatprep.subr.mxu0 0.0
    %1108 = vmatpush2.msra.mxu0 0.0
    %1109 = vmatprep.subr.mxu0 0.0
    %1110 = vmatpush2.msra.mxu0 0.0
    %1111 = vmatprep.subr.mxu0 0.0
    %1112 = vmatpush2.msra.mxu0 0.0
    %1113 = vmatprep.subr.mxu0 0.0
    %1114 = vmatpush2.msra.mxu0 0.0
    %1115 = vmatprep.subr.mxu0 0.0
    %1116 = vmatpush2.msra.mxu0 0.0
    %1117 = vmatprep.subr.mxu0 0.0
    %1118 = vmatpush2.msra.mxu0 0.0
    %1119 = vmatprep.subr.mxu0 0.0
    %1120 = vmatpush2.msra.mxu0 0.0
    %1121 = vmatprep.subr.mxu0 0.0
    %1122 = vmatpush2.msra.mxu0 0.0
    %1123 = vmatprep.subr.mxu0 0.0
    %1124 = vmatpush2.msra.mxu0 0.0
    %1125 = vmatprep.subr.mxu0 0.0
    %1126 = vmatpush2.msra.mxu0 0.0
    %1127 = vmatprep.subr.mxu0 0.0
    %1128 = vmatpush2.msra.mxu0 0.0
    %1129 = vmatprep.subr.mxu0 0.0
    %1130 = vmatpush2.msra.mxu0 0.0
    %1131 = vmatprep.subr.mxu0 0.0
    %1132 = vmatpush2.msra.mxu0 0.0
    %1133 = vmatprep.subr.mxu0 0.0
    %1134 = vmatpush2.msra.mxu0 0.0
    %1135 = vmatprep.subr.mxu0 0.0
    %1136 = vmatpush2.msra.mxu0 0.0
    %1137 = vmatprep.mubr.f32.mxu0 0.0
    %1138 = vmatmul.mubr.f32.gmra.mxu0 %v1071
    %v1139 = vpop.f32.mrf.mxu0
    %v1140 = vadd.f32 0.0, %v1139
    %v1141 = vpop.f32.mrf.mxu0
    %1142 = vdwg.mxu0
    %1143 = vrot.lane.b32.xlu0 %v146, 104
    %v1144 = vpop.permute.xlu0 %1143
    %1145 = vrot.lane.b32.xlu0 %v146, 72
    %v1146 = vpop.permute.xlu0 %1145
    %v1147 = vsel %vm157, %v1144, 0
    %v1149 = vsel %vm157, %v1146, 0
    %1151 = vmatprep.subr.mxu0 0.0
    %1152 = vmatpush1.xpose.msra.mxu0 0.0
    %1153 = vmatprep.subr.mxu0 0.0
    %1154 = vmatpush1.xpose.msra.mxu0 0.0
    %1155 = vmatprep.subr.mxu0 0.0
    %1156 = vmatpush1.xpose.msra.mxu0 0.0
    %1157 = vmatprep.subr.mxu0 0.0
    %1158 = vmatpush1.xpose.msra.mxu0 0.0
    %1159 = vmatprep.subr.mxu0 0.0
    %1160 = vmatpush1.xpose.msra.mxu0 0.0
    %1161 = vmatprep.subr.mxu0 0.0
    %1162 = vmatpush1.xpose.msra.mxu0 0.0
    %1163 = vmatprep.subr.mxu0 0.0
    %1164 = vmatpush1.xpose.msra.mxu0 0.0
    %1165 = vmatprep.subr.mxu0 0.0
    %1166 = vmatpush1.xpose.msra.mxu0 0.0
    %1167 = vmatprep.subr.mxu0 0.0
    %1168 = vmatpush1.xpose.msra.mxu0 0.0
    %1169 = vmatprep.subr.mxu0 0.0
    %1170 = vmatpush1.xpose.msra.mxu0 0.0
    %1171 = vmatprep.subr.mxu0 0.0
    %1172 = vmatpush1.xpose.msra.mxu0 0.0
    %1173 = vmatprep.subr.mxu0 0.0
    %1174 = vmatpush1.xpose.msra.mxu0 0.0
    %1175 = vmatprep.subr.mxu0 0.0
    %1176 = vmatpush1.xpose.msra.mxu0 0.0
    %1177 = vmatprep.subr.mxu0 0.0
    %1178 = vmatpush1.xpose.msra.mxu0 0.0
    %1179 = vmatprep.subr.mxu0 0.0
    %1180 = vmatpush1.xpose.msra.mxu0 0.0
    %1181 = vmatprep.subr.mxu0 0.0
    %1182 = vmatpush1.xpose.msra.mxu0 %v1149
    %1183 = vmatprep.subr.mxu0 0.0
    %1184 = vmatpush2.xpose.msra.mxu0 0.0
    %1185 = vmatprep.subr.mxu0 0.0
    %1186 = vmatpush2.xpose.msra.mxu0 0.0
    %1187 = vmatprep.subr.mxu0 0.0
    %1188 = vmatpush2.xpose.msra.mxu0 0.0
    %1189 = vmatprep.subr.mxu0 0.0
    %1190 = vmatpush2.xpose.msra.mxu0 0.0
    %1191 = vmatprep.subr.mxu0 0.0
    %1192 = vmatpush2.xpose.msra.mxu0 0.0
    %1193 = vmatprep.subr.mxu0 0.0
    %1194 = vmatpush2.xpose.msra.mxu0 0.0
    %1195 = vmatprep.subr.mxu0 0.0
    %1196 = vmatpush2.xpose.msra.mxu0 0.0
    %1197 = vmatprep.subr.mxu0 0.0
    %1198 = vmatpush2.xpose.msra.mxu0 0.0
    %1199 = vmatprep.subr.mxu0 0.0
    %1200 = vmatpush2.xpose.msra.mxu0 0.0
    %1201 = vmatprep.subr.mxu0 0.0
    %1202 = vmatpush2.xpose.msra.mxu0 0.0
    %1203 = vmatprep.subr.mxu0 0.0
    %1204 = vmatpush2.xpose.msra.mxu0 0.0
    %1205 = vmatprep.subr.mxu0 0.0
    %1206 = vmatpush2.xpose.msra.mxu0 0.0
    %1207 = vmatprep.subr.mxu0 0.0
    %1208 = vmatpush2.xpose.msra.mxu0 0.0
    %1209 = vmatprep.subr.mxu0 0.0
    %1210 = vmatpush2.xpose.msra.mxu0 0.0
    %1211 = vmatprep.subr.mxu0 0.0
    %1212 = vmatpush2.xpose.msra.mxu0 0.0
    %1213 = vmatprep.subr.mxu0 0.0
    %1214 = vmatpush2.xpose.msra.mxu0 0.0
    %1215 = vmatprep.mubr.f32.mxu0 0.0
    %1216 = vmatmul.mubr.f32.gmra.mxu0 %v1147
    %v1217 = vpop.f32.mrf.mxu0
    %v1218 = vadd.f32 0.0, %v1217
    %v1219 = vpop.f32.mrf.mxu0
    %1220 = vdwg.mxu0
    %1221 = vrot.lane.b32.xlu0 %v151, 104
    %v1222 = vpop.permute.xlu0 %1221
    %1223 = vrot.lane.b32.xlu0 %v151, 72
    %v1224 = vpop.permute.xlu0 %1223
    %v1225 = vsel %vm157, %v1222, 0
    %v1227 = vsel %vm157, %v1224, 0
    %1229 = vmatprep.subr.mxu0 0.0
    %1230 = vmatpush1.xpose.msra.mxu0 0.0
    %1231 = vmatprep.subr.mxu0 0.0
    %1232 = vmatpush1.xpose.msra.mxu0 0.0
    %1233 = vmatprep.subr.mxu0 0.0
    %1234 = vmatpush1.xpose.msra.mxu0 0.0
    %1235 = vmatprep.subr.mxu0 0.0
    %1236 = vmatpush1.xpose.msra.mxu0 0.0
    %1237 = vmatprep.subr.mxu0 0.0
    %1238 = vmatpush1.xpose.msra.mxu0 0.0
    %1239 = vmatprep.subr.mxu0 0.0
    %1240 = vmatpush1.xpose.msra.mxu0 0.0
    %1241 = vmatprep.subr.mxu0 0.0
    %1242 = vmatpush1.xpose.msra.mxu0 0.0
    %1243 = vmatprep.subr.mxu0 0.0
    %1244 = vmatpush1.xpose.msra.mxu0 0.0
    %1245 = vmatprep.subr.mxu0 0.0
    %1246 = vmatpush1.xpose.msra.mxu0 0.0
    %1247 = vmatprep.subr.mxu0 0.0
    %1248 = vmatpush1.xpose.msra.mxu0 0.0
    %1249 = vmatprep.subr.mxu0 0.0
    %1250 = vmatpush1.xpose.msra.mxu0 0.0
    %1251 = vmatprep.subr.mxu0 0.0
    %1252 = vmatpush1.xpose.msra.mxu0 0.0
    %1253 = vmatprep.subr.mxu0 0.0
    %1254 = vmatpush1.xpose.msra.mxu0 0.0
    %1255 = vmatprep.subr.mxu0 0.0
    %1256 = vmatpush1.xpose.msra.mxu0 0.0
    %1257 = vmatprep.subr.mxu0 0.0
    %1258 = vmatpush1.xpose.msra.mxu0 0.0
    %1259 = vmatprep.subr.mxu0 0.0
    %1260 = vmatpush1.xpose.msra.mxu0 %v1227
    %1261 = vmatprep.subr.mxu0 0.0
    %1262 = vmatpush2.xpose.msra.mxu0 0.0
    %1263 = vmatprep.subr.mxu0 0.0
    %1264 = vmatpush2.xpose.msra.mxu0 0.0
    %1265 = vmatprep.subr.mxu0 0.0
    %1266 = vmatpush2.xpose.msra.mxu0 0.0
    %1267 = vmatprep.subr.mxu0 0.0
    %1268 = vmatpush2.xpose.msra.mxu0 0.0
    %1269 = vmatprep.subr.mxu0 0.0
    %1270 = vmatpush2.xpose.msra.mxu0 0.0
    %1271 = vmatprep.subr.mxu0 0.0
    %1272 = vmatpush2.xpose.msra.mxu0 0.0
    %1273 = vmatprep.subr.mxu0 0.0
    %1274 = vmatpush2.xpose.msra.mxu0 0.0
    %1275 = vmatprep.subr.mxu0 0.0
    %1276 = vmatpush2.xpose.msra.mxu0 0.0
    %1277 = vmatprep.subr.mxu0 0.0
    %1278 = vmatpush2.xpose.msra.mxu0 0.0
    %1279 = vmatprep.subr.mxu0 0.0
    %1280 = vmatpush2.xpose.msra.mxu0 0.0
    %1281 = vmatprep.subr.mxu0 0.0
    %1282 = vmatpush2.xpose.msra.mxu0 0.0
    %1283 = vmatprep.subr.mxu0 0.0
    %1284 = vmatpush2.xpose.msra.mxu0 0.0
    %1285 = vmatprep.subr.mxu0 0.0
    %1286 = vmatpush2.xpose.msra.mxu0 0.0
    %1287 = vmatprep.subr.mxu0 0.0
    %1288 = vmatpush2.xpose.msra.mxu0 0.0
    %1289 = vmatprep.subr.mxu0 0.0
    %1290 = vmatpush2.xpose.msra.mxu0 0.0
    %1291 = vmatprep.subr.mxu0 0.0
    %1292 = vmatpush2.xpose.msra.mxu0 0.0
    %1293 = vmatprep.mubr.f32.mxu0 0.0
    %1294 = vmatmul.mubr.f32.gmra.mxu0 %v1225
    %v1295 = vpop.f32.mrf.mxu0
    %v1296 = vadd.f32 0.0, %v1295
    %v1297 = vpop.f32.mrf.mxu0
    %1298 = vdwg.mxu0
    %v1299 = vsel %vm157, %v1218, -inf
    %1300 = vmax.xlane.f32.xlu0 %v1299
    %v1301 = vpop.xlane.xlu0 %1300
    %v1302 = vsel %vm157, %v1296, -inf
    %1303 = vmax.xlane.f32.xlu0 %v1302
    %v1304 = vpop.xlane.xlu0 %1303
    %v1305 = vsub.f32 %v1218, %v1301
    %v1306 = vsub.f32 %v1296, %v1304
    %v1307 = vmul.f32 %v1305, 1.442695
    %v1308 = vpow.pop %v1307
    %v1309 = vmul.f32 %v1306, 1.442695
    %v1310 = vpow.pop %v1309
    %v1311 = vsel %vm157, %v1308, 0.0
    %1312 = vadd.xlane.f32.xlu0 %v1311
    %v1313 = vpop.xlane.xlu0 %1312
    %v1314 = vsel %vm157, %v1310, 0.0
    %1315 = vadd.xlane.f32.xlu0 %v1314
    %v1316 = vpop.xlane.xlu0 %1315
    %v1317 = vrcp.pop %v1313
    %v1318 = vrcp.pop %v1316
    %v1319 = vmul.f32 %v1308, %v1317
    %v1320 = vmul.f32 %v1310, %v1318
    %1321 = vrot.lane.b32.xlu0 %v146, 40
    %v1322 = vpop.permute.xlu0 %1321
    %v1325 = vsel %vm157, %v1319, 0
    %1327 = vmatprep.subr.mxu0 0.0
    %1328 = vmatpush1.msra.mxu0 0.0
    %1329 = vmatprep.subr.mxu0 0.0
    %1330 = vmatpush1.msra.mxu0 0.0
    %1331 = vmatprep.subr.mxu0 0.0
    %1332 = vmatpush1.msra.mxu0 0.0
    %1333 = vmatprep.subr.mxu0 0.0
    %1334 = vmatpush1.msra.mxu0 0.0
    %1335 = vmatprep.subr.mxu0 0.0
    %1336 = vmatpush1.msra.mxu0 0.0
    %1337 = vmatprep.subr.mxu0 0.0
    %1338 = vmatpush1.msra.mxu0 0.0
    %1339 = vmatprep.subr.mxu0 0.0
    %1340 = vmatpush1.msra.mxu0 0.0
    %1341 = vmatprep.subr.mxu0 0.0
    %1342 = vmatpush1.msra.mxu0 0.0
    %1343 = vmatprep.subr.mxu0 0.0
    %1344 = vmatpush1.msra.mxu0 0.0
    %1345 = vmatprep.subr.mxu0 0.0
    %1346 = vmatpush1.msra.mxu0 0.0
    %1347 = vmatprep.subr.mxu0 0.0
    %1348 = vmatpush1.msra.mxu0 0.0
    %1349 = vmatprep.subr.mxu0 0.0
    %1350 = vmatpush1.msra.mxu0 0.0
    %1351 = vmatprep.subr.mxu0 0.0
    %1352 = vmatpush1.msra.mxu0 0.0
    %1353 = vmatprep.subr.mxu0 0.0
    %1354 = vmatpush1.msra.mxu0 0.0
    %1355 = vmatprep.subr.mxu0 0.0
    %1356 = vmatpush1.msra.mxu0 0.0
    %1357 = vmatprep.subr.mxu0 0.0
    %1358 = vmatpush1.msra.mxu0 %v1322
    %1359 = vmatprep.subr.mxu0 0.0
    %1360 = vmatpush2.msra.mxu0 0.0
    %1361 = vmatprep.subr.mxu0 0.0
    %1362 = vmatpush2.msra.mxu0 0.0
    %1363 = vmatprep.subr.mxu0 0.0
    %1364 = vmatpush2.msra.mxu0 0.0
    %1365 = vmatprep.subr.mxu0 0.0
    %1366 = vmatpush2.msra.mxu0 0.0
    %1367 = vmatprep.subr.mxu0 0.0
    %1368 = vmatpush2.msra.mxu0 0.0
    %1369 = vmatprep.subr.mxu0 0.0
    %1370 = vmatpush2.msra.mxu0 0.0
    %1371 = vmatprep.subr.mxu0 0.0
    %1372 = vmatpush2.msra.mxu0 0.0
    %1373 = vmatprep.subr.mxu0 0.0
    %1374 = vmatpush2.msra.mxu0 0.0
    %1375 = vmatprep.subr.mxu0 0.0
    %1376 = vmatpush2.msra.mxu0 0.0
    %1377 = vmatprep.subr.mxu0 0.0
    %1378 = vmatpush2.msra.mxu0 0.0
    %1379 = vmatprep.subr.mxu0 0.0
    %1380 = vmatpush2.msra.mxu0 0.0
    %1381 = vmatprep.subr.mxu0 0.0
    %1382 = vmatpush2.msra.mxu0 0.0
    %1383 = vmatprep.subr.mxu0 0.0
    %1384 = vmatpush2.msra.mxu0 0.0
    %1385 = vmatprep.subr.mxu0 0.0
    %1386 = vmatpush2.msra.mxu0 0.0
    %1387 = vmatprep.subr.mxu0 0.0
    %1388 = vmatpush2.msra.mxu0 0.0
    %1389 = vmatprep.subr.mxu0 0.0
    %1390 = vmatpush2.msra.mxu0 0.0
    %1391 = vmatprep.mubr.f32.mxu0 0.0
    %1392 = vmatmul.mubr.f32.gmra.mxu0 %v1325
    %v1393 = vpop.f32.mrf.mxu0
    %v1394 = vadd.f32 0.0, %v1393
    %v1395 = vpop.f32.mrf.mxu0
    %1396 = vdwg.mxu0
    %1397 = vrot.lane.b32.xlu0 %v151, 40
    %v1398 = vpop.permute.xlu0 %1397
    %v1401 = vsel %vm157, %v1320, 0
    %1403 = vmatprep.subr.mxu0 0.0
    %1404 = vmatpush1.msra.mxu0 0.0
    %1405 = vmatprep.subr.mxu0 0.0
    %1406 = vmatpush1.msra.mxu0 0.0
    %1407 = vmatprep.subr.mxu0 0.0
    %1408 = vmatpush1.msra.mxu0 0.0
    %1409 = vmatprep.subr.mxu0 0.0
    %1410 = vmatpush1.msra.mxu0 0.0
    %1411 = vmatprep.subr.mxu0 0.0
    %1412 = vmatpush1.msra.mxu0 0.0
    %1413 = vmatprep.subr.mxu0 0.0
    %1414 = vmatpush1.msra.mxu0 0.0
    %1415 = vmatprep.subr.mxu0 0.0
    %1416 = vmatpush1.msra.mxu0 0.0
    %1417 = vmatprep.subr.mxu0 0.0
    %1418 = vmatpush1.msra.mxu0 0.0
    %1419 = vmatprep.subr.mxu0 0.0
    %1420 = vmatpush1.msra.mxu0 0.0
    %1421 = vmatprep.subr.mxu0 0.0
    %1422 = vmatpush1.msra.mxu0 0.0
    %1423 = vmatprep.subr.mxu0 0.0
    %1424 = vmatpush1.msra.mxu0 0.0
    %1425 = vmatprep.subr.mxu0 0.0
    %1426 = vmatpush1.msra.mxu0 0.0
    %1427 = vmatprep.subr.mxu0 0.0
    %1428 = vmatpush1.msra.mxu0 0.0
    %1429 = vmatprep.subr.mxu0 0.0
    %1430 = vmatpush1.msra.mxu0 0.0
    %1431 = vmatprep.subr.mxu0 0.0
    %1432 = vmatpush1.msra.mxu0 0.0
    %1433 = vmatprep.subr.mxu0 0.0
    %1434 = vmatpush1.msra.mxu0 %v1398
    %1435 = vmatprep.subr.mxu0 0.0
    %1436 = vmatpush2.msra.mxu0 0.0
    %1437 = vmatprep.subr.mxu0 0.0
    %1438 = vmatpush2.msra.mxu0 0.0
    %1439 = vmatprep.subr.mxu0 0.0
    %1440 = vmatpush2.msra.mxu0 0.0
    %1441 = vmatprep.subr.mxu0 0.0
    %1442 = vmatpush2.msra.mxu0 0.0
    %1443 = vmatprep.subr.mxu0 0.0
    %1444 = vmatpush2.msra.mxu0 0.0
    %1445 = vmatprep.subr.mxu0 0.0
    %1446 = vmatpush2.msra.mxu0 0.0
    %1447 = vmatprep.subr.mxu0 0.0
    %1448 = vmatpush2.msra.mxu0 0.0
    %1449 = vmatprep.subr.mxu0 0.0
    %1450 = vmatpush2.msra.mxu0 0.0
    %1451 = vmatprep.subr.mxu0 0.0
    %1452 = vmatpush2.msra.mxu0 0.0
    %1453 = vmatprep.subr.mxu0 0.0
    %1454 = vmatpush2.msra.mxu0 0.0
    %1455 = vmatprep.subr.mxu0 0.0
    %1456 = vmatpush2.msra.mxu0 0.0
    %1457 = vmatprep.subr.mxu0 0.0
    %1458 = vmatpush2.msra.mxu0 0.0
    %1459 = vmatprep.subr.mxu0 0.0
    %1460 = vmatpush2.msra.mxu0 0.0
    %1461 = vmatprep.subr.mxu0 0.0
    %1462 = vmatpush2.msra.mxu0 0.0
    %1463 = vmatprep.subr.mxu0 0.0
    %1464 = vmatpush2.msra.mxu0 0.0
    %1465 = vmatprep.subr.mxu0 0.0
    %1466 = vmatpush2.msra.mxu0 0.0
    %1467 = vmatprep.mubr.f32.mxu0 0.0
    %1468 = vmatmul.mubr.f32.gmra.mxu0 %v1401
    %v1469 = vpop.f32.mrf.mxu0
    %v1470 = vadd.f32 0.0, %v1469
    %v1471 = vpop.f32.mrf.mxu0
    %1472 = vdwg.mxu0
    %1475 = vrot.lane.b32.xlu0 %v734, 8
    %v1476 = vpop.permute.xlu0 %1475
    %1477 = vrot.lane.b32.xlu0 %v810, 8
    %v1478 = vpop.permute.xlu0 %1477
    %1483 = vrot.lane.b32.xlu0 %v1064, 16
    %v1484 = vpop.permute.xlu0 %1483
    %1485 = vrot.lane.b32.xlu0 %v1140, 16
    %v1486 = vpop.permute.xlu0 %1485
    %1491 = vrot.lane.b32.xlu0 %v1394, 24
    %v1492 = vpop.permute.xlu0 %1491
    %1493 = vrot.lane.b32.xlu0 %v1470, 24
    %v1494 = vpop.permute.xlu0 %1493
    %v1497 = vsel %vm157, %v404, %v1476
    %v1498 = vsel %vm157, %v480, %v1478
    %vm1499 = vcmask 130048
    %v1500 = vsel %vm1499, %v1497, %v1484
    %v1501 = vsel %vm1499, %v1498, %v1486
    %vm1502 = vcmask 195584
    %v1503 = vsel %vm1502, %v1500, %v1492
    %v1504 = vsel %vm1502, %v1501, %v1494
    %v1505 = vld [vmem:[%s3] sm:$0xff]
    %v1506 = vld [vmem:[%s3 + $0x8] sm:$0xff]
    %v1507 = vld [vmem:[%s3 + $0x10] sm:$0xff]
    %v1508 = vld [vmem:[%s3 + $0x18] sm:$0xff]
    %v1509 = vld [vmem:[%s4] sm:$0x1]
    %v1511 = vlaneseq
    %v1512 = vshrl.u32 %v1511, 7
    %v1513 = vsub.s32 0, %v1512
    %v1514 = vrot.slane %v1509, %v1513
    %v1517 = vsel %vm72, %v1503, 0
    %v1520 = vsel %vm72, %v1504, 0
    %1522 = vmatprep.subr.mxu0 0.0
    %1523 = vmatpush1.msra.mxu0 0.0
    %1524 = vmatprep.subr.mxu0 0.0
    %1525 = vmatpush1.msra.mxu0 0.0
    %1526 = vmatprep.subr.mxu0 0.0
    %1527 = vmatpush1.msra.mxu0 0.0
    %1528 = vmatprep.subr.mxu0 0.0
    %1529 = vmatpush1.msra.mxu0 0.0
    %1530 = vmatprep.subr.mxu0 0.0
    %1531 = vmatpush1.msra.mxu0 0.0
    %1532 = vmatprep.subr.mxu0 0.0
    %1533 = vmatpush1.msra.mxu0 0.0
    %1534 = vmatprep.subr.mxu0 0.0
    %1535 = vmatpush1.msra.mxu0 0.0
    %1536 = vmatprep.subr.mxu0 0.0
    %1537 = vmatpush1.msra.mxu0 0.0
    %1538 = vmatprep.subr.mxu0 0.0
    %1539 = vmatpush1.msra.mxu0 0.0
    %1540 = vmatprep.subr.mxu0 0.0
    %1541 = vmatpush1.msra.mxu0 0.0
    %1542 = vmatprep.subr.mxu0 0.0
    %1543 = vmatpush1.msra.mxu0 0.0
    %1544 = vmatprep.subr.mxu0 0.0
    %1545 = vmatpush1.msra.mxu0 0.0
    %1546 = vmatprep.subr.mxu0 0.0
    %1547 = vmatpush1.msra.mxu0 %v1508
    %1548 = vmatprep.subr.mxu0 0.0
    %1549 = vmatpush1.msra.mxu0 %v1507
    %1550 = vmatprep.subr.mxu0 0.0
    %1551 = vmatpush1.msra.mxu0 %v1506
    %1552 = vmatprep.subr.mxu0 0.0
    %1553 = vmatpush1.msra.mxu0 %v1505
    %1554 = vmatprep.subr.mxu0 0.0
    %1555 = vmatpush2.msra.mxu0 0.0
    %1556 = vmatprep.subr.mxu0 0.0
    %1557 = vmatpush2.msra.mxu0 0.0
    %1558 = vmatprep.subr.mxu0 0.0
    %1559 = vmatpush2.msra.mxu0 0.0
    %1560 = vmatprep.subr.mxu0 0.0
    %1561 = vmatpush2.msra.mxu0 0.0
    %1562 = vmatprep.subr.mxu0 0.0
    %1563 = vmatpush2.msra.mxu0 0.0
    %1564 = vmatprep.subr.mxu0 0.0
    %1565 = vmatpush2.msra.mxu0 0.0
    %1566 = vmatprep.subr.mxu0 0.0
    %1567 = vmatpush2.msra.mxu0 0.0
    %1568 = vmatprep.subr.mxu0 0.0
    %1569 = vmatpush2.msra.mxu0 0.0
    %1570 = vmatprep.subr.mxu0 0.0
    %1571 = vmatpush2.msra.mxu0 0.0
    %1572 = vmatprep.subr.mxu0 0.0
    %1573 = vmatpush2.msra.mxu0 0.0
    %1574 = vmatprep.subr.mxu0 0.0
    %1575 = vmatpush2.msra.mxu0 0.0
    %1576 = vmatprep.subr.mxu0 0.0
    %1577 = vmatpush2.msra.mxu0 0.0
    %1578 = vmatprep.subr.mxu0 0.0
    %1579 = vmatpush2.msra.mxu0 0.0
    %1580 = vmatprep.subr.mxu0 0.0
    %1581 = vmatpush2.msra.mxu0 0.0
    %1582 = vmatprep.subr.mxu0 0.0
    %1583 = vmatpush2.msra.mxu0 0.0
    %1584 = vmatprep.subr.mxu0 0.0
    %1585 = vmatpush2.msra.mxu0 0.0
    %1586 = vmatprep.mubr.f32.mxu0 0.0
    %1587 = vmatmul.mubr.f32.gmra.mxu0 %v1517
    %v1588 = vpop.f32.mrf.mxu0
    %v1589 = vadd.f32 %v1514, %v1588
    %v1590 = vpop.f32.mrf.mxu0
    %1591 = vmatprep.mubr.f32.mxu0 0.0
    %1592 = vmatmul.mubr.f32.gmra.mxu0 %v1520
    %v1593 = vpop.f32.mrf.mxu0
    %v1594 = vadd.f32 %v1514, %v1593
    %v1595 = vpop.f32.mrf.mxu0
    %1596 = vdwg.mxu0
    %v1597 = vadd.f32 %v59, %v1589
    %v1598 = vadd.f32 %v60, %v1594
    %v1599 = vsel %vm72, %v1597, 0.0
    %1600 = vadd.xlane.f32.xlu0 %v1599
    %v1601 = vpop.xlane.xlu0 %1600
    %v1602 = vsel %vm72, %v1598, 0.0
    %1603 = vadd.xlane.f32.xlu0 %v1602
    %v1604 = vpop.xlane.xlu0 %1603
    %v1605 = vrcp.pop 32.0
    %v1606 = vmul.f32 %v1601, %v1605
    %v1607 = vmul.f32 %v1604, %v1605
    %v1608 = vsub.f32 %v1597, %v1606
    %v1609 = vsub.f32 %v1598, %v1607
    %v1610 = vmul.f32 %v1608, %v1608
    %v1611 = vmul.f32 %v1609, %v1609
    %v1612 = vsel %vm72, %v1610, 0.0
    %1613 = vadd.xlane.f32.xlu0 %v1612
    %v1614 = vpop.xlane.xlu0 %1613
    %v1615 = vsel %vm72, %v1611, 0.0
    %1616 = vadd.xlane.f32.xlu0 %v1615
    %v1617 = vpop.xlane.xlu0 %1616
    %v1618 = vmul.f32 %v1614, %v1605
    %v1619 = vmul.f32 %v1617, %v1605
    %v1620 = vadd.f32 %v1618, 1e-05
    %v1621 = vadd.f32 %v1619, 1e-05
    %v1622 = vrsqrt.pop %v1620
    %v1623 = vrsqrt.pop %v1621
    %v1624 = vmul.f32 %v1608, %v1622
    %v1625 = vmul.f32 %v1609, %v1623
    %v1626 = vld [vmem:[%s9] sm:$0x1]
    %v1628 = vlaneseq
    %v1629 = vshrl.u32 %v1628, 7
    %v1630 = vsub.s32 0, %v1629
    %v1631 = vrot.slane %v1626, %v1630
    %v1633 = vmul.f32 %v1624, %v1631
    %v1634 = vmul.f32 %v1625, %v1631
    %v1635 = vld [vmem:[%s10] sm:$0x1]
    %v1637 = vlaneseq
    %v1638 = vshrl.u32 %v1637, 7
    %v1639 = vsub.s32 0, %v1638
    %v1640 = vrot.slane %v1635, %v1639
    %v1642 = vadd.f32 %v1633, %v1640
    %v1643 = vadd.f32 %v1634, %v1640
    %v1644 = vld [vmem:[%s5] sm:$0xff]
    %v1645 = vld [vmem:[%s5 + $0x8] sm:$0xff]
    %v1646 = vld [vmem:[%s5 + $0x10] sm:$0xff]
    %v1647 = vld [vmem:[%s5 + $0x18] sm:$0xff]
    %v1648 = vld [vmem:[%s6] sm:$0x1]
    %v1650 = vlaneseq
    %v1651 = vshrl.u32 %v1650, 7
    %v1652 = vsub.s32 0, %v1651
    %v1653 = vrot.slane %v1648, %v1652
    %v1656 = vsel %vm72, %v1642, 0
    %v1659 = vsel %vm72, %v1643, 0
    %1661 = vmatprep.subr.mxu0 0.0
    %1662 = vmatpush1.msra.mxu0 0.0
    %1663 = vmatprep.subr.mxu0 0.0
    %1664 = vmatpush1.msra.mxu0 0.0
    %1665 = vmatprep.subr.mxu0 0.0
    %1666 = vmatpush1.msra.mxu0 0.0
    %1667 = vmatprep.subr.mxu0 0.0
    %1668 = vmatpush1.msra.mxu0 0.0
    %1669 = vmatprep.subr.mxu0 0.0
    %1670 = vmatpush1.msra.mxu0 0.0
    %1671 = vmatprep.subr.mxu0 0.0
    %1672 = vmatpush1.msra.mxu0 0.0
    %1673 = vmatprep.subr.mxu0 0.0
    %1674 = vmatpush1.msra.mxu0 0.0
    %1675 = vmatprep.subr.mxu0 0.0
    %1676 = vmatpush1.msra.mxu0 0.0
    %1677 = vmatprep.subr.mxu0 0.0
    %1678 = vmatpush1.msra.mxu0 0.0
    %1679 = vmatprep.subr.mxu0 0.0
    %1680 = vmatpush1.msra.mxu0 0.0
    %1681 = vmatprep.subr.mxu0 0.0
    %1682 = vmatpush1.msra.mxu0 0.0
    %1683 = vmatprep.subr.mxu0 0.0
    %1684 = vmatpush1.msra.mxu0 0.0
    %1685 = vmatprep.subr.mxu0 0.0
    %1686 = vmatpush1.msra.mxu0 %v1647
    %1687 = vmatprep.subr.mxu0 0.0
    %1688 = vmatpush1.msra.mxu0 %v1646
    %1689 = vmatprep.subr.mxu0 0.0
    %1690 = vmatpush1.msra.mxu0 %v1645
    %1691 = vmatprep.subr.mxu0 0.0
    %1692 = vmatpush1.msra.mxu0 %v1644
    %1693 = vmatprep.subr.mxu0 0.0
    %1694 = vmatpush2.msra.mxu0 0.0
    %1695 = vmatprep.subr.mxu0 0.0
    %1696 = vmatpush2.msra.mxu0 0.0
    %1697 = vmatprep.subr.mxu0 0.0
    %1698 = vmatpush2.msra.mxu0 0.0
    %1699 = vmatprep.subr.mxu0 0.0
    %1700 = vmatpush2.msra.mxu0 0.0
    %1701 = vmatprep.subr.mxu0 0.0
    %1702 = vmatpush2.msra.mxu0 0.0
    %1703 = vmatprep.subr.mxu0 0.0
    %1704 = vmatpush2.msra.mxu0 0.0
    %1705 = vmatprep.subr.mxu0 0.0
    %1706 = vmatpush2.msra.mxu0 0.0
    %1707 = vmatprep.subr.mxu0 0.0
    %1708 = vmatpush2.msra.mxu0 0.0
    %1709 = vmatprep.subr.mxu0 0.0
    %1710 = vmatpush2.msra.mxu0 0.0
    %1711 = vmatprep.subr.mxu0 0.0
    %1712 = vmatpush2.msra.mxu0 0.0
    %1713 = vmatprep.subr.mxu0 0.0
    %1714 = vmatpush2.msra.mxu0 0.0
    %1715 = vmatprep.subr.mxu0 0.0
    %1716 = vmatpush2.msra.mxu0 0.0
    %1717 = vmatprep.subr.mxu0 0.0
    %1718 = vmatpush2.msra.mxu0 0.0
    %1719 = vmatprep.subr.mxu0 0.0
    %1720 = vmatpush2.msra.mxu0 0.0
    %1721 = vmatprep.subr.mxu0 0.0
    %1722 = vmatpush2.msra.mxu0 0.0
    %1723 = vmatprep.subr.mxu0 0.0
    %1724 = vmatpush2.msra.mxu0 0.0
    %1725 = vmatprep.mubr.f32.mxu0 0.0
    %1726 = vmatmul.mubr.f32.gmra.mxu0 %v1656
    %v1727 = vpop.f32.mrf.mxu0
    %v1728 = vadd.f32 %v1653, %v1727
    %v1729 = vpop.f32.mrf.mxu0
    %1730 = vmatprep.mubr.f32.mxu0 0.0
    %1731 = vmatmul.mubr.f32.gmra.mxu0 %v1659
    %v1732 = vpop.f32.mrf.mxu0
    %v1733 = vadd.f32 %v1653, %v1732
    %v1734 = vpop.f32.mrf.mxu0
    %1735 = vdwg.mxu0
    %v1736 = vmax.f32 %v1728, 0.0
    %v1737 = vmax.f32 %v1733, 0.0
    %v1738 = vld [vmem:[%s7] sm:$0xff]
    %v1739 = vld [vmem:[%s7 + $0x8] sm:$0xff]
    %v1740 = vld [vmem:[%s7 + $0x10] sm:$0xff]
    %v1741 = vld [vmem:[%s7 + $0x18] sm:$0xff]
    %v1742 = vld [vmem:[%s7 + $0x20] sm:$0xff]
    %v1743 = vld [vmem:[%s7 + $0x28] sm:$0xff]
    %v1744 = vld [vmem:[%s7 + $0x30] sm:$0xff]
    %v1745 = vld [vmem:[%s7 + $0x38] sm:$0xff]
    %v1746 = vld [vmem:[%s8] sm:$0x1]
    %v1748 = vlaneseq
    %v1749 = vshrl.u32 %v1748, 7
    %v1750 = vsub.s32 0, %v1749
    %v1751 = vrot.slane %v1746, %v1750
    %vm1753 = vcmask 523264
    %v1755 = vsel %vm1753, %v1736, 0
    %v1758 = vsel %vm1753, %v1737, 0
    %1760 = vmatprep.subr.mxu0 0.0
    %1761 = vmatpush1.msra.mxu0 0.0
    %1762 = vmatprep.subr.mxu0 0.0
    %1763 = vmatpush1.msra.mxu0 0.0
    %1764 = vmatprep.subr.mxu0 0.0
    %1765 = vmatpush1.msra.mxu0 0.0
    %1766 = vmatprep.subr.mxu0 0.0
    %1767 = vmatpush1.msra.mxu0 0.0
    %1768 = vmatprep.subr.mxu0 0.0
    %1769 = vmatpush1.msra.mxu0 0.0
    %1770 = vmatprep.subr.mxu0 0.0
    %1771 = vmatpush1.msra.mxu0 0.0
    %1772 = vmatprep.subr.mxu0 0.0
    %1773 = vmatpush1.msra.mxu0 0.0
    %1774 = vmatprep.subr.mxu0 0.0
    %1775 = vmatpush1.msra.mxu0 0.0
    %1776 = vmatprep.subr.mxu0 0.0
    %1777 = vmatpush1.msra.mxu0 %v1745
    %1778 = vmatprep.subr.mxu0 0.0
    %1779 = vmatpush1.msra.mxu0 %v1744
    %1780 = vmatprep.subr.mxu0 0.0
    %1781 = vmatpush1.msra.mxu0 %v1743
    %1782 = vmatprep.subr.mxu0 0.0
    %1783 = vmatpush1.msra.mxu0 %v1742
    %1784 = vmatprep.subr.mxu0 0.0
    %1785 = vmatpush1.msra.mxu0 %v1741
    %1786 = vmatprep.subr.mxu0 0.0
    %1787 = vmatpush1.msra.mxu0 %v1740
    %1788 = vmatprep.subr.mxu0 0.0
    %1789 = vmatpush1.msra.mxu0 %v1739
    %1790 = vmatprep.subr.mxu0 0.0
    %1791 = vmatpush1.msra.mxu0 %v1738
    %1792 = vmatprep.subr.mxu0 0.0
    %1793 = vmatpush2.msra.mxu0 0.0
    %1794 = vmatprep.subr.mxu0 0.0
    %1795 = vmatpush2.msra.mxu0 0.0
    %1796 = vmatprep.subr.mxu0 0.0
    %1797 = vmatpush2.msra.mxu0 0.0
    %1798 = vmatprep.subr.mxu0 0.0
    %1799 = vmatpush2.msra.mxu0 0.0
    %1800 = vmatprep.subr.mxu0 0.0
    %1801 = vmatpush2.msra.mxu0 0.0
    %1802 = vmatprep.subr.mxu0 0.0
    %1803 = vmatpush2.msra.mxu0 0.0
    %1804 = vmatprep.subr.mxu0 0.0
    %1805 = vmatpush2.msra.mxu0 0.0
    %1806 = vmatprep.subr.mxu0 0.0
    %1807 = vmatpush2.msra.mxu0 0.0
    %1808 = vmatprep.subr.mxu0 0.0
    %1809 = vmatpush2.msra.mxu0 0.0
    %1810 = vmatprep.subr.mxu0 0.0
    %1811 = vmatpush2.msra.mxu0 0.0
    %1812 = vmatprep.subr.mxu0 0.0
    %1813 = vmatpush2.msra.mxu0 0.0
    %1814 = vmatprep.subr.mxu0 0.0
    %1815 = vmatpush2.msra.mxu0 0.0
    %1816 = vmatprep.subr.mxu0 0.0
    %1817 = vmatpush2.msra.mxu0 0.0
    %1818 = vmatprep.subr.mxu0 0.0
    %1819 = vmatpush2.msra.mxu0 0.0
    %1820 = vmatprep.subr.mxu0 0.0
    %1821 = vmatpush2.msra.mxu0 0.0
    %1822 = vmatprep.subr.mxu0 0.0
    %1823 = vmatpush2.msra.mxu0 0.0
    %1824 = vmatprep.mubr.f32.mxu0 0.0
    %1825 = vmatmul.mubr.f32.gmra.mxu0 %v1755
    %v1826 = vpop.f32.mrf.mxu0
    %v1827 = vadd.f32 %v1751, %v1826
    %v1828 = vpop.f32.mrf.mxu0
    %1829 = vmatprep.mubr.f32.mxu0 0.0
    %1830 = vmatmul.mubr.f32.gmra.mxu0 %v1758
    %v1831 = vpop.f32.mrf.mxu0
    %v1832 = vadd.f32 %v1751, %v1831
    %v1833 = vpop.f32.mrf.mxu0
    %1834 = vdwg.mxu0
    %v1835 = vadd.f32 %v1642, %v1827
    %v1836 = vadd.f32 %v1643, %v1832
    %v1837 = vsel %vm72, %v1835, 0.0
    %1838 = vadd.xlane.f32.xlu0 %v1837
    %v1839 = vpop.xlane.xlu0 %1838
    %v1840 = vsel %vm72, %v1836, 0.0
    %1841 = vadd.xlane.f32.xlu0 %v1840
    %v1842 = vpop.xlane.xlu0 %1841
    %v1843 = vmul.f32 %v1839, %v1605
    %v1844 = vmul.f32 %v1842, %v1605
    %v1845 = vsub.f32 %v1835, %v1843
    %v1846 = vsub.f32 %v1836, %v1844
    %v1847 = vmul.f32 %v1845, %v1845
    %v1848 = vmul.f32 %v1846, %v1846
    %v1849 = vsel %vm72, %v1847, 0.0
    %1850 = vadd.xlane.f32.xlu0 %v1849
    %v1851 = vpop.xlane.xlu0 %1850
    %v1852 = vsel %vm72, %v1848, 0.0
    %1853 = vadd.xlane.f32.xlu0 %v1852
    %v1854 = vpop.xlane.xlu0 %1853
    %v1855 = vmul.f32 %v1851, %v1605
    %v1856 = vmul.f32 %v1854, %v1605
    %v1857 = vadd.f32 %v1855, 1e-05
    %v1858 = vadd.f32 %v1856, 1e-05
    %v1859 = vrsqrt.pop %v1857
    %v1860 = vrsqrt.pop %v1858
    %v1861 = vmul.f32 %v1845, %v1859
    %v1862 = vmul.f32 %v1846, %v1860
    %v1863 = vld [vmem:[%s11] sm:$0x1]
    %v1865 = vlaneseq
    %v1866 = vshrl.u32 %v1865, 7
    %v1867 = vsub.s32 0, %v1866
    %v1868 = vrot.slane %v1863, %v1867
    %v1870 = vmul.f32 %v1861, %v1868
    %v1871 = vmul.f32 %v1862, %v1868
    %v1872 = vld [vmem:[%s12] sm:$0x1]
    %v1874 = vlaneseq
    %v1875 = vshrl.u32 %v1874, 7
    %v1876 = vsub.s32 0, %v1875
    %v1877 = vrot.slane %v1872, %v1876
    %v1879 = vadd.f32 %v1870, %v1877
    %v1880 = vadd.f32 %v1871, %v1877
    %1881 = vst.msk [vmem:[#allocation5] sm:$0xff] %vm72, %v1879
    %1882 = vst.msk [vmem:[#allocation5 + $0x8] sm:$0xff] %vm72, %v1880
    // Predicated region
    $region58: #{tpu_custom_call.1} parent=1 // pred_check
      _
    $region59: #{tpu_custom_call.1} parent=1 // pred_check_branch
      %1884 = sbr.rel (0) target = $region61
    $region60: #{tpu_custom_call.1} parent=1 // pred_region
      %s1886 = ssub.s32 256, 256
      %1887 = vsyncadd [#allocation4], %s1886
      %s1888 = sshll.u32 [#allocation5], 4
      %s1889 = int_to_ptr.vmem [resolvable:$true] %s1888
      %1894 = dma.vmem_to_hbm [thread:$0]  %s1889, 256, %s13, [#allocation4], 128, 128, 8
    $region61: #{tpu_custom_call.1} parent=1 // pred_fallthru
      _
    // Predicated region
    $region62: #{tpu_custom_call.1} parent=1 // pred_check
      _
    $region63: #{tpu_custom_call.1} parent=1 // pred_check_branch
      %1896 = sbr.rel (0) target = $region65
    $region64: #{tpu_custom_call.1} parent=1 // pred_region
      %1897 = dma.done [#allocation4], 256
    $region65: #{tpu_custom_call.1} parent=1 // pred_fallthru
      _
    %1898 = vsyncpa [#allocation3], 1
    %1899 = vsyncpa [#allocation4], 1

// kernel: tpu_custom_call.1
$region0: #{tpu_custom_call.1}
  #allocation0 [shape = 'u32[]', space=smem, size = 0x4, offset = 0x4, fixed_abs, tag = 'smem constant byte address 0x4 - core index']
  #allocation1 [shape = 'u32[144,128]{1,0:T(1,128)}', space=vmem, size = 0x12000, scoped, tag = 'internal scratch']
  %s0 = inlined_call_operand.hbm [shape: f32[2,8,32], index: 0, kind: input, shape index: {}]
  %s1 = inlined_call_operand.vmem [shape: f32[32,96], index: 1, kind: input, shape index: {}]
  %s2 = inlined_call_operand.vmem [shape: f32[1,96], index: 2, kind: input, shape index: {}]
  %s3 = inlined_call_operand.vmem [shape: f32[32,32], index: 3, kind: input, shape index: {}]
  %s4 = inlined_call_operand.vmem [shape: f32[1,32], index: 4, kind: input, shape index: {}]
  %s5 = inlined_call_operand.vmem [shape: f32[32,64], index: 5, kind: input, shape index: {}]
  %s6 = inlined_call_operand.vmem [shape: f32[1,64], index: 6, kind: input, shape index: {}]
  %s7 = inlined_call_operand.vmem [shape: f32[64,32], index: 7, kind: input, shape index: {}]
  %s8 = inlined_call_operand.vmem [shape: f32[1,32], index: 8, kind: input, shape index: {}]
  %s9 = inlined_call_operand.vmem [shape: f32[1,32], index: 9, kind: input, shape index: {}]
  %s10 = inlined_call_operand.vmem [shape: f32[1,32], index: 10, kind: input, shape index: {}]
  %s11 = inlined_call_operand.vmem [shape: f32[1,32], index: 11, kind: input, shape index: {}]
  %s12 = inlined_call_operand.vmem [shape: f32[1,32], index: 12, kind: input, shape index: {}]
  %s13 = inlined_call_operand.hbm [shape: f32[2,8,32], index: 13, kind: output, shape index: {}]
  %s14 = sld [smem:[#allocation0]]
  $region66: #{tpu_custom_call.1} parent=0
    _
  %s16 = ssub.s32 1, %s14
  %s17 = scalar_select 0, %s16, %s14
  $region1: #{tpu_custom_call.1} parent=0
    #allocation2 [shape = 'u8[8192]{0}', space=vmem, size = 0x2000, scoped, tag = 'input window, operand 0, single buffered']
    #allocation3 [shape = 's32[1]{0}', space=sflag, size = 0x4, scoped, tag = 'scoped memory for tpu_custom_call.1']
    #allocation4 [shape = 's32[1]{0}', space=sflag, size = 0x4, scoped, tag = 'scoped memory for tpu_custom_call.1']
    #allocation5 [shape = 'u8[8192]{0}', space=vmem, size = 0x2000, scoped, tag = 'output window, operand 0, single buffered']
    %18 = vsyncpa [#allocation3], 0
    %19 = vsyncpa [#allocation4], 0
    // Predicated region
    $region2: #{tpu_custom_call.1} parent=1 // pred_check
      _
    $region3: #{tpu_custom_call.1} parent=1 // pred_check_branch
      %21 = sbr.rel (0) target = $region5
    $region4: #{tpu_custom_call.1} parent=1 // pred_region
      %s23 = ssub.s32 256, 256
      %24 = vsyncadd [#allocation3], %s23
      %s25 = sshll.u32 [#allocation2], 4
      %s26 = int_to_ptr.vmem [resolvable:$true] %s25
      %31 = dma.hbm_to_vmem [thread:$0]  %s0, 256, %s26, [#allocation3], 128, 128, 8
    $region5: #{tpu_custom_call.1} parent=1 // pred_fallthru
      _
    // Predicated region
    $region6: #{tpu_custom_call.1} parent=1 // pred_check
      _
    $region7: #{tpu_custom_call.1} parent=1 // pred_check_branch
      %33 = sbr.rel (0) target = $region9
    $region8: #{tpu_custom_call.1} parent=1 // pred_region
      _
    $region9: #{tpu_custom_call.1} parent=1 // pred_fallthru
      _
    // Predicated region
    $region10: #{tpu_custom_call.1} parent=1 // pred_check
      _
    $region11: #{tpu_custom_call.1} parent=1 // pred_check_branch
      %35 = sbr.rel (0) target = $region13
    $region12: #{tpu_custom_call.1} parent=1 // pred_region
      _
    $region13: #{tpu_custom_call.1} parent=1 // pred_fallthru
      _
    // Predicated region
    $region14: #{tpu_custom_call.1} parent=1 // pred_check
      _
    $region15: #{tpu_custom_call.1} parent=1 // pred_check_branch
      %37 = sbr.rel (0) target = $region17
    $region16: #{tpu_custom_call.1} parent=1 // pred_region
      _
    $region17: #{tpu_custom_call.1} parent=1 // pred_fallthru
      _
    // Predicated region
    $region18: #{tpu_custom_call.1} parent=1 // pred_check
      _
    $region19: #{tpu_custom_call.1} parent=1 // pred_check_branch
      %39 = sbr.rel (0) target = $region21
    $region20: #{tpu_custom_call.1} parent=1 // pred_region
      _
    $region21: #{tpu_custom_call.1} parent=1 // pred_fallthru
      _
    // Predicated region
    $region22: #{tpu_custom_call.1} parent=1 // pred_check
      _
    $region23: #{tpu_custom_call.1} parent=1 // pred_check_branch
      %41 = sbr.rel (0) target = $region25
    $region24: #{tpu_custom_call.1} parent=1 // pred_region
      _
    $region25: #{tpu_custom_call.1} parent=1 // pred_fallthru
      _
    // Predicated region
    $region26: #{tpu_custom_call.1} parent=1 // pred_check
      _
    $region27: #{tpu_custom_call.1} parent=1 // pred_check_branch
      %43 = sbr.rel (0) target = $region29
    $region28: #{tpu_custom_call.1} parent=1 // pred_region
      _
    $region29: #{tpu_custom_call.1} parent=1 // pred_fallthru
      _
    // Predicated region
    $region30: #{tpu_custom_call.1} parent=1 // pred_check
      _
    $region31: #{tpu_custom_call.1} parent=1 // pred_check_branch
      %45 = sbr.rel (0) target = $region33
    $region32: #{tpu_custom_call.1} parent=1 // pred_region
      _
    $region33: #{tpu_custom_call.1} parent=1 // pred_fallthru
      _
    // Predicated region
    $region34: #{tpu_custom_call.1} parent=1 // pred_check
      _
    $region35: #{tpu_custom_call.1} parent=1 // pred_check_branch
      %47 = sbr.rel (0) target = $region37
    $region36: #{tpu_custom_call.1} parent=1 // pred_region
      _
    $region37: #{tpu_custom_call.1} parent=1 // pred_fallthru
      _
    // Predicated region
    $region38: #{tpu_custom_call.1} parent=1 // pred_check
      _
    $region39: #{tpu_custom_call.1} parent=1 // pred_check_branch
      %49 = sbr.rel (0) target = $region41
    $region40: #{tpu_custom_call.1} parent=1 // pred_region
      _
    $region41: #{tpu_custom_call.1} parent=1 // pred_fallthru
      _
    // Predicated region
    $region42: #{tpu_custom_call.1} parent=1 // pred_check
      _
    $region43: #{tpu_custom_call.1} parent=1 // pred_check_branch
      %51 = sbr.rel (0) target = $region45
    $region44: #{tpu_custom_call.1} parent=1 // pred_region
      _
    $region45: #{tpu_custom_call.1} parent=1 // pred_fallthru
      _
    // Predicated region
    $region46: #{tpu_custom_call.1} parent=1 // pred_check
      _
    $region47: #{tpu_custom_call.1} parent=1 // pred_check_branch
      %53 = sbr.rel (0) target = $region49
    $region48: #{tpu_custom_call.1} parent=1 // pred_region
      _
    $region49: #{tpu_custom_call.1} parent=1 // pred_fallthru
      _
    // Predicated region
    $region50: #{tpu_custom_call.1} parent=1 // pred_check
      _
    $region51: #{tpu_custom_call.1} parent=1 // pred_check_branch
      %55 = sbr.rel (0) target = $region53
    $region52: #{tpu_custom_call.1} parent=1 // pred_region
      _
    $region53: #{tpu_custom_call.1} parent=1 // pred_fallthru
      _
    // Predicated region
    $region54: #{tpu_custom_call.1} parent=1 // pred_check
      _
    $region55: #{tpu_custom_call.1} parent=1 // pred_check_branch
      %57 = sbr.rel (0) target = $region57
    $region56: #{tpu_custom_call.1} parent=1 // pred_region
      %58 = dma.done [#allocation3], 256
    $region57: #{tpu_custom_call.1} parent=1 // pred_fallthru
      _
    %v59 = vld [vmem:[#allocation2] sm:$0xff]
    %v60 = vld [vmem:[#allocation2 + $0x8] sm:$0xff]
    %v61 = vld [vmem:[%s1] sm:$0xff]
    %v62 = vld [vmem:[%s1 + $0x8] sm:$0xff]
    %v63 = vld [vmem:[%s1 + $0x10] sm:$0xff]
    %v64 = vld [vmem:[%s1 + $0x18] sm:$0xff]
    %v65 = vld [vmem:[%s2] sm:$0x1]
    %v67 = vlaneseq
    %v68 = vshrl.u32 %v67, 7
    %v69 = vsub.s32 0, %v68
    %v70 = vrot.slane %v65, %v69
    %vm72 = vcmask 261120
    %v74 = vsel %vm72, %v59, 0
    %v77 = vsel %vm72, %v60, 0
    %79 = vmatprep.subr.mxu0 0.0
    %80 = vmatpush1.msra.mxu0 0.0
    %81 = vmatprep.subr.mxu0 0.0
    %82 = vmatpush1.msra.mxu0 0.0
    %83 = vmatprep.subr.mxu0 0.0
    %84 = vmatpush1.msra.mxu0 0.0
    %85 = vmatprep.subr.mxu0 0.0
    %86 = vmatpush1.msra.mxu0 0.0
    %87 = vmatprep.subr.mxu0 0.0
    %88 = vmatpush1.msra.mxu0 0.0
    %89 = vmatprep.subr.mxu0 0.0
    %90 = vmatpush1.msra.mxu0 0.0
    %91 = vmatprep.subr.mxu0 0.0
    %92 = vmatpush1.msra.mxu0 0.0
    %93 = vmatprep.subr.mxu0 0.0
    %94 = vmatpush1.msra.mxu0 0.0
    %95 = vmatprep.subr.mxu0 0.0
    %96 = vmatpush1.msra.mxu0 0.0
    %97 = vmatprep.subr.mxu0 0.0
    %98 = vmatpush1.msra.mxu0 0.0
    %99 = vmatprep.subr.mxu0 0.0
    %100 = vmatpush1.msra.mxu0 0.0
    %101 = vmatprep.subr.mxu0 0.0
    %102 = vmatpush1.msra.mxu0 0.0
    %103 = vmatprep.subr.mxu0 0.0
    %104 = vmatpush1.msra.mxu0 %v64
    %105 = vmatprep.subr.mxu0 0.0
    %106 = vmatpush1.msra.mxu0 %v63
    %107 = vmatprep.subr.mxu0 0.0
    %108 = vmatpush1.msra.mxu0 %v62
    %109 = vmatprep.subr.mxu0 0.0
    %110 = vmatpush1.msra.mxu0 %v61
    %111 = vmatprep.subr.mxu0 0.0
    %112 = vmatpush2.msra.mxu0 0.0
    %113 = vmatprep.subr.mxu0 0.0
    %114 = vmatpush2.msra.mxu0 0.0
    %115 = vmatprep.subr.mxu0 0.0
    %116 = vmatpush2.msra.mxu0 0.0
    %117 = vmatprep.subr.mxu0 0.0
    %118 = vmatpush2.msra.mxu0 0.0
    %119 = vmatprep.subr.mxu0 0.0
    %120 = vmatpush2.msra.mxu0 0.0
    %121 = vmatprep.subr.mxu0 0.0
    %122 = vmatpush2.msra.mxu0 0.0
    %123 = vmatprep.subr.mxu0 0.0
    %124 = vmatpush2.msra.mxu0 0.0
    %125 = vmatprep.subr.mxu0 0.0
    %126 = vmatpush2.msra.mxu0 0.0
    %127 = vmatprep.subr.mxu0 0.0
    %128 = vmatpush2.msra.mxu0 0.0
    %129 = vmatprep.subr.mxu0 0.0
    %130 = vmatpush2.msra.mxu0 0.0
    %131 = vmatprep.subr.mxu0 0.0
    %132 = vmatpush2.msra.mxu0 0.0
    %133 = vmatprep.subr.mxu0 0.0
    %134 = vmatpush2.msra.mxu0 0.0
    %135 = vmatprep.subr.mxu0 0.0
    %136 = vmatpush2.msra.mxu0 0.0
    %137 = vmatprep.subr.mxu0 0.0
    %138 = vmatpush2.msra.mxu0 0.0
    %139 = vmatprep.subr.mxu0 0.0
    %140 = vmatpush2.msra.mxu0 0.0
    %141 = vmatprep.subr.mxu0 0.0
    %142 = vmatpush2.msra.mxu0 0.0
    %143 = vmatprep.mubr.f32.mxu0 0.0
    %144 = vmatmul.mubr.f32.gmra.mxu0 %v74
    %v145 = vpop.f32.mrf.mxu0
    %v146 = vadd.f32 %v70, %v145
    %v147 = vpop.f32.mrf.mxu0
    %148 = vmatprep.mubr.f32.mxu0 0.0
    %149 = vmatmul.mubr.f32.gmra.mxu0 %v77
    %v150 = vpop.f32.mrf.mxu0
    %v151 = vadd.f32 %v70, %v150
    %v152 = vpop.f32.mrf.mxu0
    %153 = vdwg.mxu0
    %155 = vrot.lane.b32.xlu0 %v146, 96
    %v156 = vpop.permute.xlu0 %155
    %vm157 = vcmask 64512
    %v158 = vsel %vm157, %v146, 0
    %v160 = vsel %vm157, %v156, 0
    %162 = vmatprep.subr.mxu0 0.0
    %163 = vmatpush1.xpose.msra.mxu0 0.0
    %164 = vmatprep.subr.mxu0 0.0
    %165 = vmatpush1.xpose.msra.mxu0 0.0
    %166 = vmatprep.subr.mxu0 0.0
    %167 = vmatpush1.xpose.msra.mxu0 0.0
    %168 = vmatprep.subr.mxu0 0.0
    %169 = vmatpush1.xpose.msra.mxu0 0.0
    %170 = vmatprep.subr.mxu0 0.0
    %171 = vmatpush1.xpose.msra.mxu0 0.0
    %172 = vmatprep.subr.mxu0 0.0
    %173 = vmatpush1.xpose.msra.mxu0 0.0
    %174 = vmatprep.subr.mxu0 0.0
    %175 = vmatpush1.xpose.msra.mxu0 0.0
    %176 = vmatprep.subr.mxu0 0.0
    %177 = vmatpush1.xpose.msra.mxu0 0.0
    %178 = vmatprep.subr.mxu0 0.0
    %179 = vmatpush1.xpose.msra.mxu0 0.0
    %180 = vmatprep.subr.mxu0 0.0
    %181 = vmatpush1.xpose.msra.mxu0 0.0
    %182 = vmatprep.subr.mxu0 0.0
    %183 = vmatpush1.xpose.msra.mxu0 0.0
    %184 = vmatprep.subr.mxu0 0.0
    %185 = vmatpush1.xpose.msra.mxu0 0.0
    %186 = vmatprep.subr.mxu0 0.0
    %187 = vmatpush1.xpose.msra.mxu0 0.0
    %188 = vmatprep.subr.mxu0 0.0
    %189 = vmatpush1.xpose.msra.mxu0 0.0
    %190 = vmatprep.subr.mxu0 0.0
    %191 = vmatpush1.xpose.msra.mxu0 0.0
    %192 = vmatprep.subr.mxu0 0.0
    %193 = vmatpush1.xpose.msra.mxu0 %v160
    %194 = vmatprep.subr.mxu0 0.0
    %195 = vmatpush2.xpose.msra.mxu0 0.0
    %196 = vmatprep.subr.mxu0 0.0
    %197 = vmatpush2.xpose.msra.mxu0 0.0
    %198 = vmatprep.subr.mxu0 0.0
    %199 = vmatpush2.xpose.msra.mxu0 0.0
    %200 = vmatprep.subr.mxu0 0.0
    %201 = vmatpush2.xpose.msra.mxu0 0.0
    %202 = vmatprep.subr.mxu0 0.0
    %203 = vmatpush2.xpose.msra.mxu0 0.0
    %204 = vmatprep.subr.mxu0 0.0
    %205 = vmatpush2.xpose.msra.mxu0 0.0
    %206 = vmatprep.subr.mxu0 0.0
    %207 = vmatpush2.xpose.msra.mxu0 0.0
    %208 = vmatprep.subr.mxu0 0.0
    %209 = vmatpush2.xpose.msra.mxu0 0.0
    %210 = vmatprep.subr.mxu0 0.0
    %211 = vmatpush2.xpose.msra.mxu0 0.0
    %212 = vmatprep.subr.mxu0 0.0
    %213 = vmatpush2.xpose.msra.mxu0 0.0
    %214 = vmatprep.subr.mxu0 0.0
    %215 = vmatpush2.xpose.msra.mxu0 0.0
    %216 = vmatprep.subr.mxu0 0.0
    %217 = vmatpush2.xpose.msra.mxu0 0.0
    %218 = vmatprep.subr.mxu0 0.0
    %219 = vmatpush2.xpose.msra.mxu0 0.0
    %220 = vmatprep.subr.mxu0 0.0
    %221 = vmatpush2.xpose.msra.mxu0 0.0
    %222 = vmatprep.subr.mxu0 0.0
    %223 = vmatpush2.xpose.msra.mxu0 0.0
    %224 = vmatprep.subr.mxu0 0.0
    %225 = vmatpush2.xpose.msra.mxu0 0.0
    %226 = vmatprep.mubr.f32.mxu0 0.0
    %227 = vmatmul.mubr.f32.gmra.mxu0 %v158
    %v228 = vpop.f32.mrf.mxu0
    %v229 = vadd.f32 0.0, %v228
    %v230 = vpop.f32.mrf.mxu0
    %231 = vdwg.mxu0
    %233 = vrot.lane.b32.xlu0 %v151, 96
    %v234 = vpop.permute.xlu0 %233
    %v235 = vsel %vm157, %v151, 0
    %v237 = vsel %vm157, %v234, 0
    %239 = vmatprep.subr.mxu0 0.0
    %240 = vmatpush1.xpose.msra.mxu0 0.0
    %241 = vmatprep.subr.mxu0 0.0
    %242 = vmatpush1.xpose.msra.mxu0 0.0
    %243 = vmatprep.subr.mxu0 0.0
    %244 = vmatpush1.xpose.msra.mxu0 0.0
    %245 = vmatprep.subr.mxu0 0.0
    %246 = vmatpush1.xpose.msra.mxu0 0.0
    %247 = vmatprep.subr.mxu0 0.0
    %248 = vmatpush1.xpose.msra.mxu0 0.0
    %249 = vmatprep.subr.mxu0 0.0
    %250 = vmatpush1.xpose.msra.mxu0 0.0
    %251 = vmatprep.subr.mxu0 0.0
    %252 = vmatpush1.xpose.msra.mxu0 0.0
    %253 = vmatprep.subr.mxu0 0.0
    %254 = vmatpush1.xpose.msra.mxu0 0.0
    %255 = vmatprep.subr.mxu0 0.0
    %256 = vmatpush1.xpose.msra.mxu0 0.0
    %257 = vmatprep.subr.mxu0 0.0
    %258 = vmatpush1.xpose.msra.mxu0 0.0
    %259 = vmatprep.subr.mxu0 0.0
    %260 = vmatpush1.xpose.msra.mxu0 0.0
    %261 = vmatprep.subr.mxu0 0.0
    %262 = vmatpush1.xpose.msra.mxu0 0.0
    %263 = vmatprep.subr.mxu0 0.0
    %264 = vmatpush1.xpose.msra.mxu0 0.0
    %265 = vmatprep.subr.mxu0 0.0
    %266 = vmatpush1.xpose.msra.mxu0 0.0
    %267 = vmatprep.subr.mxu0 0.0
    %268 = vmatpush1.xpose.msra.mxu0 0.0
    %269 = vmatprep.subr.mxu0 0.0
    %270 = vmatpush1.xpose.msra.mxu0 %v237
    %271 = vmatprep.subr.mxu0 0.0
    %272 = vmatpush2.xpose.msra.mxu0 0.0
    %273 = vmatprep.subr.mxu0 0.0
    %274 = vmatpush2.xpose.msra.mxu0 0.0
    %275 = vmatprep.subr.mxu0 0.0
    %276 = vmatpush2.xpose.msra.mxu0 0.0
    %277 = vmatprep.subr.mxu0 0.0
    %278 = vmatpush2.xpose.msra.mxu0 0.0
    %279 = vmatprep.subr.mxu0 0.0
    %280 = vmatpush2.xpose.msra.mxu0 0.0
    %281 = vmatprep.subr.mxu0 0.0
    %282 = vmatpush2.xpose.msra.mxu0 0.0
    %283 = vmatprep.subr.mxu0 0.0
    %284 = vmatpush2.xpose.msra.mxu0 0.0
    %285 = vmatprep.subr.mxu0 0.0
    %286 = vmatpush2.xpose.msra.mxu0 0.0
    %287 = vmatprep.subr.mxu0 0.0
    %288 = vmatpush2.xpose.msra.mxu0 0.0
    %289 = vmatprep.subr.mxu0 0.0
    %290 = vmatpush2.xpose.msra.mxu0 0.0
    %291 = vmatprep.subr.mxu0 0.0
    %292 = vmatpush2.xpose.msra.mxu0 0.0
    %293 = vmatprep.subr.mxu0 0.0
    %294 = vmatpush2.xpose.msra.mxu0 0.0
    %295 = vmatprep.subr.mxu0 0.0
    %296 = vmatpush2.xpose.msra.mxu0 0.0
    %297 = vmatprep.subr.mxu0 0.0
    %298 = vmatpush2.xpose.msra.mxu0 0.0
    %299 = vmatprep.subr.mxu0 0.0
    %300 = vmatpush2.xpose.msra.mxu0 0.0
    %301 = vmatprep.subr.mxu0 0.0
    %302 = vmatpush2.xpose.msra.mxu0 0.0
    %303 = vmatprep.mubr.f32.mxu0 0.0
    %304 = vmatmul.mubr.f32.gmra.mxu0 %v235
    %v305 = vpop.f32.mrf.mxu0
    %v306 = vadd.f32 0.0, %v305
    %v307 = vpop.f32.mrf.mxu0
    %308 = vdwg.mxu0
    %v309 = vsel %vm157, %v229, -inf
    %310 = vmax.xlane.f32.xlu0 %v309
    %v311 = vpop.xlane.xlu0 %310
    %v312 = vsel %vm157, %v306, -inf
    %313 = vmax.xlane.f32.xlu0 %v312
    %v314 = vpop.xlane.xlu0 %313
    %v315 = vsub.f32 %v229, %v311
    %v316 = vsub.f32 %v306, %v314
    %v317 = vmul.f32 %v315, 1.442695
    %v318 = vpow.pop %v317
    %v319 = vmul.f32 %v316, 1.442695
    %v320 = vpow.pop %v319
    %v321 = vsel %vm157, %v318, 0.0
    %322 = vadd.xlane.f32.xlu0 %v321
    %v323 = vpop.xlane.xlu0 %322
    %v324 = vsel %vm157, %v320, 0.0
    %325 = vadd.xlane.f32.xlu0 %v324
    %v326 = vpop.xlane.xlu0 %325
    %v327 = vrcp.pop %v323
    %v328 = vrcp.pop %v326
    %v329 = vmul.f32 %v318, %v327
    %v330 = vmul.f32 %v320, %v328
    %331 = vrot.lane.b32.xlu0 %v146, 64
    %v332 = vpop.permute.xlu0 %331
    %v335 = vsel %vm157, %v329, 0
    %337 = vmatprep.subr.mxu0 0.0
    %338 = vmatpush1.msra.mxu0 0.0
    %339 = vmatprep.subr.mxu0 0.0
    %340 = vmatpush1.msra.mxu0 0.0
    %341 = vmatprep.subr.mxu0 0.0
    %342 = vmatpush1.msra.mxu0 0.0
    %343 = vmatprep.subr.mxu0 0.0
    %344 = vmatpush1.msra.mxu0 0.0
    %345 = vmatprep.subr.mxu0 0.0
    %346 = vmatpush1.msra.mxu0 0.0
    %347 = vmatprep.subr.mxu0 0.0
    %348 = vmatpush1.msra.mxu0 0.0
    %349 = vmatprep.subr.mxu0 0.0
    %350 = vmatpush1.msra.mxu0 0.0
    %351 = vmatprep.subr.mxu0 0.0
    %352 = vmatpush1.msra.mxu0 0.0
    %353 = vmatprep.subr.mxu0 0.0
    %354 = vmatpush1.msra.mxu0 0.0
    %355 = vmatprep.subr.mxu0 0.0
    %356 = vmatpush1.msra.mxu0 0.0
    %357 = vmatprep.subr.mxu0 0.0
    %358 = vmatpush1.msra.mxu0 0.0
    %359 = vmatprep.subr.mxu0 0.0
    %360 = vmatpush1.msra.mxu0 0.0
    %361 = vmatprep.subr.mxu0 0.0
    %362 = vmatpush1.msra.mxu0 0.0
    %363 = vmatprep.subr.mxu0 0.0
    %364 = vmatpush1.msra.mxu0 0.0
    %365 = vmatprep.subr.mxu0 0.0
    %366 = vmatpush1.msra.mxu0 0.0
    %367 = vmatprep.subr.mxu0 0.0
    %368 = vmatpush1.msra.mxu0 %v332
    %369 = vmatprep.subr.mxu0 0.0
    %370 = vmatpush2.msra.mxu0 0.0
    %371 = vmatprep.subr.mxu0 0.0
    %372 = vmatpush2.msra.mxu0 0.0
    %373 = vmatprep.subr.mxu0 0.0
    %374 = vmatpush2.msra.mxu0 0.0
    %375 = vmatprep.subr.mxu0 0.0
    %376 = vmatpush2.msra.mxu0 0.0
    %377 = vmatprep.subr.mxu0 0.0
    %378 = vmatpush2.msra.mxu0 0.0
    %379 = vmatprep.subr.mxu0 0.0
    %380 = vmatpush2.msra.mxu0 0.0
    %381 = vmatprep.subr.mxu0 0.0
    %382 = vmatpush2.msra.mxu0 0.0
    %383 = vmatprep.subr.mxu0 0.0
    %384 = vmatpush2.msra.mxu0 0.0
    %385 = vmatprep.subr.mxu0 0.0
    %386 = vmatpush2.msra.mxu0 0.0
    %387 = vmatprep.subr.mxu0 0.0
    %388 = vmatpush2.msra.mxu0 0.0
    %389 = vmatprep.subr.mxu0 0.0
    %390 = vmatpush2.msra.mxu0 0.0
    %391 = vmatprep.subr.mxu0 0.0
    %392 = vmatpush2.msra.mxu0 0.0
    %393 = vmatprep.subr.mxu0 0.0
    %394 = vmatpush2.msra.mxu0 0.0
    %395 = vmatprep.subr.mxu0 0.0
    %396 = vmatpush2.msra.mxu0 0.0
    %397 = vmatprep.subr.mxu0 0.0
    %398 = vmatpush2.msra.mxu0 0.0
    %399 = vmatprep.subr.mxu0 0.0
    %400 = vmatpush2.msra.mxu0 0.0
    %401 = vmatprep.mubr.f32.mxu0 0.0
    %402 = vmatmul.mubr.f32.gmra.mxu0 %v335
    %v403 = vpop.f32.mrf.mxu0
    %v404 = vadd.f32 0.0, %v403
    %v405 = vpop.f32.mrf.mxu0
    %406 = vdwg.mxu0
    %407 = vrot.lane.b32.xlu0 %v151, 64
    %v408 = vpop.permute.xlu0 %407
    %v411 = vsel %vm157, %v330, 0
    %413 = vmatprep.subr.mxu0 0.0
    %414 = vmatpush1.msra.mxu0 0.0
    %415 = vmatprep.subr.mxu0 0.0
    %416 = vmatpush1.msra.mxu0 0.0
    %417 = vmatprep.subr.mxu0 0.0
    %418 = vmatpush1.msra.mxu0 0.0
    %419 = vmatprep.subr.mxu0 0.0
    %420 = vmatpush1.msra.mxu0 0.0
    %421 = vmatprep.subr.mxu0 0.0
    %422 = vmatpush1.msra.mxu0 0.0
    %423 = vmatprep.subr.mxu0 0.0
    %424 = vmatpush1.msra.mxu0 0.0
    %425 = vmatprep.subr.mxu0 0.0
    %426 = vmatpush1.msra.mxu0 0.0
    %427 = vmatprep.subr.mxu0 0.0
    %428 = vmatpush1.msra.mxu0 0.0
    %429 = vmatprep.subr.mxu0 0.0
    %430 = vmatpush1.msra.mxu0 0.0
    %431 = vmatprep.subr.mxu0 0.0
    %432 = vmatpush1.msra.mxu0 0.0
    %433 = vmatprep.subr.mxu0 0.0
    %434 = vmatpush1.msra.mxu0 0.0
    %435 = vmatprep.subr.mxu0 0.0
    %436 = vmatpush1.msra.mxu0 0.0
    %437 = vmatprep.subr.mxu0 0.0
    %438 = vmatpush1.msra.mxu0 0.0
    %439 = vmatprep.subr.mxu0 0.0
    %440 = vmatpush1.msra.mxu0 0.0
    %441 = vmatprep.subr.mxu0 0.0
    %442 = vmatpush1.msra.mxu0 0.0
    %443 = vmatprep.subr.mxu0 0.0
    %444 = vmatpush1.msra.mxu0 %v408
    %445 = vmatprep.subr.mxu0 0.0
    %446 = vmatpush2.msra.mxu0 0.0
    %447 = vmatprep.subr.mxu0 0.0
    %448 = vmatpush2.msra.mxu0 0.0
    %449 = vmatprep.subr.mxu0 0.0
    %450 = vmatpush2.msra.mxu0 0.0
    %451 = vmatprep.subr.mxu0 0.0
    %452 = vmatpush2.msra.mxu0 0.0
    %453 = vmatprep.subr.mxu0 0.0
    %454 = vmatpush2.msra.mxu0 0.0
    %455 = vmatprep.subr.mxu0 0.0
    %456 = vmatpush2.msra.mxu0 0.0
    %457 = vmatprep.subr.mxu0 0.0
    %458 = vmatpush2.msra.mxu0 0.0
    %459 = vmatprep.subr.mxu0 0.0
    %460 = vmatpush2.msra.mxu0 0.0
    %461 = vmatprep.subr.mxu0 0.0
    %462 = vmatpush2.msra.mxu0 0.0
    %463 = vmatprep.subr.mxu0 0.0
    %464 = vmatpush2.msra.mxu0 0.0
    %465 = vmatprep.subr.mxu0 0.0
    %466 = vmatpush2.msra.mxu0 0.0
    %467 = vmatprep.subr.mxu0 0.0
    %468 = vmatpush2.msra.mxu0 0.0
    %469 = vmatprep.subr.mxu0 0.0
    %470 = vmatpush2.msra.mxu0 0.0
    %471 = vmatprep.subr.mxu0 0.0
    %472 = vmatpush2.msra.mxu0 0.0
    %473 = vmatprep.subr.mxu0 0.0
    %474 = vmatpush2.msra.mxu0 0.0
    %475 = vmatprep.subr.mxu0 0.0
    %476 = vmatpush2.msra.mxu0 0.0
    %477 = vmatprep.mubr.f32.mxu0 0.0
    %478 = vmatmul.mubr.f32.gmra.mxu0 %v411
    %v479 = vpop.f32.mrf.mxu0
    %v480 = vadd.f32 0.0, %v479
    %v481 = vpop.f32.mrf.mxu0
    %482 = vdwg.mxu0
    %483 = vrot.lane.b32.xlu0 %v146, 120
    %v484 = vpop.permute.xlu0 %483
    %485 = vrot.lane.b32.xlu0 %v146, 88
    %v486 = vpop.permute.xlu0 %485
    %v487 = vsel %vm157, %v484, 0
    %v489 = vsel %vm157, %v486, 0
    %491 = vmatprep.subr.mxu0 0.0
    %492 = vmatpush1.xpose.msra.mxu0 0.0
    %493 = vmatprep.subr.mxu0 0.0
    %494 = vmatpush1.xpose.msra.mxu0 0.0
    %495 = vmatprep.subr.mxu0 0.0
    %496 = vmatpush1.xpose.msra.mxu0 0.0
    %497 = vmatprep.subr.mxu0 0.0
    %498 = vmatpush1.xpose.msra.mxu0 0.0
    %499 = vmatprep.subr.mxu0 0.0
    %500 = vmatpush1.xpose.msra.mxu0 0.0
    %501 = vmatprep.subr.mxu0 0.0
    %502 = vmatpush1.xpose.msra.mxu0 0.0
    %503 = vmatprep.subr.mxu0 0.0
    %504 = vmatpush1.xpose.msra.mxu0 0.0
    %505 = vmatprep.subr.mxu0 0.0
    %506 = vmatpush1.xpose.msra.mxu0 0.0
    %507 = vmatprep.subr.mxu0 0.0
    %508 = vmatpush1.xpose.msra.mxu0 0.0
    %509 = vmatprep.subr.mxu0 0.0
    %510 = vmatpush1.xpose.msra.mxu0 0.0
    %511 = vmatprep.subr.mxu0 0.0
    %512 = vmatpush1.xpose.msra.mxu0 0.0
    %513 = vmatprep.subr.mxu0 0.0
    %514 = vmatpush1.xpose.msra.mxu0 0.0
    %515 = vmatprep.subr.mxu0 0.0
    %516 = vmatpush1.xpose.msra.mxu0 0.0
    %517 = vmatprep.subr.mxu0 0.0
    %518 = vmatpush1.xpose.msra.mxu0 0.0
    %519 = vmatprep.subr.mxu0 0.0
    %520 = vmatpush1.xpose.msra.mxu0 0.0
    %521 = vmatprep.subr.mxu0 0.0
    %522 = vmatpush1.xpose.msra.mxu0 %v489
    %523 = vmatprep.subr.mxu0 0.0
    %524 = vmatpush2.xpose.msra.mxu0 0.0
    %525 = vmatprep.subr.mxu0 0.0
    %526 = vmatpush2.xpose.msra.mxu0 0.0
    %527 = vmatprep.subr.mxu0 0.0
    %528 = vmatpush2.xpose.msra.mxu0 0.0
    %529 = vmatprep.subr.mxu0 0.0
    %530 = vmatpush2.xpose.msra.mxu0 0.0
    %531 = vmatprep.subr.mxu0 0.0
    %532 = vmatpush2.xpose.msra.mxu0 0.0
    %533 = vmatprep.subr.mxu0 0.0
    %534 = vmatpush2.xpose.msra.mxu0 0.0
    %535 = vmatprep.subr.mxu0 0.0
    %536 = vmatpush2.xpose.msra.mxu0 0.0
    %537 = vmatprep.subr.mxu0 0.0
    %538 = vmatpush2.xpose.msra.mxu0 0.0
    %539 = vmatprep.subr.mxu0 0.0
    %540 = vmatpush2.xpose.msra.mxu0 0.0
    %541 = vmatprep.subr.mxu0 0.0
    %542 = vmatpush2.xpose.msra.mxu0 0.0
    %543 = vmatprep.subr.mxu0 0.0
    %544 = vmatpush2.xpose.msra.mxu0 0.0
    %545 = vmatprep.subr.mxu0 0.0
    %546 = vmatpush2.xpose.msra.mxu0 0.0
    %547 = vmatprep.subr.mxu0 0.0
    %548 = vmatpush2.xpose.msra.mxu0 0.0
    %549 = vmatprep.subr.mxu0 0.0
    %550 = vmatpush2.xpose.msra.mxu0 0.0
    %551 = vmatprep.subr.mxu0 0.0
    %552 = vmatpush2.xpose.msra.mxu0 0.0
    %553 = vmatprep.subr.mxu0 0.0
    %554 = vmatpush2.xpose.msra.mxu0 0.0
    %555 = vmatprep.mubr.f32.mxu0 0.0
    %556 = vmatmul.mubr.f32.gmra.mxu0 %v487
    %v557 = vpop.f32.mrf.mxu0
    %v558 = vadd.f32 0.0, %v557
    %v559 = vpop.f32.mrf.mxu0
    %560 = vdwg.mxu0
    %561 = vrot.lane.b32.xlu0 %v151, 120
    %v562 = vpop.permute.xlu0 %561
    %563 = vrot.lane.b32.xlu0 %v151, 88
    %v564 = vpop.permute.xlu0 %563
    %v565 = vsel %vm157, %v562, 0
    %v567 = vsel %vm157, %v564, 0
    %569 = vmatprep.subr.mxu0 0.0
    %570 = vmatpush1.xpose.msra.mxu0 0.0
    %571 = vmatprep.subr.mxu0 0.0
    %572 = vmatpush1.xpose.msra.mxu0 0.0
    %573 = vmatprep.subr.mxu0 0.0
    %574 = vmatpush1.xpose.msra.mxu0 0.0
    %575 = vmatprep.subr.mxu0 0.0
    %576 = vmatpush1.xpose.msra.mxu0 0.0
    %577 = vmatprep.subr.mxu0 0.0
    %578 = vmatpush1.xpose.msra.mxu0 0.0
    %579 = vmatprep.subr.mxu0 0.0
    %580 = vmatpush1.xpose.msra.mxu0 0.0
    %581 = vmatprep.subr.mxu0 0.0
    %582 = vmatpush1.xpose.msra.mxu0 0.0
    %583 = vmatprep.subr.mxu0 0.0
    %584 = vmatpush1.xpose.msra.mxu0 0.0
    %585 = vmatprep.subr.mxu0 0.0
    %586 = vmatpush1.xpose.msra.mxu0 0.0
    %587 = vmatprep.subr.mxu0 0.0
    %588 = vmatpush1.xpose.msra.mxu0 0.0
    %589 = vmatprep.subr.mxu0 0.0
    %590 = vmatpush1.xpose.msra.mxu0 0.0
    %591 = vmatprep.subr.mxu0 0.0
    %592 = vmatpush1.xpose.msra.mxu0 0.0
    %593 = vmatprep.subr.mxu0 0.0
    %594 = vmatpush1.xpose.msra.mxu0 0.0
    %595 = vmatprep.subr.mxu0 0.0
    %596 = vmatpush1.xpose.msra.mxu0 0.0
    %597 = vmatprep.subr.mxu0 0.0
    %598 = vmatpush1.xpose.msra.mxu0 0.0
    %599 = vmatprep.subr.mxu0 0.0
    %600 = vmatpush1.xpose.msra.mxu0 %v567
    %601 = vmatprep.subr.mxu0 0.0
    %602 = vmatpush2.xpose.msra.mxu0 0.0
    %603 = vmatprep.subr.mxu0 0.0
    %604 = vmatpush2.xpose.msra.mxu0 0.0
    %605 = vmatprep.subr.mxu0 0.0
    %606 = vmatpush2.xpose.msra.mxu0 0.0
    %607 = vmatprep.subr.mxu0 0.0
    %608 = vmatpush2.xpose.msra.mxu0 0.0
    %609 = vmatprep.subr.mxu0 0.0
    %610 = vmatpush2.xpose.msra.mxu0 0.0
    %611 = vmatprep.subr.mxu0 0.0
    %612 = vmatpush2.xpose.msra.mxu0 0.0
    %613 = vmatprep.subr.mxu0 0.0
    %614 = vmatpush2.xpose.msra.mxu0 0.0
    %615 = vmatprep.subr.mxu0 0.0
    %616 = vmatpush2.xpose.msra.mxu0 0.0
    %617 = vmatprep.subr.mxu0 0.0
    %618 = vmatpush2.xpose.msra.mxu0 0.0
    %619 = vmatprep.subr.mxu0 0.0
    %620 = vmatpush2.xpose.msra.mxu0 0.0
    %621 = vmatprep.subr.mxu0 0.0
    %622 = vmatpush2.xpose.msra.mxu0 0.0
    %623 = vmatprep.subr.mxu0 0.0
    %624 = vmatpush2.xpose.msra.mxu0 0.0
    %625 = vmatprep.subr.mxu0 0.0
    %626 = vmatpush2.xpose.msra.mxu0 0.0
    %627 = vmatprep.subr.mxu0 0.0
    %628 = vmatpush2.xpose.msra.mxu0 0.0
    %629 = vmatprep.subr.mxu0 0.0
    %630 = vmatpush2.xpose.msra.mxu0 0.0
    %631 = vmatprep.subr.mxu0 0.0
    %632 = vmatpush2.xpose.msra.mxu0 0.0
    %633 = vmatprep.mubr.f32.mxu0 0.0
    %634 = vmatmul.mubr.f32.gmra.mxu0 %v565
    %v635 = vpop.f32.mrf.mxu0
    %v636 = vadd.f32 0.0, %v635
    %v637 = vpop.f32.mrf.mxu0
    %638 = vdwg.mxu0
    %v639 = vsel %vm157, %v558, -inf
    %640 = vmax.xlane.f32.xlu0 %v639
    %v641 = vpop.xlane.xlu0 %640
    %v642 = vsel %vm157, %v636, -inf
    %643 = vmax.xlane.f32.xlu0 %v642
    %v644 = vpop.xlane.xlu0 %643
    %v645 = vsub.f32 %v558, %v641
    %v646 = vsub.f32 %v636, %v644
    %v647 = vmul.f32 %v645, 1.442695
    %v648 = vpow.pop %v647
    %v649 = vmul.f32 %v646, 1.442695
    %v650 = vpow.pop %v649
    %v651 = vsel %vm157, %v648, 0.0
    %652 = vadd.xlane.f32.xlu0 %v651
    %v653 = vpop.xlane.xlu0 %652
    %v654 = vsel %vm157, %v650, 0.0
    %655 = vadd.xlane.f32.xlu0 %v654
    %v656 = vpop.xlane.xlu0 %655
    %v657 = vrcp.pop %v653
    %v658 = vrcp.pop %v656
    %v659 = vmul.f32 %v648, %v657
    %v660 = vmul.f32 %v650, %v658
    %661 = vrot.lane.b32.xlu0 %v146, 56
    %v662 = vpop.permute.xlu0 %661
    %v665 = vsel %vm157, %v659, 0
    %667 = vmatprep.subr.mxu0 0.0
    %668 = vmatpush1.msra.mxu0 0.0
    %669 = vmatprep.subr.mxu0 0.0
    %670 = vmatpush1.msra.mxu0 0.0
    %671 = vmatprep.subr.mxu0 0.0
    %672 = vmatpush1.msra.mxu0 0.0
    %673 = vmatprep.subr.mxu0 0.0
    %674 = vmatpush1.msra.mxu0 0.0
    %675 = vmatprep.subr.mxu0 0.0
    %676 = vmatpush1.msra.mxu0 0.0
    %677 = vmatprep.subr.mxu0 0.0
    %678 = vmatpush1.msra.mxu0 0.0
    %679 = vmatprep.subr.mxu0 0.0
    %680 = vmatpush1.msra.mxu0 0.0
    %681 = vmatprep.subr.mxu0 0.0
    %682 = vmatpush1.msra.mxu0 0.0
    %683 = vmatprep.subr.mxu0 0.0
    %684 = vmatpush1.msra.mxu0 0.0
    %685 = vmatprep.subr.mxu0 0.0
    %686 = vmatpush1.msra.mxu0 0.0
    %687 = vmatprep.subr.mxu0 0.0
    %688 = vmatpush1.msra.mxu0 0.0
    %689 = vmatprep.subr.mxu0 0.0
    %690 = vmatpush1.msra.mxu0 0.0
    %691 = vmatprep.subr.mxu0 0.0
    %692 = vmatpush1.msra.mxu0 0.0
    %693 = vmatprep.subr.mxu0 0.0
    %694 = vmatpush1.msra.mxu0 0.0
    %695 = vmatprep.subr.mxu0 0.0
    %696 = vmatpush1.msra.mxu0 0.0
    %697 = vmatprep.subr.mxu0 0.0
    %698 = vmatpush1.msra.mxu0 %v662
    %699 = vmatprep.subr.mxu0 0.0
    %700 = vmatpush2.msra.mxu0 0.0
    %701 = vmatprep.subr.mxu0 0.0
    %702 = vmatpush2.msra.mxu0 0.0
    %703 = vmatprep.subr.mxu0 0.0
    %704 = vmatpush2.msra.mxu0 0.0
    %705 = vmatprep.subr.mxu0 0.0
    %706 = vmatpush2.msra.mxu0 0.0
    %707 = vmatprep.subr.mxu0 0.0
    %708 = vmatpush2.msra.mxu0 0.0
    %709 = vmatprep.subr.mxu0 0.0
    %710 = vmatpush2.msra.mxu0 0.0
    %711 = vmatprep.subr.mxu0 0.0
    %712 = vmatpush2.msra.mxu0 0.0
    %713 = vmatprep.subr.mxu0 0.0
    %714 = vmatpush2.msra.mxu0 0.0
    %715 = vmatprep.subr.mxu0 0.0
    %716 = vmatpush2.msra.mxu0 0.0
    %717 = vmatprep.subr.mxu0 0.0
    %718 = vmatpush2.msra.mxu0 0.0
    %719 = vmatprep.subr.mxu0 0.0
    %720 = vmatpush2.msra.mxu0 0.0
    %721 = vmatprep.subr.mxu0 0.0
    %722 = vmatpush2.msra.mxu0 0.0
    %723 = vmatprep.subr.mxu0 0.0
    %724 = vmatpush2.msra.mxu0 0.0
    %725 = vmatprep.subr.mxu0 0.0
    %726 = vmatpush2.msra.mxu0 0.0
    %727 = vmatprep.subr.mxu0 0.0
    %728 = vmatpush2.msra.mxu0 0.0
    %729 = vmatprep.subr.mxu0 0.0
    %730 = vmatpush2.msra.mxu0 0.0
    %731 = vmatprep.mubr.f32.mxu0 0.0
    %732 = vmatmul.mubr.f32.gmra.mxu0 %v665
    %v733 = vpop.f32.mrf.mxu0
    %v734 = vadd.f32 0.0, %v733
    %v735 = vpop.f32.mrf.mxu0
    %736 = vdwg.mxu0
    %737 = vrot.lane.b32.xlu0 %v151, 56
    %v738 = vpop.permute.xlu0 %737
    %v741 = vsel %vm157, %v660, 0
    %743 = vmatprep.subr.mxu0 0.0
    %744 = vmatpush1.msra.mxu0 0.0
    %745 = vmatprep.subr.mxu0 0.0
    %746 = vmatpush1.msra.mxu0 0.0
    %747 = vmatprep.subr.mxu0 0.0
    %748 = vmatpush1.msra.mxu0 0.0
    %749 = vmatprep.subr.mxu0 0.0
    %750 = vmatpush1.msra.mxu0 0.0
    %751 = vmatprep.subr.mxu0 0.0
    %752 = vmatpush1.msra.mxu0 0.0
    %753 = vmatprep.subr.mxu0 0.0
    %754 = vmatpush1.msra.mxu0 0.0
    %755 = vmatprep.subr.mxu0 0.0
    %756 = vmatpush1.msra.mxu0 0.0
    %757 = vmatprep.subr.mxu0 0.0
    %758 = vmatpush1.msra.mxu0 0.0
    %759 = vmatprep.subr.mxu0 0.0
    %760 = vmatpush1.msra.mxu0 0.0
    %761 = vmatprep.subr.mxu0 0.0
    %762 = vmatpush1.msra.mxu0 0.0
    %763 = vmatprep.subr.mxu0 0.0
    %764 = vmatpush1.msra.mxu0 0.0
    %765 = vmatprep.subr.mxu0 0.0
    %766 = vmatpush1.msra.mxu0 0.0
    %767 = vmatprep.subr.mxu0 0.0
    %768 = vmatpush1.msra.mxu0 0.0
    %769 = vmatprep.subr.mxu0 0.0
    %770 = vmatpush1.msra.mxu0 0.0
    %771 = vmatprep.subr.mxu0 0.0
    %772 = vmatpush1.msra.mxu0 0.0
    %773 = vmatprep.subr.mxu0 0.0
    %774 = vmatpush1.msra.mxu0 %v738
    %775 = vmatprep.subr.mxu0 0.0
    %776 = vmatpush2.msra.mxu0 0.0
    %777 = vmatprep.subr.mxu0 0.0
    %778 = vmatpush2.msra.mxu0 0.0
    %779 = vmatprep.subr.mxu0 0.0
    %780 = vmatpush2.msra.mxu0 0.0
    %781 = vmatprep.subr.mxu0 0.0
    %782 = vmatpush2.msra.mxu0 0.0
    %783 = vmatprep.subr.mxu0 0.0
    %784 = vmatpush2.msra.mxu0 0.0
    %785 = vmatprep.subr.mxu0 0.0
    %786 = vmatpush2.msra.mxu0 0.0
    %787 = vmatprep.subr.mxu0 0.0
    %788 = vmatpush2.msra.mxu0 0.0
    %789 = vmatprep.subr.mxu0 0.0
    %790 = vmatpush2.msra.mxu0 0.0
    %791 = vmatprep.subr.mxu0 0.0
    %792 = vmatpush2.msra.mxu0 0.0
    %793 = vmatprep.subr.mxu0 0.0
    %794 = vmatpush2.msra.mxu0 0.0
    %795 = vmatprep.subr.mxu0 0.0
    %796 = vmatpush2.msra.mxu0 0.0
    %797 = vmatprep.subr.mxu0 0.0
    %798 = vmatpush2.msra.mxu0 0.0
    %799 = vmatprep.subr.mxu0 0.0
    %800 = vmatpush2.msra.mxu0 0.0
    %801 = vmatprep.subr.mxu0 0.0
    %802 = vmatpush2.msra.mxu0 0.0
    %803 = vmatprep.subr.mxu0 0.0
    %804 = vmatpush2.msra.mxu0 0.0
    %805 = vmatprep.subr.mxu0 0.0
    %806 = vmatpush2.msra.mxu0 0.0
    %807 = vmatprep.mubr.f32.mxu0 0.0
    %808 = vmatmul.mubr.f32.gmra.mxu0 %v741
    %v809 = vpop.f32.mrf.mxu0
    %v810 = vadd.f32 0.0, %v809
    %v811 = vpop.f32.mrf.mxu0
    %812 = vdwg.mxu0
    %813 = vrot.lane.b32.xlu0 %v146, 112
    %v814 = vpop.permute.xlu0 %813
    %815 = vrot.lane.b32.xlu0 %v146, 80
    %v816 = vpop.permute.xlu0 %815
    %v817 = vsel %vm157, %v814, 0
    %v819 = vsel %vm157, %v816, 0
    %821 = vmatprep.subr.mxu0 0.0
    %822 = vmatpush1.xpose.msra.mxu0 0.0
    %823 = vmatprep.subr.mxu0 0.0
    %824 = vmatpush1.xpose.msra.mxu0 0.0
    %825 = vmatprep.subr.mxu0 0.0
    %826 = vmatpush1.xpose.msra.mxu0 0.0
    %827 = vmatprep.subr.mxu0 0.0
    %828 = vmatpush1.xpose.msra.mxu0 0.0
    %829 = vmatprep.subr.mxu0 0.0
    %830 = vmatpush1.xpose.msra.mxu0 0.0
    %831 = vmatprep.subr.mxu0 0.0
    %832 = vmatpush1.xpose.msra.mxu0 0.0
    %833 = vmatprep.subr.mxu0 0.0
    %834 = vmatpush1.xpose.msra.mxu0 0.0
    %835 = vmatprep.subr.mxu0 0.0
    %836 = vmatpush1.xpose.msra.mxu0 0.0
    %837 = vmatprep.subr.mxu0 0.0
    %838 = vmatpush1.xpose.msra.mxu0 0.0
    %839 = vmatprep.subr.mxu0 0.0
    %840 = vmatpush1.xpose.msra.mxu0 0.0
    %841 = vmatprep.subr.mxu0 0.0
    %842 = vmatpush1.xpose.msra.mxu0 0.0
    %843 = vmatprep.subr.mxu0 0.0
    %844 = vmatpush1.xpose.msra.mxu0 0.0
    %845 = vmatprep.subr.mxu0 0.0
    %846 = vmatpush1.xpose.msra.mxu0 0.0
    %847 = vmatprep.subr.mxu0 0.0
    %848 = vmatpush1.xpose.msra.mxu0 0.0
    %849 = vmatprep.subr.mxu0 0.0
    %850 = vmatpush1.xpose.msra.mxu0 0.0
    %851 = vmatprep.subr.mxu0 0.0
    %852 = vmatpush1.xpose.msra.mxu0 %v819
    %853 = vmatprep.subr.mxu0 0.0
    %854 = vmatpush2.xpose.msra.mxu0 0.0
    %855 = vmatprep.subr.mxu0 0.0
    %856 = vmatpush2.xpose.msra.mxu0 0.0
    %857 = vmatprep.subr.mxu0 0.0
    %858 = vmatpush2.xpose.msra.mxu0 0.0
    %859 = vmatprep.subr.mxu0 0.0
    %860 = vmatpush2.xpose.msra.mxu0 0.0
    %861 = vmatprep.subr.mxu0 0.0
    %862 = vmatpush2.xpose.msra.mxu0 0.0
    %863 = vmatprep.subr.mxu0 0.0
    %864 = vmatpush2.xpose.msra.mxu0 0.0
    %865 = vmatprep.subr.mxu0 0.0
    %866 = vmatpush2.xpose.msra.mxu0 0.0
    %867 = vmatprep.subr.mxu0 0.0
    %868 = vmatpush2.xpose.msra.mxu0 0.0
    %869 = vmatprep.subr.mxu0 0.0
    %870 = vmatpush2.xpose.msra.mxu0 0.0
    %871 = vmatprep.subr.mxu0 0.0
    %872 = vmatpush2.xpose.msra.mxu0 0.0
    %873 = vmatprep.subr.mxu0 0.0
    %874 = vmatpush2.xpose.msra.mxu0 0.0
    %875 = vmatprep.subr.mxu0 0.0
    %876 = vmatpush2.xpose.msra.mxu0 0.0
    %877 = vmatprep.subr.mxu0 0.0
    %878 = vmatpush2.xpose.msra.mxu0 0.0
    %879 = vmatprep.subr.mxu0 0.0
    %880 = vmatpush2.xpose.msra.mxu0 0.0
    %881 = vmatprep.subr.mxu0 0.0
    %882 = vmatpush2.xpose.msra.mxu0 0.0
    %883 = vmatprep.subr.mxu0 0.0
    %884 = vmatpush2.xpose.msra.mxu0 0.0
    %885 = vmatprep.mubr.f32.mxu0 0.0
    %886 = vmatmul.mubr.f32.gmra.mxu0 %v817
    %v887 = vpop.f32.mrf.mxu0
    %v888 = vadd.f32 0.0, %v887
    %v889 = vpop.f32.mrf.mxu0
    %890 = vdwg.mxu0
    %891 = vrot.lane.b32.xlu0 %v151, 112
    %v892 = vpop.permute.xlu0 %891
    %893 = vrot.lane.b32.xlu0 %v151, 80
    %v894 = vpop.permute.xlu0 %893
    %v895 = vsel %vm157, %v892, 0
    %v897 = vsel %vm157, %v894, 0
    %899 = vmatprep.subr.mxu0 0.0
    %900 = vmatpush1.xpose.msra.mxu0 0.0
    %901 = vmatprep.subr.mxu0 0.0
    %902 = vmatpush1.xpose.msra.mxu0 0.0
    %903 = vmatprep.subr.mxu0 0.0
    %904 = vmatpush1.xpose.msra.mxu0 0.0
    %905 = vmatprep.subr.mxu0 0.0
    %906 = vmatpush1.xpose.msra.mxu0 0.0
    %907 = vmatprep.subr.mxu0 0.0
    %908 = vmatpush1.xpose.msra.mxu0 0.0
    %909 = vmatprep.subr.mxu0 0.0
    %910 = vmatpush1.xpose.msra.mxu0 0.0
    %911 = vmatprep.subr.mxu0 0.0
    %912 = vmatpush1.xpose.msra.mxu0 0.0
    %913 = vmatprep.subr.mxu0 0.0
    %914 = vmatpush1.xpose.msra.mxu0 0.0
    %915 = vmatprep.subr.mxu0 0.0
    %916 = vmatpush1.xpose.msra.mxu0 0.0
    %917 = vmatprep.subr.mxu0 0.0
    %918 = vmatpush1.xpose.msra.mxu0 0.0
    %919 = vmatprep.subr.mxu0 0.0
    %920 = vmatpush1.xpose.msra.mxu0 0.0
    %921 = vmatprep.subr.mxu0 0.0
    %922 = vmatpush1.xpose.msra.mxu0 0.0
    %923 = vmatprep.subr.mxu0 0.0
    %924 = vmatpush1.xpose.msra.mxu0 0.0
    %925 = vmatprep.subr.mxu0 0.0
    %926 = vmatpush1.xpose.msra.mxu0 0.0
    %927 = vmatprep.subr.mxu0 0.0
    %928 = vmatpush1.xpose.msra.mxu0 0.0
    %929 = vmatprep.subr.mxu0 0.0
    %930 = vmatpush1.xpose.msra.mxu0 %v897
    %931 = vmatprep.subr.mxu0 0.0
    %932 = vmatpush2.xpose.msra.mxu0 0.0
    %933 = vmatprep.subr.mxu0 0.0
    %934 = vmatpush2.xpose.msra.mxu0 0.0
    %935 = vmatprep.subr.mxu0 0.0
    %936 = vmatpush2.xpose.msra.mxu0 0.0
    %937 = vmatprep.subr.mxu0 0.0
    %938 = vmatpush2.xpose.msra.mxu0 0.0
    %939 = vmatprep.subr.mxu0 0.0
    %940 = vmatpush2.xpose.msra.mxu0 0.0
    %941 = vmatprep.subr.mxu0 0.0
    %942 = vmatpush2.xpose.msra.mxu0 0.0
    %943 = vmatprep.subr.mxu0 0.0
    %944 = vmatpush2.xpose.msra.mxu0 0.0
    %945 = vmatprep.subr.mxu0 0.0
    %946 = vmatpush2.xpose.msra.mxu0 0.0
    %947 = vmatprep.subr.mxu0 0.0
    %948 = vmatpush2.xpose.msra.mxu0 0.0
    %949 = vmatprep.subr.mxu0 0.0
    %950 = vmatpush2.xpose.msra.mxu0 0.0
    %951 = vmatprep.subr.mxu0 0.0
    %952 = vmatpush2.xpose.msra.mxu0 0.0
    %953 = vmatprep.subr.mxu0 0.0
    %954 = vmatpush2.xpose.msra.mxu0 0.0
    %955 = vmatprep.subr.mxu0 0.0
    %956 = vmatpush2.xpose.msra.mxu0 0.0
    %957 = vmatprep.subr.mxu0 0.0
    %958 = vmatpush2.xpose.msra.mxu0 0.0
    %959 = vmatprep.subr.mxu0 0.0
    %960 = vmatpush2.xpose.msra.mxu0 0.0
    %961 = vmatprep.subr.mxu0 0.0
    %962 = vmatpush2.xpose.msra.mxu0 0.0
    %963 = vmatprep.mubr.f32.mxu0 0.0
    %964 = vmatmul.mubr.f32.gmra.mxu0 %v895
    %v965 = vpop.f32.mrf.mxu0
    %v966 = vadd.f32 0.0, %v965
    %v967 = vpop.f32.mrf.mxu0
    %968 = vdwg.mxu0
    %v969 = vsel %vm157, %v888, -inf
    %970 = vmax.xlane.f32.xlu0 %v969
    %v971 = vpop.xlane.xlu0 %970
    %v972 = vsel %vm157, %v966, -inf
    %973 = vmax.xlane.f32.xlu0 %v972
    %v974 = vpop.xlane.xlu0 %973
    %v975 = vsub.f32 %v888, %v971
    %v976 = vsub.f32 %v966, %v974
    %v977 = vmul.f32 %v975, 1.442695
    %v978 = vpow.pop %v977
    %v979 = vmul.f32 %v976, 1.442695
    %v980 = vpow.pop %v979
    %v981 = vsel %vm157, %v978, 0.0
    %982 = vadd.xlane.f32.xlu0 %v981
    %v983 = vpop.xlane.xlu0 %982
    %v984 = vsel %vm157, %v980, 0.0
    %985 = vadd.xlane.f32.xlu0 %v984
    %v986 = vpop.xlane.xlu0 %985
    %v987 = vrcp.pop %v983
    %v988 = vrcp.pop %v986
    %v989 = vmul.f32 %v978, %v987
    %v990 = vmul.f32 %v980, %v988
    %991 = vrot.lane.b32.xlu0 %v146, 48
    %v992 = vpop.permute.xlu0 %991
    %v995 = vsel %vm157, %v989, 0
    %997 = vmatprep.subr.mxu0 0.0
    %998 = vmatpush1.msra.mxu0 0.0
    %999 = vmatprep.subr.mxu0 0.0
    %1000 = vmatpush1.msra.mxu0 0.0
    %1001 = vmatprep.subr.mxu0 0.0
    %1002 = vmatpush1.msra.mxu0 0.0
    %1003 = vmatprep.subr.mxu0 0.0
    %1004 = vmatpush1.msra.mxu0 0.0
    %1005 = vmatprep.subr.mxu0 0.0
    %1006 = vmatpush1.msra.mxu0 0.0
    %1007 = vmatprep.subr.mxu0 0.0
    %1008 = vmatpush1.msra.mxu0 0.0
    %1009 = vmatprep.subr.mxu0 0.0
    %1010 = vmatpush1.msra.mxu0 0.0
    %1011 = vmatprep.subr.mxu0 0.0
    %1012 = vmatpush1.msra.mxu0 0.0
    %1013 = vmatprep.subr.mxu0 0.0
    %1014 = vmatpush1.msra.mxu0 0.0
    %1015 = vmatprep.subr.mxu0 0.0
    %1016 = vmatpush1.msra.mxu0 0.0
    %1017 = vmatprep.subr.mxu0 0.0
    %1018 = vmatpush1.msra.mxu0 0.0
    %1019 = vmatprep.subr.mxu0 0.0
    %1020 = vmatpush1.msra.mxu0 0.0
    %1021 = vmatprep.subr.mxu0 0.0
    %1022 = vmatpush1.msra.mxu0 0.0
    %1023 = vmatprep.subr.mxu0 0.0
    %1024 = vmatpush1.msra.mxu0 0.0
    %1025 = vmatprep.subr.mxu0 0.0
    %1026 = vmatpush1.msra.mxu0 0.0
    %1027 = vmatprep.subr.mxu0 0.0
    %1028 = vmatpush1.msra.mxu0 %v992
    %1029 = vmatprep.subr.mxu0 0.0
    %1030 = vmatpush2.msra.mxu0 0.0
    %1031 = vmatprep.subr.mxu0 0.0
    %1032 = vmatpush2.msra.mxu0 0.0
    %1033 = vmatprep.subr.mxu0 0.0
    %1034 = vmatpush2.msra.mxu0 0.0
    %1035 = vmatprep.subr.mxu0 0.0
    %1036 = vmatpush2.msra.mxu0 0.0
    %1037 = vmatprep.subr.mxu0 0.0
    %1038 = vmatpush2.msra.mxu0 0.0
    %1039 = vmatprep.subr.mxu0 0.0
    %1040 = vmatpush2.msra.mxu0 0.0
    %1041 = vmatprep.subr.mxu0 0.0
    %1042 = vmatpush2.msra.mxu0 0.0
    %1043 = vmatprep.subr.mxu0 0.0
    %1044 = vmatpush2.msra.mxu0 0.0
    %1045 = vmatprep.subr.mxu0 0.0
    %1046 = vmatpush2.msra.mxu0 0.0
    %1047 = vmatprep.subr.mxu0 0.0
    %1048 = vmatpush2.msra.mxu0 0.0
    %1049 = vmatprep.subr.mxu0 0.0
    %1050 = vmatpush2.msra.mxu0 0.0
    %1051 = vmatprep.subr.mxu0 0.0
    %1052 = vmatpush2.msra.mxu0 0.0
    %1053 = vmatprep.subr.mxu0 0.0
    %1054 = vmatpush2.msra.mxu0 0.0
    %1055 = vmatprep.subr.mxu0 0.0
    %1056 = vmatpush2.msra.mxu0 0.0
    %1057 = vmatprep.subr.mxu0 0.0
    %1058 = vmatpush2.msra.mxu0 0.0
    %1059 = vmatprep.subr.mxu0 0.0
    %1060 = vmatpush2.msra.mxu0 0.0
    %1061 = vmatprep.mubr.f32.mxu0 0.0
    %1062 = vmatmul.mubr.f32.gmra.mxu0 %v995
    %v1063 = vpop.f32.mrf.mxu0
    %v1064 = vadd.f32 0.0, %v1063
    %v1065 = vpop.f32.mrf.mxu0
    %1066 = vdwg.mxu0
    %1067 = vrot.lane.b32.xlu0 %v151, 48
    %v1068 = vpop.permute.xlu0 %1067
    %v1071 = vsel %vm157, %v990, 0
    %1073 = vmatprep.subr.mxu0 0.0
    %1074 = vmatpush1.msra.mxu0 0.0
    %1075 = vmatprep.subr.mxu0 0.0
    %1076 = vmatpush1.msra.mxu0 0.0
    %1077 = vmatprep.subr.mxu0 0.0
    %1078 = vmatpush1.msra.mxu0 0.0
    %1079 = vmatprep.subr.mxu0 0.0
    %1080 = vmatpush1.msra.mxu0 0.0
    %1081 = vmatprep.subr.mxu0 0.0
    %1082 = vmatpush1.msra.mxu0 0.0
    %1083 = vmatprep.subr.mxu0 0.0
    %1084 = vmatpush1.msra.mxu0 0.0
    %1085 = vmatprep.subr.mxu0 0.0
    %1086 = vmatpush1.msra.mxu0 0.0
    %1087 = vmatprep.subr.mxu0 0.0
    %1088 = vmatpush1.msra.mxu0 0.0
    %1089 = vmatprep.subr.mxu0 0.0
    %1090 = vmatpush1.msra.mxu0 0.0
    %1091 = vmatprep.subr.mxu0 0.0
    %1092 = vmatpush1.msra.mxu0 0.0
    %1093 = vmatprep.subr.mxu0 0.0
    %1094 = vmatpush1.msra.mxu0 0.0
    %1095 = vmatprep.subr.mxu0 0.0
    %1096 = vmatpush1.msra.mxu0 0.0
    %1097 = vmatprep.subr.mxu0 0.0
    %1098 = vmatpush1.msra.mxu0 0.0
    %1099 = vmatprep.subr.mxu0 0.0
    %1100 = vmatpush1.msra.mxu0 0.0
    %1101 = vmatprep.subr.mxu0 0.0
    %1102 = vmatpush1.msra.mxu0 0.0
    %1103 = vmatprep.subr.mxu0 0.0
    %1104 = vmatpush1.msra.mxu0 %v1068
    %1105 = vmatprep.subr.mxu0 0.0
    %1106 = vmatpush2.msra.mxu0 0.0
    %1107 = vmatprep.subr.mxu0 0.0
    %1108 = vmatpush2.msra.mxu0 0.0
    %1109 = vmatprep.subr.mxu0 0.0
    %1110 = vmatpush2.msra.mxu0 0.0
    %1111 = vmatprep.subr.mxu0 0.0
    %1112 = vmatpush2.msra.mxu0 0.0
    %1113 = vmatprep.subr.mxu0 0.0
    %1114 = vmatpush2.msra.mxu0 0.0
    %1115 = vmatprep.subr.mxu0 0.0
    %1116 = vmatpush2.msra.mxu0 0.0
    %1117 = vmatprep.subr.mxu0 0.0
    %1118 = vmatpush2.msra.mxu0 0.0
    %1119 = vmatprep.subr.mxu0 0.0
    %1120 = vmatpush2.msra.mxu0 0.0
    %1121 = vmatprep.subr.mxu0 0.0
    %1122 = vmatpush2.msra.mxu0 0.0
    %1123 = vmatprep.subr.mxu0 0.0
    %1124 = vmatpush2.msra.mxu0 0.0
    %1125 = vmatprep.subr.mxu0 0.0
    %1126 = vmatpush2.msra.mxu0 0.0
    %1127 = vmatprep.subr.mxu0 0.0
    %1128 = vmatpush2.msra.mxu0 0.0
    %1129 = vmatprep.subr.mxu0 0.0
    %1130 = vmatpush2.msra.mxu0 0.0
    %1131 = vmatprep.subr.mxu0 0.0
    %1132 = vmatpush2.msra.mxu0 0.0
    %1133 = vmatprep.subr.mxu0 0.0
    %1134 = vmatpush2.msra.mxu0 0.0
    %1135 = vmatprep.subr.mxu0 0.0
    %1136 = vmatpush2.msra.mxu0 0.0
    %1137 = vmatprep.mubr.f32.mxu0 0.0
    %1138 = vmatmul.mubr.f32.gmra.mxu0 %v1071
    %v1139 = vpop.f32.mrf.mxu0
    %v1140 = vadd.f32 0.0, %v1139
    %v1141 = vpop.f32.mrf.mxu0
    %1142 = vdwg.mxu0
    %1143 = vrot.lane.b32.xlu0 %v146, 104
    %v1144 = vpop.permute.xlu0 %1143
    %1145 = vrot.lane.b32.xlu0 %v146, 72
    %v1146 = vpop.permute.xlu0 %1145
    %v1147 = vsel %vm157, %v1144, 0
    %v1149 = vsel %vm157, %v1146, 0
    %1151 = vmatprep.subr.mxu0 0.0
    %1152 = vmatpush1.xpose.msra.mxu0 0.0
    %1153 = vmatprep.subr.mxu0 0.0
    %1154 = vmatpush1.xpose.msra.mxu0 0.0
    %1155 = vmatprep.subr.mxu0 0.0
    %1156 = vmatpush1.xpose.msra.mxu0 0.0
    %1157 = vmatprep.subr.mxu0 0.0
    %1158 = vmatpush1.xpose.msra.mxu0 0.0
    %1159 = vmatprep.subr.mxu0 0.0
    %1160 = vmatpush1.xpose.msra.mxu0 0.0
    %1161 = vmatprep.subr.mxu0 0.0
    %1162 = vmatpush1.xpose.msra.mxu0 0.0
    %1163 = vmatprep.subr.mxu0 0.0
    %1164 = vmatpush1.xpose.msra.mxu0 0.0
    %1165 = vmatprep.subr.mxu0 0.0
    %1166 = vmatpush1.xpose.msra.mxu0 0.0
    %1167 = vmatprep.subr.mxu0 0.0
    %1168 = vmatpush1.xpose.msra.mxu0 0.0
    %1169 = vmatprep.subr.mxu0 0.0
    %1170 = vmatpush1.xpose.msra.mxu0 0.0
    %1171 = vmatprep.subr.mxu0 0.0
    %1172 = vmatpush1.xpose.msra.mxu0 0.0
    %1173 = vmatprep.subr.mxu0 0.0
    %1174 = vmatpush1.xpose.msra.mxu0 0.0
    %1175 = vmatprep.subr.mxu0 0.0
    %1176 = vmatpush1.xpose.msra.mxu0 0.0
    %1177 = vmatprep.subr.mxu0 0.0
    %1178 = vmatpush1.xpose.msra.mxu0 0.0
    %1179 = vmatprep.subr.mxu0 0.0
    %1180 = vmatpush1.xpose.msra.mxu0 0.0
    %1181 = vmatprep.subr.mxu0 0.0
    %1182 = vmatpush1.xpose.msra.mxu0 %v1149
    %1183 = vmatprep.subr.mxu0 0.0
    %1184 = vmatpush2.xpose.msra.mxu0 0.0
    %1185 = vmatprep.subr.mxu0 0.0
    %1186 = vmatpush2.xpose.msra.mxu0 0.0
    %1187 = vmatprep.subr.mxu0 0.0
    %1188 = vmatpush2.xpose.msra.mxu0 0.0
    %1189 = vmatprep.subr.mxu0 0.0
    %1190 = vmatpush2.xpose.msra.mxu0 0.0
    %1191 = vmatprep.subr.mxu0 0.0
    %1192 = vmatpush2.xpose.msra.mxu0 0.0
    %1193 = vmatprep.subr.mxu0 0.0
    %1194 = vmatpush2.xpose.msra.mxu0 0.0
    %1195 = vmatprep.subr.mxu0 0.0
    %1196 = vmatpush2.xpose.msra.mxu0 0.0
    %1197 = vmatprep.subr.mxu0 0.0
    %1198 = vmatpush2.xpose.msra.mxu0 0.0
    %1199 = vmatprep.subr.mxu0 0.0
    %1200 = vmatpush2.xpose.msra.mxu0 0.0
    %1201 = vmatprep.subr.mxu0 0.0
    %1202 = vmatpush2.xpose.msra.mxu0 0.0
    %1203 = vmatprep.subr.mxu0 0.0
    %1204 = vmatpush2.xpose.msra.mxu0 0.0
    %1205 = vmatprep.subr.mxu0 0.0
    %1206 = vmatpush2.xpose.msra.mxu0 0.0
    %1207 = vmatprep.subr.mxu0 0.0
    %1208 = vmatpush2.xpose.msra.mxu0 0.0
    %1209 = vmatprep.subr.mxu0 0.0
    %1210 = vmatpush2.xpose.msra.mxu0 0.0
    %1211 = vmatprep.subr.mxu0 0.0
    %1212 = vmatpush2.xpose.msra.mxu0 0.0
    %1213 = vmatprep.subr.mxu0 0.0
    %1214 = vmatpush2.xpose.msra.mxu0 0.0
    %1215 = vmatprep.mubr.f32.mxu0 0.0
    %1216 = vmatmul.mubr.f32.gmra.mxu0 %v1147
    %v1217 = vpop.f32.mrf.mxu0
    %v1218 = vadd.f32 0.0, %v1217
    %v1219 = vpop.f32.mrf.mxu0
    %1220 = vdwg.mxu0
    %1221 = vrot.lane.b32.xlu0 %v151, 104
    %v1222 = vpop.permute.xlu0 %1221
    %1223 = vrot.lane.b32.xlu0 %v151, 72
    %v1224 = vpop.permute.xlu0 %1223
    %v1225 = vsel %vm157, %v1222, 0
    %v1227 = vsel %vm157, %v1224, 0
    %1229 = vmatprep.subr.mxu0 0.0
    %1230 = vmatpush1.xpose.msra.mxu0 0.0
    %1231 = vmatprep.subr.mxu0 0.0
    %1232 = vmatpush1.xpose.msra.mxu0 0.0
    %1233 = vmatprep.subr.mxu0 0.0
    %1234 = vmatpush1.xpose.msra.mxu0 0.0
    %1235 = vmatprep.subr.mxu0 0.0
    %1236 = vmatpush1.xpose.msra.mxu0 0.0
    %1237 = vmatprep.subr.mxu0 0.0
    %1238 = vmatpush1.xpose.msra.mxu0 0.0
    %1239 = vmatprep.subr.mxu0 0.0
    %1240 = vmatpush1.xpose.msra.mxu0 0.0
    %1241 = vmatprep.subr.mxu0 0.0
    %1242 = vmatpush1.xpose.msra.mxu0 0.0
    %1243 = vmatprep.subr.mxu0 0.0
    %1244 = vmatpush1.xpose.msra.mxu0 0.0
    %1245 = vmatprep.subr.mxu0 0.0
    %1246 = vmatpush1.xpose.msra.mxu0 0.0
    %1247 = vmatprep.subr.mxu0 0.0
    %1248 = vmatpush1.xpose.msra.mxu0 0.0
    %1249 = vmatprep.subr.mxu0 0.0
    %1250 = vmatpush1.xpose.msra.mxu0 0.0
    %1251 = vmatprep.subr.mxu0 0.0
    %1252 = vmatpush1.xpose.msra.mxu0 0.0
    %1253 = vmatprep.subr.mxu0 0.0
    %1254 = vmatpush1.xpose.msra.mxu0 0.0
    %1255 = vmatprep.subr.mxu0 0.0
    %1256 = vmatpush1.xpose.msra.mxu0 0.0
    %1257 = vmatprep.subr.mxu0 0.0
    %1258 = vmatpush1.xpose.msra.mxu0 0.0
    %1259 = vmatprep.subr.mxu0 0.0
    %1260 = vmatpush1.xpose.msra.mxu0 %v1227
    %1261 = vmatprep.subr.mxu0 0.0
    %1262 = vmatpush2.xpose.msra.mxu0 0.0
    %1263 = vmatprep.subr.mxu0 0.0
    %1264 = vmatpush2.xpose.msra.mxu0 0.0
    %1265 = vmatprep.subr.mxu0 0.0
    %1266 = vmatpush2.xpose.msra.mxu0 0.0
    %1267 = vmatprep.subr.mxu0 0.0
    %1268 = vmatpush2.xpose.msra.mxu0 0.0
    %1269 = vmatprep.subr.mxu0 0.0
    %1270 = vmatpush2.xpose.msra.mxu0 0.0
    %1271 = vmatprep.subr.mxu0 0.0
    %1272 = vmatpush2.xpose.msra.mxu0 0.0
    %1273 = vmatprep.subr.mxu0 0.0
    %1274 = vmatpush2.xpose.msra.mxu0 0.0
    %1275 = vmatprep.subr.mxu0 0.0
    %1276 = vmatpush2.xpose.msra.mxu0 0.0
    %1277 = vmatprep.subr.mxu0 0.0
    %1278 = vmatpush2.xpose.msra.mxu0 0.0
    %1279 = vmatprep.subr.mxu0 0.0
    %1280 = vmatpush2.xpose.msra.mxu0 0.0
    %1281 = vmatprep.subr.mxu0 0.0
    %1282 = vmatpush2.xpose.msra.mxu0 0.0
    %1283 = vmatprep.subr.mxu0 0.0
    %1284 = vmatpush2.xpose.msra.mxu0 0.0
    %1285 = vmatprep.subr.mxu0 0.0
    %1286 = vmatpush2.xpose.msra.mxu0 0.0
    %1287 = vmatprep.subr.mxu0 0.0
    %1288 = vmatpush2.xpose.msra.mxu0 0.0
    %1289 = vmatprep.subr.mxu0 0.0
    %1290 = vmatpush2.xpose.msra.mxu0 0.0
    %1291 = vmatprep.subr.mxu0 0.0
    %1292 = vmatpush2.xpose.msra.mxu0 0.0
    %1293 = vmatprep.mubr.f32.mxu0 0.0
    %1294 = vmatmul.mubr.f32.gmra.mxu0 %v1225
    %v1295 = vpop.f32.mrf.mxu0
    %v1296 = vadd.f32 0.0, %v1295
    %v1297 = vpop.f32.mrf.mxu0
    %1298 = vdwg.mxu0
    %v1299 = vsel %vm157, %v1218, -inf
    %1300 = vmax.xlane.f32.xlu0 %v1299
    %v1301 = vpop.xlane.xlu0 %1300
    %v1302 = vsel %vm157, %v1296, -inf
    %1303 = vmax.xlane.f32.xlu0 %v1302
    %v1304 = vpop.xlane.xlu0 %1303
    %v1305 = vsub.f32 %v1218, %v1301
    %v1306 = vsub.f32 %v1296, %v1304
    %v1307 = vmul.f32 %v1305, 1.442695
    %v1308 = vpow.pop %v1307
    %v1309 = vmul.f32 %v1306, 1.442695
    %v1310 = vpow.pop %v1309
    %v1311 = vsel %vm157, %v1308, 0.0
    %1312 = vadd.xlane.f32.xlu0 %v1311
    %v1313 = vpop.xlane.xlu0 %1312
    %v1314 = vsel %vm157, %v1310, 0.0
    %1315 = vadd.xlane.f32.xlu0 %v1314
    %v1316 = vpop.xlane.xlu0 %1315
    %v1317 = vrcp.pop %v1313
    %v1318 = vrcp.pop %v1316
    %v1319 = vmul.f32 %v1308, %v1317
    %v1320 = vmul.f32 %v1310, %v1318
    %1321 = vrot.lane.b32.xlu0 %v146, 40
    %v1322 = vpop.permute.xlu0 %1321
    %v1325 = vsel %vm157, %v1319, 0
    %1327 = vmatprep.subr.mxu0 0.0
    %1328 = vmatpush1.msra.mxu0 0.0
    %1329 = vmatprep.subr.mxu0 0.0
    %1330 = vmatpush1.msra.mxu0 0.0
    %1331 = vmatprep.subr.mxu0 0.0
    %1332 = vmatpush1.msra.mxu0 0.0
    %1333 = vmatprep.subr.mxu0 0.0
    %1334 = vmatpush1.msra.mxu0 0.0
    %1335 = vmatprep.subr.mxu0 0.0
    %1336 = vmatpush1.msra.mxu0 0.0
    %1337 = vmatprep.subr.mxu0 0.0
    %1338 = vmatpush1.msra.mxu0 0.0
    %1339 = vmatprep.subr.mxu0 0.0
    %1340 = vmatpush1.msra.mxu0 0.0
    %1341 = vmatprep.subr.mxu0 0.0
    %1342 = vmatpush1.msra.mxu0 0.0
    %1343 = vmatprep.subr.mxu0 0.0
    %1344 = vmatpush1.msra.mxu0 0.0
    %1345 = vmatprep.subr.mxu0 0.0
    %1346 = vmatpush1.msra.mxu0 0.0
    %1347 = vmatprep.subr.mxu0 0.0
    %1348 = vmatpush1.msra.mxu0 0.0
    %1349 = vmatprep.subr.mxu0 0.0
    %1350 = vmatpush1.msra.mxu0 0.0
    %1351 = vmatprep.subr.mxu0 0.0
    %1352 = vmatpush1.msra.mxu0 0.0
    %1353 = vmatprep.subr.mxu0 0.0
    %1354 = vmatpush1.msra.mxu0 0.0
    %1355 = vmatprep.subr.mxu0 0.0
    %1356 = vmatpush1.msra.mxu0 0.0
    %1357 = vmatprep.subr.mxu0 0.0
    %1358 = vmatpush1.msra.mxu0 %v1322
    %1359 = vmatprep.subr.mxu0 0.0
    %1360 = vmatpush2.msra.mxu0 0.0
    %1361 = vmatprep.subr.mxu0 0.0
    %1362 = vmatpush2.msra.mxu0 0.0
    %1363 = vmatprep.subr.mxu0 0.0
    %1364 = vmatpush2.msra.mxu0 0.0
    %1365 = vmatprep.subr.mxu0 0.0
    %1366 = vmatpush2.msra.mxu0 0.0
    %1367 = vmatprep.subr.mxu0 0.0
    %1368 = vmatpush2.msra.mxu0 0.0
    %1369 = vmatprep.subr.mxu0 0.0
    %1370 = vmatpush2.msra.mxu0 0.0
    %1371 = vmatprep.subr.mxu0 0.0
    %1372 = vmatpush2.msra.mxu0 0.0
    %1373 = vmatprep.subr.mxu0 0.0
    %1374 = vmatpush2.msra.mxu0 0.0
    %1375 = vmatprep.subr.mxu0 0.0
    %1376 = vmatpush2.msra.mxu0 0.0
    %1377 = vmatprep.subr.mxu0 0.0
    %1378 = vmatpush2.msra.mxu0 0.0
    %1379 = vmatprep.subr.mxu0 0.0
    %1380 = vmatpush2.msra.mxu0 0.0
    %1381 = vmatprep.subr.mxu0 0.0
    %1382 = vmatpush2.msra.mxu0 0.0
    %1383 = vmatprep.subr.mxu0 0.0
    %1384 = vmatpush2.msra.mxu0 0.0
    %1385 = vmatprep.subr.mxu0 0.0
    %1386 = vmatpush2.msra.mxu0 0.0
    %1387 = vmatprep.subr.mxu0 0.0
    %1388 = vmatpush2.msra.mxu0 0.0
    %1389 = vmatprep.subr.mxu0 0.0
    %1390 = vmatpush2.msra.mxu0 0.0
    %1391 = vmatprep.mubr.f32.mxu0 0.0
    %1392 = vmatmul.mubr.f32.gmra.mxu0 %v1325
    %v1393 = vpop.f32.mrf.mxu0
    %v1394 = vadd.f32 0.0, %v1393
    %v1395 = vpop.f32.mrf.mxu0
    %1396 = vdwg.mxu0
    %1397 = vrot.lane.b32.xlu0 %v151, 40
    %v1398 = vpop.permute.xlu0 %1397
    %v1401 = vsel %vm157, %v1320, 0
    %1403 = vmatprep.subr.mxu0 0.0
    %1404 = vmatpush1.msra.mxu0 0.0
    %1405 = vmatprep.subr.mxu0 0.0
    %1406 = vmatpush1.msra.mxu0 0.0
    %1407 = vmatprep.subr.mxu0 0.0
    %1408 = vmatpush1.msra.mxu0 0.0
    %1409 = vmatprep.subr.mxu0 0.0
    %1410 = vmatpush1.msra.mxu0 0.0
    %1411 = vmatprep.subr.mxu0 0.0
    %1412 = vmatpush1.msra.mxu0 0.0
    %1413 = vmatprep.subr.mxu0 0.0
    %1414 = vmatpush1.msra.mxu0 0.0
    %1415 = vmatprep.subr.mxu0 0.0
    %1416 = vmatpush1.msra.mxu0 0.0
    %1417 = vmatprep.subr.mxu0 0.0
    %1418 = vmatpush1.msra.mxu0 0.0
    %1419 = vmatprep.subr.mxu0 0.0
    %1420 = vmatpush1.msra.mxu0 0.0
    %1421 = vmatprep.subr.mxu0 0.0
    %1422 = vmatpush1.msra.mxu0 0.0
    %1423 = vmatprep.subr.mxu0 0.0
    %1424 = vmatpush1.msra.mxu0 0.0
    %1425 = vmatprep.subr.mxu0 0.0
    %1426 = vmatpush1.msra.mxu0 0.0
    %1427 = vmatprep.subr.mxu0 0.0
    %1428 = vmatpush1.msra.mxu0 0.0
    %1429 = vmatprep.subr.mxu0 0.0
    %1430 = vmatpush1.msra.mxu0 0.0
    %1431 = vmatprep.subr.mxu0 0.0
    %1432 = vmatpush1.msra.mxu0 0.0
    %1433 = vmatprep.subr.mxu0 0.0
    %1434 = vmatpush1.msra.mxu0 %v1398
    %1435 = vmatprep.subr.mxu0 0.0
    %1436 = vmatpush2.msra.mxu0 0.0
    %1437 = vmatprep.subr.mxu0 0.0
    %1438 = vmatpush2.msra.mxu0 0.0
    %1439 = vmatprep.subr.mxu0 0.0
    %1440 = vmatpush2.msra.mxu0 0.0
    %1441 = vmatprep.subr.mxu0 0.0
    %1442 = vmatpush2.msra.mxu0 0.0
    %1443 = vmatprep.subr.mxu0 0.0
    %1444 = vmatpush2.msra.mxu0 0.0
    %1445 = vmatprep.subr.mxu0 0.0
    %1446 = vmatpush2.msra.mxu0 0.0
    %1447 = vmatprep.subr.mxu0 0.0
    %1448 = vmatpush2.msra.mxu0 0.0
    %1449 = vmatprep.subr.mxu0 0.0
    %1450 = vmatpush2.msra.mxu0 0.0
    %1451 = vmatprep.subr.mxu0 0.0
    %1452 = vmatpush2.msra.mxu0 0.0
    %1453 = vmatprep.subr.mxu0 0.0
    %1454 = vmatpush2.msra.mxu0 0.0
    %1455 = vmatprep.subr.mxu0 0.0
    %1456 = vmatpush2.msra.mxu0 0.0
    %1457 = vmatprep.subr.mxu0 0.0
    %1458 = vmatpush2.msra.mxu0 0.0
    %1459 = vmatprep.subr.mxu0 0.0
    %1460 = vmatpush2.msra.mxu0 0.0
    %1461 = vmatprep.subr.mxu0 0.0
    %1462 = vmatpush2.msra.mxu0 0.0
    %1463 = vmatprep.subr.mxu0 0.0
    %1464 = vmatpush2.msra.mxu0 0.0
    %1465 = vmatprep.subr.mxu0 0.0
    %1466 = vmatpush2.msra.mxu0 0.0
    %1467 = vmatprep.mubr.f32.mxu0 0.0
    %1468 = vmatmul.mubr.f32.gmra.mxu0 %v1401
    %v1469 = vpop.f32.mrf.mxu0
    %v1470 = vadd.f32 0.0, %v1469
    %v1471 = vpop.f32.mrf.mxu0
    %1472 = vdwg.mxu0
    %1475 = vrot.lane.b32.xlu0 %v734, 8
    %v1476 = vpop.permute.xlu0 %1475
    %1477 = vrot.lane.b32.xlu0 %v810, 8
    %v1478 = vpop.permute.xlu0 %1477
    %1483 = vrot.lane.b32.xlu0 %v1064, 16
    %v1484 = vpop.permute.xlu0 %1483
    %1485 = vrot.lane.b32.xlu0 %v1140, 16
    %v1486 = vpop.permute.xlu0 %1485
    %1491 = vrot.lane.b32.xlu0 %v1394, 24
    %v1492 = vpop.permute.xlu0 %1491
    %1493 = vrot.lane.b32.xlu0 %v1470, 24
    %v1494 = vpop.permute.xlu0 %1493
    %v1497 = vsel %vm157, %v404, %v1476
    %v1498 = vsel %vm157, %v480, %v1478
    %vm1499 = vcmask 130048
    %v1500 = vsel %vm1499, %v1497, %v1484
    %v1501 = vsel %vm1499, %v1498, %v1486
    %vm1502 = vcmask 195584
    %v1503 = vsel %vm1502, %v1500, %v1492
    %v1504 = vsel %vm1502, %v1501, %v1494
    %v1505 = vld [vmem:[%s3] sm:$0xff]
    %v1506 = vld [vmem:[%s3 + $0x8] sm:$0xff]
    %v1507 = vld [vmem:[%s3 + $0x10] sm:$0xff]
    %v1508 = vld [vmem:[%s3 + $0x18] sm:$0xff]
    %v1509 = vld [vmem:[%s4] sm:$0x1]
    %v1511 = vlaneseq
    %v1512 = vshrl.u32 %v1511, 7
    %v1513 = vsub.s32 0, %v1512
    %v1514 = vrot.slane %v1509, %v1513
    %v1517 = vsel %vm72, %v1503, 0
    %v1520 = vsel %vm72, %v1504, 0
    %1522 = vmatprep.subr.mxu0 0.0
    %1523 = vmatpush1.msra.mxu0 0.0
    %1524 = vmatprep.subr.mxu0 0.0
    %1525 = vmatpush1.msra.mxu0 0.0
    %1526 = vmatprep.subr.mxu0 0.0
    %1527 = vmatpush1.msra.mxu0 0.0
    %1528 = vmatprep.subr.mxu0 0.0
    %1529 = vmatpush1.msra.mxu0 0.0
    %1530 = vmatprep.subr.mxu0 0.0
    %1531 = vmatpush1.msra.mxu0 0.0
    %1532 = vmatprep.subr.mxu0 0.0
    %1533 = vmatpush1.msra.mxu0 0.0
    %1534 = vmatprep.subr.mxu0 0.0
    %1535 = vmatpush1.msra.mxu0 0.0
    %1536 = vmatprep.subr.mxu0 0.0
    %1537 = vmatpush1.msra.mxu0 0.0
    %1538 = vmatprep.subr.mxu0 0.0
    %1539 = vmatpush1.msra.mxu0 0.0
    %1540 = vmatprep.subr.mxu0 0.0
    %1541 = vmatpush1.msra.mxu0 0.0
    %1542 = vmatprep.subr.mxu0 0.0
    %1543 = vmatpush1.msra.mxu0 0.0
    %1544 = vmatprep.subr.mxu0 0.0
    %1545 = vmatpush1.msra.mxu0 0.0
    %1546 = vmatprep.subr.mxu0 0.0
    %1547 = vmatpush1.msra.mxu0 %v1508
    %1548 = vmatprep.subr.mxu0 0.0
    %1549 = vmatpush1.msra.mxu0 %v1507
    %1550 = vmatprep.subr.mxu0 0.0
    %1551 = vmatpush1.msra.mxu0 %v1506
    %1552 = vmatprep.subr.mxu0 0.0
    %1553 = vmatpush1.msra.mxu0 %v1505
    %1554 = vmatprep.subr.mxu0 0.0
    %1555 = vmatpush2.msra.mxu0 0.0
    %1556 = vmatprep.subr.mxu0 0.0
    %1557 = vmatpush2.msra.mxu0 0.0
    %1558 = vmatprep.subr.mxu0 0.0
    %1559 = vmatpush2.msra.mxu0 0.0
    %1560 = vmatprep.subr.mxu0 0.0
    %1561 = vmatpush2.msra.mxu0 0.0
    %1562 = vmatprep.subr.mxu0 0.0
    %1563 = vmatpush2.msra.mxu0 0.0
    %1564 = vmatprep.subr.mxu0 0.0
    %1565 = vmatpush2.msra.mxu0 0.0
    %1566 = vmatprep.subr.mxu0 0.0
    %1567 = vmatpush2.msra.mxu0 0.0
    %1568 = vmatprep.subr.mxu0 0.0
    %1569 = vmatpush2.msra.mxu0 0.0
    %1570 = vmatprep.subr.mxu0 0.0
    %1571 = vmatpush2.msra.mxu0 0.0
    %1572 = vmatprep.subr.mxu0 0.0
    %1573 = vmatpush2.msra.mxu0 0.0
    %1574 = vmatprep.subr.mxu0 0.0
    %1575 = vmatpush2.msra.mxu0 0.0
    %1576 = vmatprep.subr.mxu0 0.0
    %1577 = vmatpush2.msra.mxu0 0.0
    %1578 = vmatprep.subr.mxu0 0.0
    %1579 = vmatpush2.msra.mxu0 0.0
    %1580 = vmatprep.subr.mxu0 0.0
    %1581 = vmatpush2.msra.mxu0 0.0
    %1582 = vmatprep.subr.mxu0 0.0
    %1583 = vmatpush2.msra.mxu0 0.0
    %1584 = vmatprep.subr.mxu0 0.0
    %1585 = vmatpush2.msra.mxu0 0.0
    %1586 = vmatprep.mubr.f32.mxu0 0.0
    %1587 = vmatmul.mubr.f32.gmra.mxu0 %v1517
    %v1588 = vpop.f32.mrf.mxu0
    %v1589 = vadd.f32 %v1514, %v1588
    %v1590 = vpop.f32.mrf.mxu0
    %1591 = vmatprep.mubr.f32.mxu0 0.0
    %1592 = vmatmul.mubr.f32.gmra.mxu0 %v1520
    %v1593 = vpop.f32.mrf.mxu0
    %v1594 = vadd.f32 %v1514, %v1593
    %v1595 = vpop.f32.mrf.mxu0
    %1596 = vdwg.mxu0
    %v1597 = vadd.f32 %v59, %v1589
    %v1598 = vadd.f32 %v60, %v1594
    %v1599 = vsel %vm72, %v1597, 0.0
    %1600 = vadd.xlane.f32.xlu0 %v1599
    %v1601 = vpop.xlane.xlu0 %1600
    %v1602 = vsel %vm72, %v1598, 0.0
    %1603 = vadd.xlane.f32.xlu0 %v1602
    %v1604 = vpop.xlane.xlu0 %1603
    %v1605 = vrcp.pop 32.0
    %v1606 = vmul.f32 %v1601, %v1605
    %v1607 = vmul.f32 %v1604, %v1605
    %v1608 = vsub.f32 %v1597, %v1606
    %v1609 = vsub.f32 %v1598, %v1607
    %v1610 = vmul.f32 %v1608, %v1608
    %v1611 = vmul.f32 %v1609, %v1609
    %v1612 = vsel %vm72, %v1610, 0.0
    %1613 = vadd.xlane.f32.xlu0 %v1612
    %v1614 = vpop.xlane.xlu0 %1613
    %v1615 = vsel %vm72, %v1611, 0.0
    %1616 = vadd.xlane.f32.xlu0 %v1615
    %v1617 = vpop.xlane.xlu0 %1616
    %v1618 = vmul.f32 %v1614, %v1605
    %v1619 = vmul.f32 %v1617, %v1605
    %v1620 = vadd.f32 %v1618, 1e-05
    %v1621 = vadd.f32 %v1619, 1e-05
    %v1622 = vrsqrt.pop %v1620
    %v1623 = vrsqrt.pop %v1621
    %v1624 = vmul.f32 %v1608, %v1622
    %v1625 = vmul.f32 %v1609, %v1623
    %v1626 = vld [vmem:[%s9] sm:$0x1]
    %v1628 = vlaneseq
    %v1629 = vshrl.u32 %v1628, 7
    %v1630 = vsub.s32 0, %v1629
    %v1631 = vrot.slane %v1626, %v1630
    %v1633 = vmul.f32 %v1624, %v1631
    %v1634 = vmul.f32 %v1625, %v1631
    %v1635 = vld [vmem:[%s10] sm:$0x1]
    %v1637 = vlaneseq
    %v1638 = vshrl.u32 %v1637, 7
    %v1639 = vsub.s32 0, %v1638
    %v1640 = vrot.slane %v1635, %v1639
    %v1642 = vadd.f32 %v1633, %v1640
    %v1643 = vadd.f32 %v1634, %v1640
    %v1644 = vld [vmem:[%s5] sm:$0xff]
    %v1645 = vld [vmem:[%s5 + $0x8] sm:$0xff]
    %v1646 = vld [vmem:[%s5 + $0x10] sm:$0xff]
    %v1647 = vld [vmem:[%s5 + $0x18] sm:$0xff]
    %v1648 = vld [vmem:[%s6] sm:$0x1]
    %v1650 = vlaneseq
    %v1651 = vshrl.u32 %v1650, 7
    %v1652 = vsub.s32 0, %v1651
    %v1653 = vrot.slane %v1648, %v1652
    %v1656 = vsel %vm72, %v1642, 0
    %v1659 = vsel %vm72, %v1643, 0
    %1661 = vmatprep.subr.mxu0 0.0
    %1662 = vmatpush1.msra.mxu0 0.0
    %1663 = vmatprep.subr.mxu0 0.0
    %1664 = vmatpush1.msra.mxu0 0.0
    %1665 = vmatprep.subr.mxu0 0.0
    %1666 = vmatpush1.msra.mxu0 0.0
    %1667 = vmatprep.subr.mxu0 0.0
    %1668 = vmatpush1.msra.mxu0 0.0
    %1669 = vmatprep.subr.mxu0 0.0
    %1670 = vmatpush1.msra.mxu0 0.0
    %1671 = vmatprep.subr.mxu0 0.0
    %1672 = vmatpush1.msra.mxu0 0.0
    %1673 = vmatprep.subr.mxu0 0.0
    %1674 = vmatpush1.msra.mxu0 0.0
    %1675 = vmatprep.subr.mxu0 0.0
    %1676 = vmatpush1.msra.mxu0 0.0
    %1677 = vmatprep.subr.mxu0 0.0
    %1678 = vmatpush1.msra.mxu0 0.0
    %1679 = vmatprep.subr.mxu0 0.0
    %1680 = vmatpush1.msra.mxu0 0.0
    %1681 = vmatprep.subr.mxu0 0.0
    %1682 = vmatpush1.msra.mxu0 0.0
    %1683 = vmatprep.subr.mxu0 0.0
    %1684 = vmatpush1.msra.mxu0 0.0
    %1685 = vmatprep.subr.mxu0 0.0
    %1686 = vmatpush1.msra.mxu0 %v1647
    %1687 = vmatprep.subr.mxu0 0.0
    %1688 = vmatpush1.msra.mxu0 %v1646
    %1689 = vmatprep.subr.mxu0 0.0
    %1690 = vmatpush1.msra.mxu0 %v1645
    %1691 = vmatprep.subr.mxu0 0.0
    %1692 = vmatpush1.msra.mxu0 %v1644
    %1693 = vmatprep.subr.mxu0 0.0
    %1694 = vmatpush2.msra.mxu0 0.0
    %1695 = vmatprep.subr.mxu0 0.0
    %1696 = vmatpush2.msra.mxu0 0.0
    %1697 = vmatprep.subr.mxu0 0.0
    %1698 = vmatpush2.msra.mxu0 0.0
    %1699 = vmatprep.subr.mxu0 0.0
    %1700 = vmatpush2.msra.mxu0 0.0
    %1701 = vmatprep.subr.mxu0 0.0
    %1702 = vmatpush2.msra.mxu0 0.0
    %1703 = vmatprep.subr.mxu0 0.0
    %1704 = vmatpush2.msra.mxu0 0.0
    %1705 = vmatprep.subr.mxu0 0.0
    %1706 = vmatpush2.msra.mxu0 0.0
    %1707 = vmatprep.subr.mxu0 0.0
    %1708 = vmatpush2.msra.mxu0 0.0
    %1709 = vmatprep.subr.mxu0 0.0
    %1710 = vmatpush2.msra.mxu0 0.0
    %1711 = vmatprep.subr.mxu0 0.0
    %1712 = vmatpush2.msra.mxu0 0.0
    %1713 = vmatprep.subr.mxu0 0.0
    %1714 = vmatpush2.msra.mxu0 0.0
    %1715 = vmatprep.subr.mxu0 0.0
    %1716 = vmatpush2.msra.mxu0 0.0
    %1717 = vmatprep.subr.mxu0 0.0
    %1718 = vmatpush2.msra.mxu0 0.0
    %1719 = vmatprep.subr.mxu0 0.0
    %1720 = vmatpush2.msra.mxu0 0.0
    %1721 = vmatprep.subr.mxu0 0.0
    %1722 = vmatpush2.msra.mxu0 0.0
    %1723 = vmatprep.subr.mxu0 0.0
    %1724 = vmatpush2.msra.mxu0 0.0
    %1725 = vmatprep.mubr.f32.mxu0 0.0
    %1726 = vmatmul.mubr.f32.gmra.mxu0 %v1656
    %v1727 = vpop.f32.mrf.mxu0
    %v1728 = vadd.f32 %v1653, %v1727
    %v1729 = vpop.f32.mrf.mxu0
    %1730 = vmatprep.mubr.f32.mxu0 0.0
    %1731 = vmatmul.mubr.f32.gmra.mxu0 %v1659
    %v1732 = vpop.f32.mrf.mxu0
    %v1733 = vadd.f32 %v1653, %v1732
    %v1734 = vpop.f32.mrf.mxu0
    %1735 = vdwg.mxu0
    %v1736 = vmax.f32 %v1728, 0.0
    %v1737 = vmax.f32 %v1733, 0.0
    %v1738 = vld [vmem:[%s7] sm:$0xff]
    %v1739 = vld [vmem:[%s7 + $0x8] sm:$0xff]
    %v1740 = vld [vmem:[%s7 + $0x10] sm:$0xff]
    %v1741 = vld [vmem:[%s7 + $0x18] sm:$0xff]
    %v1742 = vld [vmem:[%s7 + $0x20] sm:$0xff]
    %v1743 = vld [vmem:[%s7 + $0x28] sm:$0xff]
    %v1744 = vld [vmem:[%s7 + $0x30] sm:$0xff]
    %v1745 = vld [vmem:[%s7 + $0x38] sm:$0xff]
    %v1746 = vld [vmem:[%s8] sm:$0x1]
    %v1748 = vlaneseq
    %v1749 = vshrl.u32 %v1748, 7
    %v1750 = vsub.s32 0, %v1749
    %v1751 = vrot.slane %v1746, %v1750
    %vm1753 = vcmask 523264
    %v1755 = vsel %vm1753, %v1736, 0
    %v1758 = vsel %vm1753, %v1737, 0
    %1760 = vmatprep.subr.mxu0 0.0
    %1761 = vmatpush1.msra.mxu0 0.0
    %1762 = vmatprep.subr.mxu0 0.0
    %1763 = vmatpush1.msra.mxu0 0.0
    %1764 = vmatprep.subr.mxu0 0.0
    %1765 = vmatpush1.msra.mxu0 0.0
    %1766 = vmatprep.subr.mxu0 0.0
    %1767 = vmatpush1.msra.mxu0 0.0
    %1768 = vmatprep.subr.mxu0 0.0
    %1769 = vmatpush1.msra.mxu0 0.0
    %1770 = vmatprep.subr.mxu0 0.0
    %1771 = vmatpush1.msra.mxu0 0.0
    %1772 = vmatprep.subr.mxu0 0.0
    %1773 = vmatpush1.msra.mxu0 0.0
    %1774 = vmatprep.subr.mxu0 0.0
    %1775 = vmatpush1.msra.mxu0 0.0
    %1776 = vmatprep.subr.mxu0 0.0
    %1777 = vmatpush1.msra.mxu0 %v1745
    %1778 = vmatprep.subr.mxu0 0.0
    %1779 = vmatpush1.msra.mxu0 %v1744
    %1780 = vmatprep.subr.mxu0 0.0
    %1781 = vmatpush1.msra.mxu0 %v1743
    %1782 = vmatprep.subr.mxu0 0.0
    %1783 = vmatpush1.msra.mxu0 %v1742
    %1784 = vmatprep.subr.mxu0 0.0
    %1785 = vmatpush1.msra.mxu0 %v1741
    %1786 = vmatprep.subr.mxu0 0.0
    %1787 = vmatpush1.msra.mxu0 %v1740
    %1788 = vmatprep.subr.mxu0 0.0
    %1789 = vmatpush1.msra.mxu0 %v1739
    %1790 = vmatprep.subr.mxu0 0.0
    %1791 = vmatpush1.msra.mxu0 %v1738
    %1792 = vmatprep.subr.mxu0 0.0
    %1793 = vmatpush2.msra.mxu0 0.0
    %1794 = vmatprep.subr.mxu0 0.0
    %1795 = vmatpush2.msra.mxu0 0.0
    %1796 = vmatprep.subr.mxu0 0.0
    %1797 = vmatpush2.msra.mxu0 0.0
    %1798 = vmatprep.subr.mxu0 0.0
    %1799 = vmatpush2.msra.mxu0 0.0
    %1800 = vmatprep.subr.mxu0 0.0
    %1801 = vmatpush2.msra.mxu0 0.0
    %1802 = vmatprep.subr.mxu0 0.0
    %1803 = vmatpush2.msra.mxu0 0.0
    %1804 = vmatprep.subr.mxu0 0.0
    %1805 = vmatpush2.msra.mxu0 0.0
    %1806 = vmatprep.subr.mxu0 0.0
    %1807 = vmatpush2.msra.mxu0 0.0
    %1808 = vmatprep.subr.mxu0 0.0
    %1809 = vmatpush2.msra.mxu0 0.0
    %1810 = vmatprep.subr.mxu0 0.0
    %1811 = vmatpush2.msra.mxu0 0.0
    %1812 = vmatprep.subr.mxu0 0.0
    %1813 = vmatpush2.msra.mxu0 0.0
    %1814 = vmatprep.subr.mxu0 0.0
    %1815 = vmatpush2.msra.mxu0 0.0
    %1816 = vmatprep.subr.mxu0 0.0
    %1817 = vmatpush2.msra.mxu0 0.0
    %1818 = vmatprep.subr.mxu0 0.0
    %1819 = vmatpush2.msra.mxu0 0.0
    %1820 = vmatprep.subr.mxu0 0.0
    %1821 = vmatpush2.msra.mxu0 0.0
    %1822 = vmatprep.subr.mxu0 0.0
    %1823 = vmatpush2.msra.mxu0 0.0
    %1824 = vmatprep.mubr.f32.mxu0 0.0
    %1825 = vmatmul.mubr.f32.gmra.mxu0 %v1755
    %v1826 = vpop.f32.mrf.mxu0
    %v1827 = vadd.f32 %v1751, %v1826
    %v1828 = vpop.f32.mrf.mxu0
    %1829 = vmatprep.mubr.f32.mxu0 0.0
    %1830 = vmatmul.mubr.f32.gmra.mxu0 %v1758
    %v1831 = vpop.f32.mrf.mxu0
    %v1832 = vadd.f32 %v1751, %v1831
    %v1833 = vpop.f32.mrf.mxu0
    %1834 = vdwg.mxu0
    %v1835 = vadd.f32 %v1642, %v1827
    %v1836 = vadd.f32 %v1643, %v1832
    %v1837 = vsel %vm72, %v1835, 0.0
    %1838 = vadd.xlane.f32.xlu0 %v1837
    %v1839 = vpop.xlane.xlu0 %1838
    %v1840 = vsel %vm72, %v1836, 0.0
    %1841 = vadd.xlane.f32.xlu0 %v1840
    %v1842 = vpop.xlane.xlu0 %1841
    %v1843 = vmul.f32 %v1839, %v1605
    %v1844 = vmul.f32 %v1842, %v1605
    %v1845 = vsub.f32 %v1835, %v1843
    %v1846 = vsub.f32 %v1836, %v1844
    %v1847 = vmul.f32 %v1845, %v1845
    %v1848 = vmul.f32 %v1846, %v1846
    %v1849 = vsel %vm72, %v1847, 0.0
    %1850 = vadd.xlane.f32.xlu0 %v1849
    %v1851 = vpop.xlane.xlu0 %1850
    %v1852 = vsel %vm72, %v1848, 0.0
    %1853 = vadd.xlane.f32.xlu0 %v1852
    %v1854 = vpop.xlane.xlu0 %1853
    %v1855 = vmul.f32 %v1851, %v1605
    %v1856 = vmul.f32 %v1854, %v1605
    %v1857 = vadd.f32 %v1855, 1e-05
    %v1858 = vadd.f32 %v1856, 1e-05
    %v1859 = vrsqrt.pop %v1857
    %v1860 = vrsqrt.pop %v1858
    %v1861 = vmul.f32 %v1845, %v1859
    %v1862 = vmul.f32 %v1846, %v1860
    %v1863 = vld [vmem:[%s11] sm:$0x1]
    %v1865 = vlaneseq
    %v1866 = vshrl.u32 %v1865, 7
    %v1867 = vsub.s32 0, %v1866
    %v1868 = vrot.slane %v1863, %v1867
    %v1870 = vmul.f32 %v1861, %v1868
    %v1871 = vmul.f32 %v1862, %v1868
    %v1872 = vld [vmem:[%s12] sm:$0x1]
    %v1874 = vlaneseq
    %v1875 = vshrl.u32 %v1874, 7
    %v1876 = vsub.s32 0, %v1875
    %v1877 = vrot.slane %v1872, %v1876
    %v1879 = vadd.f32 %v1870, %v1877
    %v1880 = vadd.f32 %v1871, %v1877
    %1881 = vst.msk [vmem:[#allocation5] sm:$0xff] %vm72, %v1879
    %1882 = vst.msk [vmem:[#allocation5 + $0x8] sm:$0xff] %vm72, %v1880
    // Predicated region
    $region58: #{tpu_custom_call.1} parent=1 // pred_check
      _
    $region59: #{tpu_custom_call.1} parent=1 // pred_check_branch
      %1884 = sbr.rel (0) target = $region61
    $region60: #{tpu_custom_call.1} parent=1 // pred_region
      %s1886 = ssub.s32 256, 256
      %1887 = vsyncadd [#allocation4], %s1886
      %s1888 = sshll.u32 [#allocation5], 4
      %s1889 = int_to_ptr.vmem [resolvable:$true] %s1888
      %1894 = dma.vmem_to_hbm [thread:$0]  %s1889, 256, %s13, [#allocation4], 128, 128, 8
    $region61: #{tpu_custom_call.1} parent=1 // pred_fallthru
      _
    // Predicated region
    $region62: #{tpu_custom_call.1} parent=1 // pred_check
      _
    $region63: #{tpu_custom_call.1} parent=1 // pred_check_branch
      %1896 = sbr.rel (0) target = $region65
    $region64: #{tpu_custom_call.1} parent=1 // pred_region
      %1897 = dma.done [#allocation4], 256
    $region65: #{tpu_custom_call.1} parent=1 // pred_fallthru
      _
    %1898 = vsyncpa [#allocation3], 1
    %1899 = vsyncpa [#allocation4], 1

</llo_original>
